<compile_context>
chip_gen: v7x
topology: tpu7x:2x2x1
jax: 0.10.0
libtpu: 0.0.40
codegen_flags: <defaults>
</compile_context>

<pallas_src>
import numpy as np
import jax
import jax.numpy as jnp
from jax import lax
from jax.experimental import pallas as pl
from jax.experimental.pallas import tpu as pltpu

_LN_EPS = 1e-5                      # PyTorch nn.LayerNorm default
_SQRT_HALF = 0.7071067811865476


# ----------------------------------------------------------------------------- in-kernel helpers

def _erf_approx(z):
    # Abramowitz & Stegun 7.1.26, |err| <= 1.5e-7.  Uses only exp/mul/add/where, which lower
    # on every TPU generation (keeps PyTorch's exact-erf GELU semantics to well below 1e-4).
    a1, a2, a3, a4, a5 = 0.254829592, -0.284496736, 1.421413741, -1.453152027, 1.061405429
    p = 0.3275911
    sign = jnp.where(z >= 0.0, 1.0, -1.0)
    za = jnp.abs(z)
    t = 1.0 / (1.0 + p * za)
    poly = ((((a5 * t + a4) * t + a3) * t + a2) * t + a1) * t
    return sign * (1.0 - poly * jnp.exp(-za * za))


def _gelu_exact(x):
    # PyTorch nn.GELU() default (erf formulation).
    return 0.5 * x * (1.0 + _erf_approx(x * _SQRT_HALF))


def _layer_norm(x, gamma, beta):
    mu = jnp.mean(x, axis=-1, keepdims=True)
    var = jnp.mean(jnp.square(x - mu), axis=-1, keepdims=True)
    return (x - mu) * lax.rsqrt(var + _LN_EPS) * gamma + beta


# ----------------------------------------------------------------------------- fused kernel

def _make_block_kernel(heads, dim_head, scale):
    inner = heads * dim_head

    def kernel(x_ref, ln1_g_ref, ln1_b_ref, w_qkv_ref, bias_ref, w_out_ref, b_out_ref,
               ln2_g_ref, ln2_b_ref, w1_ref, b1_ref, w2_ref, b2_ref, o_ref):
        x = x_ref[0]                                                    # (N, C), stays in VMEM

        # ---------------- attention branch: PreNorm + MHSA + residual ----------------
        xn = _layer_norm(x, ln1_g_ref[...], ln1_b_ref[...])
        qkv = jnp.dot(xn, w_qkv_ref[...], preferred_element_type=jnp.float32)   # (N, 3*H*d)

        head_outs = []
        for h in range(heads):                                          # static unroll: all heads per grid step
            qh = qkv[:, h * dim_head:(h + 1) * dim_head] * scale        # (N, d)
            kh = qkv[:, inner + h * dim_head: inner + (h + 1) * dim_head]
            vh = qkv[:, 2 * inner + h * dim_head: 2 * inner + (h + 1) * dim_head]
            # q @ k^T without materializing a transpose: contract the last axes of both.
            s = lax.dot_general(qh, kh, (((1,), (1,)), ((), ())),
                                preferred_element_type=jnp.float32)     # (N, N)
            s = s + bias_ref[h]
            m = jnp.max(s, axis=-1, keepdims=True)
            p = jnp.exp(s - m)
            denom = jnp.sum(p, axis=-1, keepdims=True)
            attn = p * pl.reciprocal(denom, approx=True)                # EUP reciprocal, not VALU divide
            head_outs.append(jnp.dot(attn, vh, preferred_element_type=jnp.float32))   # (N, d)

        merged = jnp.concatenate(head_outs, axis=-1)                    # lane-dense (N, H*d) head merge
        attn_out = jnp.dot(merged, w_out_ref[...],
                           preferred_element_type=jnp.float32) + b_out_ref[...]
        x1 = x + attn_out                                               # residual 1

        # ---------------- feed-forward branch: PreNorm + MLP + residual --------------
        x1n = _layer_norm(x1, ln2_g_ref[...], ln2_b_ref[...])
        hdn = jnp.dot(x1n, w1_ref[...], preferred_element_type=jnp.float32) + b1_ref[...]
        hdn = _gelu_exact(hdn)
        ff = jnp.dot(hdn, w2_ref[...], preferred_element_type=jnp.float32) + b2_ref[...]
        o_ref[0] = x1 + ff                                              # residual 2

    return kernel


def _const_spec(arr):
    n = arr.ndim
    return pl.BlockSpec(arr.shape, lambda b, n=n: (0,) * n)


def trans_block_forward(x_seq, params, heads, dim_head, scale):
    """x_seq: (B, N, C) tokens-major.  Returns (B, N, C)."""
    B, N, C = x_seq.shape
    kernel = _make_block_kernel(heads, dim_head, scale)
    return pl.pallas_call(
        kernel,
        out_shape=jax.ShapeDtypeStruct((B, N, C), jnp.float32),
        grid=(B,),
        in_specs=[
            pl.BlockSpec((1, N, C), lambda b: (b, 0, 0)),
            _const_spec(params["ln1_g"]), _const_spec(params["ln1_b"]),
            _const_spec(params["w_qkv"]), _const_spec(params["bias"]),
            _const_spec(params["w_out"]), _const_spec(params["b_out"]),
            _const_spec(params["ln2_g"]), _const_spec(params["ln2_b"]),
            _const_spec(params["w1"]), _const_spec(params["b1"]),
            _const_spec(params["w2"]), _const_spec(params["b2"]),
        ],
        out_specs=pl.BlockSpec((1, N, C), lambda b: (b, 0, 0)),
        compiler_params=pltpu.CompilerParams(dimension_semantics=("parallel",)),
    )(x_seq,
      params["ln1_g"], params["ln1_b"],
      params["w_qkv"], params["bias"],
      params["w_out"], params["b_out"],
      params["ln2_g"], params["ln2_b"],
      params["w1"], params["b1"],
      params["w2"], params["b2"])


# ----------------------------------------------------------------------------- module

def compute_relative_index(image_size):
    """Exactly reproduces the relative_index buffer of the PyTorch Attention module."""
    idd, ih, iw = image_size
    coords = np.stack(np.meshgrid(np.arange(idd), np.arange(ih), np.arange(iw),
                                  indexing="ij"))           # (3, id, ih, iw)
    coords = coords.reshape(3, -1)                           # (3, N)
    rel = (coords[:, :, None] - coords[:, None, :]).astype(np.int64)   # (3, N, N)
    rel[0, :, :] += ih - 1 + (idd - 1)
    rel[1, :, :] += iw - 1 + (idd - 1)
    rel[0, :, :] *= 2 * ih - 1
    rel = rel.transpose(1, 2, 0)                             # (N, N, 3)
    return rel.sum(-1).reshape(-1).astype(np.int32)          # (N*N,)


class TransTransformerPallas:
    """upsample=False path of the PyTorch TransTransformer (Attention + FeedForward block)."""
    # TODO(synk): upsample=True path (ConvTranspose3d + AvgPool3d + conv_3x3_bn) not implemented.
    # TODO(synk): nn.Dropout is identity at p=0.0 / eval mode; not implemented.

    def __init__(self, inp, oup, image_size, heads=8, dim_head=32, key=None):
        self.inp, self.oup = inp, oup
        self.heads, self.dim_head = heads, dim_head
        self.scale = float(dim_head) ** (-0.5)
        self.inner = heads * dim_head
        self.image_size = image_size
        idd, ih, iw = image_size
        self.N = idd * ih * iw
        hidden = int(inp * 4)
        # Attention inside TransTransformer is Attention(oup, oup, ...)
        project_out = not (heads == 1 and dim_head == oup)

        key = jax.random.PRNGKey(0) if key is None else key
        ks = jax.random.split(key, 12)

        # relative bias: gather precomputed ONCE (parameter-only); kernel gets dense (H, N, N)
        table_rows = (2 * idd - 1) * (2 * ih - 1) * (2 * iw - 1)
        table = 0.02 * jax.random.normal(ks[0], (table_rows, heads), dtype=jnp.float32)
        rel_index = jnp.asarray(compute_relative_index(image_size))
        bias = table[rel_index].reshape(self.N, self.N, heads).transpose(2, 0, 1)   # (H, N, N)

        def rnd(k, shape, s=0.02):
            return s * jax.random.normal(k, shape, dtype=jnp.float32)

        if project_out:
            w_out = rnd(ks[2], (self.inner, oup))
            b_out = rnd(ks[3], (1, oup))
        else:   # nn.Identity(): inner == oup in that case
            w_out = jnp.eye(self.inner, oup, dtype=jnp.float32)
            b_out = jnp.zeros((1, oup), dtype=jnp.float32)

        self.params = {
            "bias":  bias,
            "w_qkv": rnd(ks[1], (oup, 3 * self.inner)),       # Linear(oup, 3*inner, bias=False), transposed
            "w_out": w_out,
            "b_out": b_out,
            "ln1_g": 1.0 + rnd(ks[4], (1, oup), 0.1),
            "ln1_b": rnd(ks[5], (1, oup), 0.1),
            "ln2_g": 1.0 + rnd(ks[6], (1, oup), 0.1),
            "ln2_b": rnd(ks[7], (1, oup), 0.1),
            "w1":    rnd(ks[8], (oup, hidden)),
            "b1":    rnd(ks[9], (1, hidden)),
            "w2":    rnd(ks[10], (hidden, oup)),
            "b2":    rnd(ks[11], (1, oup)),
        }

    # ---- forward: Pallas ----
    def __call__(self, x5d):
        B, C, idd, ih, iw = x5d.shape
        assert (idd, ih, iw) == tuple(self.image_size) and C == self.oup
        # 'b c id ih iw -> b (id ih iw) c'  (the module's Rearrange; cheap XLA glue)
        x_seq = x5d.reshape(B, C, self.N).transpose(0, 2, 1)
        out = trans_block_forward(x_seq, self.params, self.heads, self.dim_head, self.scale)
        # 'b (id ih iw) c -> b c id ih iw'
        return out.transpose(0, 2, 1).reshape(B, C, idd, ih, iw)

    # ---- pure-JAX reference (exact erf GELU, exact softmax) ----
    def reference(self, x5d):
        B, C, idd, ih, iw = x5d.shape
        H, d, N = self.heads, self.dim_head, self.N
        p = self.params
        x = x5d.reshape(B, C, N).transpose(0, 2, 1)

        def ln(z, g, b):
            mu = jnp.mean(z, axis=-1, keepdims=True)
            var = jnp.mean(jnp.square(z - mu), axis=-1, keepdims=True)
            return (z - mu) / jnp.sqrt(var + _LN_EPS) * g + b

        xn = ln(x, p["ln1_g"], p["ln1_b"])
        qkv = (xn @ p["w_qkv"]).reshape(B, N, 3, H, d)
        q = jnp.transpose(qkv[:, :, 0], (0, 2, 1, 3)) * self.scale
        k = jnp.transpose(qkv[:, :, 1], (0, 2, 1, 3))
        v = jnp.transpose(qkv[:, :, 2], (0, 2, 1, 3))
        attn = q @ jnp.swapaxes(k, -2, -1) + p["bias"][None]
        attn = jax.nn.softmax(attn, axis=-1)
        o = jnp.transpose(attn @ v, (0, 2, 1, 3)).reshape(B, N, H * d)
        o = o @ p["w_out"] + p["b_out"]
        x1 = x + o

        x1n = ln(x1, p["ln2_g"], p["ln2_b"])
        hdn = x1n @ p["w1"] + p["b1"]
        hdn = 0.5 * hdn * (1.0 + jax.scipy.special.erf(hdn * _SQRT_HALF))
        x2 = x1 + hdn @ p["w2"] + p["b2"]
        return x2.transpose(0, 2, 1).reshape(B, C, idd, ih, iw)


# ----------------------------------------------------------------------------- main

if __name__ == "__main__":
    B = 2
    inp = 32
    oup = 32
    image_size = (2, 4, 4)        # id, ih, iw  -> N = 32
    heads = 8
    dim_head = 32

    key = jax.random.PRNGKey(0)
    k_x, k_p = jax.random.split(key)
    x = jax.random.normal(k_x, (B, oup) + image_size, dtype=jnp.float32)

    block = TransTransformerPallas(inp, oup, image_size, heads=heads,
                                   dim_head=dim_head, key=k_p)

    out = jax.block_until_ready(block(x))
    ref = block.reference(x)

    assert out.shape == x.shape, out.shape
    # approx EUP reciprocal in softmax + A&S erf: ~1e-4-scale deviations at worst
    np.testing.assert_allclose(np.asarray(out), np.asarray(ref), rtol=1e-3, atol=1e-3)

    print("KERNEL_OK")
</pallas_src>

<mosaic_0001>
module attributes {stable_mosaic.version = 11 : i64} {
  func.func @kernel(%arg0: i32, %arg1: memref<1x32x32xf32, #tpu.memory_space<vmem>>, %arg2: memref<1x32xf32, #tpu.memory_space<vmem>>, %arg3: memref<1x32xf32, #tpu.memory_space<vmem>>, %arg4: memref<32x768xf32, #tpu.memory_space<vmem>>, %arg5: memref<8x32x32xf32, #tpu.memory_space<vmem>>, %arg6: memref<256x32xf32, #tpu.memory_space<vmem>>, %arg7: memref<1x32xf32, #tpu.memory_space<vmem>>, %arg8: memref<1x32xf32, #tpu.memory_space<vmem>>, %arg9: memref<1x32xf32, #tpu.memory_space<vmem>>, %arg10: memref<32x128xf32, #tpu.memory_space<vmem>>, %arg11: memref<1x128xf32, #tpu.memory_space<vmem>>, %arg12: memref<128x32xf32, #tpu.memory_space<vmem>>, %arg13: memref<1x32xf32, #tpu.memory_space<vmem>>, %arg14: memref<1x32x32xf32, #tpu.memory_space<vmem>>) attributes {dimension_semantics = [#tpu.dimension_semantics<parallel>], iteration_bounds = array<i64: 2>, scalar_prefetch = 0 : i64, scratch_operands = 0 : i64, tpu.core_type = #tpu.core_type<tc>, window_params = [{transform_indices = @transform_0, window_bounds = array<i64: 1, 32, 32>}, {pipeline_mode = #tpu.pipeline_mode<synchronous>, transform_indices = @transform_1, window_bounds = array<i64: 1, 32>}, {pipeline_mode = #tpu.pipeline_mode<synchronous>, transform_indices = @transform_2, window_bounds = array<i64: 1, 32>}, {pipeline_mode = #tpu.pipeline_mode<synchronous>, transform_indices = @transform_3, window_bounds = array<i64: 32, 768>}, {pipeline_mode = #tpu.pipeline_mode<synchronous>, transform_indices = @transform_4, window_bounds = array<i64: 8, 32, 32>}, {pipeline_mode = #tpu.pipeline_mode<synchronous>, transform_indices = @transform_5, window_bounds = array<i64: 256, 32>}, {pipeline_mode = #tpu.pipeline_mode<synchronous>, transform_indices = @transform_6, window_bounds = array<i64: 1, 32>}, {pipeline_mode = #tpu.pipeline_mode<synchronous>, transform_indices = @transform_7, window_bounds = array<i64: 1, 32>}, {pipeline_mode = #tpu.pipeline_mode<synchronous>, transform_indices = @transform_8, window_bounds = array<i64: 1, 32>}, {pipeline_mode = #tpu.pipeline_mode<synchronous>, transform_indices = @transform_9, window_bounds = array<i64: 32, 128>}, {pipeline_mode = #tpu.pipeline_mode<synchronous>, transform_indices = @transform_10, window_bounds = array<i64: 1, 128>}, {pipeline_mode = #tpu.pipeline_mode<synchronous>, transform_indices = @transform_11, window_bounds = array<i64: 128, 32>}, {pipeline_mode = #tpu.pipeline_mode<synchronous>, transform_indices = @transform_12, window_bounds = array<i64: 1, 32>}, {transform_indices = @transform_13, window_bounds = array<i64: 1, 32, 32>}]} {
    %c0 = arith.constant 0 : index
    %c0_0 = arith.constant 0 : index
    %c0_1 = arith.constant 0 : index
    %0 = vector.load %arg1[%c0, %c0_0, %c0_1] : memref<1x32x32xf32, #tpu.memory_space<vmem>>, vector<1x32x32xf32>
    %1 = vector.shape_cast %0 : vector<1x32x32xf32> to vector<32x32xf32>
    %c0_2 = arith.constant 0 : index
    %c0_3 = arith.constant 0 : index
    %2 = vector.load %arg2[%c0_2, %c0_3] : memref<1x32xf32, #tpu.memory_space<vmem>>, vector<1x32xf32>
    %c0_4 = arith.constant 0 : index
    %c0_5 = arith.constant 0 : index
    %3 = vector.load %arg3[%c0_4, %c0_5] : memref<1x32xf32, #tpu.memory_space<vmem>>, vector<1x32xf32>
    %cst = arith.constant dense<0.000000e+00> : vector<32xf32>
    %4 = vector.multi_reduction <add>, %1, %cst [1] : vector<32x32xf32> to vector<32xf32>
    %5 = vector.shape_cast %4 : vector<32xf32> to vector<32x1xf32>
    %cst_6 = arith.constant 3.200000e+01 : f32
    %6 = vector.broadcast %cst_6 : f32 to vector<32x1xf32>
    %7 = arith.divf %5, %6 : vector<32x1xf32>
    %8 = vector.broadcast %7 : vector<32x1xf32> to vector<32x32xf32>
    %9 = arith.subf %1, %8 : vector<32x32xf32>
    %10 = arith.mulf %9, %9 : vector<32x32xf32>
    %cst_7 = arith.constant dense<0.000000e+00> : vector<32xf32>
    %11 = vector.multi_reduction <add>, %10, %cst_7 [1] : vector<32x32xf32> to vector<32xf32>
    %12 = vector.shape_cast %11 : vector<32xf32> to vector<32x1xf32>
    %cst_8 = arith.constant 3.200000e+01 : f32
    %13 = vector.broadcast %cst_8 : f32 to vector<32x1xf32>
    %14 = arith.divf %12, %13 : vector<32x1xf32>
    %15 = vector.broadcast %7 : vector<32x1xf32> to vector<32x32xf32>
    %16 = arith.subf %1, %15 : vector<32x32xf32>
    %cst_9 = arith.constant 9.99999974E-6 : f32
    %17 = vector.broadcast %cst_9 : f32 to vector<32x1xf32>
    %18 = arith.addf %14, %17 : vector<32x1xf32>
    %19 = math.rsqrt %18 : vector<32x1xf32>
    %20 = vector.broadcast %19 : vector<32x1xf32> to vector<32x32xf32>
    %21 = arith.mulf %16, %20 : vector<32x32xf32>
    %22 = vector.broadcast %2 : vector<1x32xf32> to vector<32x32xf32>
    %23 = arith.mulf %21, %22 : vector<32x32xf32>
    %24 = vector.broadcast %3 : vector<1x32xf32> to vector<32x32xf32>
    %25 = arith.addf %23, %24 : vector<32x32xf32>
    %c0_10 = arith.constant 0 : index
    %c0_11 = arith.constant 0 : index
    %26 = vector.load %arg4[%c0_10, %c0_11] : memref<32x768xf32, #tpu.memory_space<vmem>>, vector<32x768xf32>
    %cst_12 = arith.constant dense<0.000000e+00> : vector<32x768xf32>
    %27 = tpu.matmul %25, %26, %cst_12 {dimension_numbers = #tpu.dot_dimension_numbers<[1], [0], [0], [1], [0, 0, 1, 1], [], []>} : vector<32x32xf32>, vector<32x768xf32>, vector<32x768xf32> -> vector<32x768xf32>
    %28 = vector.extract_strided_slice %27 {offsets = [0, 0], sizes = [32, 32], strides = [1, 1]} : vector<32x768xf32> to vector<32x32xf32>
    %cst_13 = arith.constant 0.176776692 : f32
    %29 = vector.broadcast %cst_13 : f32 to vector<32x32xf32>
    %30 = arith.mulf %28, %29 : vector<32x32xf32>
    %31 = vector.extract_strided_slice %27 {offsets = [0, 256], sizes = [32, 32], strides = [1, 1]} : vector<32x768xf32> to vector<32x32xf32>
    %32 = vector.extract_strided_slice %27 {offsets = [0, 512], sizes = [32, 32], strides = [1, 1]} : vector<32x768xf32> to vector<32x32xf32>
    %cst_14 = arith.constant dense<0.000000e+00> : vector<32x32xf32>
    %33 = tpu.matmul %30, %31, %cst_14 {dimension_numbers = #tpu.dot_dimension_numbers<[1], [1], [0], [0], [0, 0, 1, 0], [], []>} : vector<32x32xf32>, vector<32x32xf32>, vector<32x32xf32> -> vector<32x32xf32>
    %c0_15 = arith.constant 0 : index
    %c0_16 = arith.constant 0 : index
    %c0_17 = arith.constant 0 : index
    %34 = vector.load %arg5[%c0_15, %c0_16, %c0_17] : memref<8x32x32xf32, #tpu.memory_space<vmem>>, vector<1x32x32xf32>
    %35 = vector.shape_cast %34 : vector<1x32x32xf32> to vector<32x32xf32>
    %36 = arith.addf %33, %35 : vector<32x32xf32>
    %cst_18 = arith.constant dense<0xFF800000> : vector<32xf32>
    %37 = vector.multi_reduction <maximumf>, %36, %cst_18 [1] : vector<32x32xf32> to vector<32xf32>
    %38 = vector.shape_cast %37 : vector<32xf32> to vector<32x1xf32>
    %39 = vector.broadcast %38 : vector<32x1xf32> to vector<32x32xf32>
    %40 = arith.subf %36, %39 : vector<32x32xf32>
    %41 = math.exp %40 : vector<32x32xf32>
    %cst_19 = arith.constant dense<0.000000e+00> : vector<32xf32>
    %42 = vector.multi_reduction <add>, %41, %cst_19 [1] : vector<32x32xf32> to vector<32xf32>
    %43 = vector.shape_cast %42 : vector<32xf32> to vector<32x1xf32>
    %44 = tpu.reciprocal %43 {approx = true} : vector<32x1xf32> -> vector<32x1xf32>
    %45 = vector.broadcast %44 : vector<32x1xf32> to vector<32x32xf32>
    %46 = arith.mulf %41, %45 : vector<32x32xf32>
    %cst_20 = arith.constant dense<0.000000e+00> : vector<32x32xf32>
    %47 = tpu.matmul %46, %32, %cst_20 {dimension_numbers = #tpu.dot_dimension_numbers<[1], [0], [0], [1], [0, 0, 1, 1], [], []>} : vector<32x32xf32>, vector<32x32xf32>, vector<32x32xf32> -> vector<32x32xf32>
    %48 = vector.extract_strided_slice %27 {offsets = [0, 32], sizes = [32, 32], strides = [1, 1]} : vector<32x768xf32> to vector<32x32xf32>
    %cst_21 = arith.constant 0.176776692 : f32
    %49 = vector.broadcast %cst_21 : f32 to vector<32x32xf32>
    %50 = arith.mulf %48, %49 : vector<32x32xf32>
    %51 = vector.extract_strided_slice %27 {offsets = [0, 288], sizes = [32, 32], strides = [1, 1]} : vector<32x768xf32> to vector<32x32xf32>
    %52 = vector.extract_strided_slice %27 {offsets = [0, 544], sizes = [32, 32], strides = [1, 1]} : vector<32x768xf32> to vector<32x32xf32>
    %cst_22 = arith.constant dense<0.000000e+00> : vector<32x32xf32>
    %53 = tpu.matmul %50, %51, %cst_22 {dimension_numbers = #tpu.dot_dimension_numbers<[1], [1], [0], [0], [0, 0, 1, 0], [], []>} : vector<32x32xf32>, vector<32x32xf32>, vector<32x32xf32> -> vector<32x32xf32>
    %c1 = arith.constant 1 : index
    %c0_23 = arith.constant 0 : index
    %c0_24 = arith.constant 0 : index
    %54 = vector.load %arg5[%c1, %c0_23, %c0_24] : memref<8x32x32xf32, #tpu.memory_space<vmem>>, vector<1x32x32xf32>
    %55 = vector.shape_cast %54 : vector<1x32x32xf32> to vector<32x32xf32>
    %56 = arith.addf %53, %55 : vector<32x32xf32>
    %cst_25 = arith.constant dense<0xFF800000> : vector<32xf32>
    %57 = vector.multi_reduction <maximumf>, %56, %cst_25 [1] : vector<32x32xf32> to vector<32xf32>
    %58 = vector.shape_cast %57 : vector<32xf32> to vector<32x1xf32>
    %59 = vector.broadcast %58 : vector<32x1xf32> to vector<32x32xf32>
    %60 = arith.subf %56, %59 : vector<32x32xf32>
    %61 = math.exp %60 : vector<32x32xf32>
    %cst_26 = arith.constant dense<0.000000e+00> : vector<32xf32>
    %62 = vector.multi_reduction <add>, %61, %cst_26 [1] : vector<32x32xf32> to vector<32xf32>
    %63 = vector.shape_cast %62 : vector<32xf32> to vector<32x1xf32>
    %64 = tpu.reciprocal %63 {approx = true} : vector<32x1xf32> -> vector<32x1xf32>
    %65 = vector.broadcast %64 : vector<32x1xf32> to vector<32x32xf32>
    %66 = arith.mulf %61, %65 : vector<32x32xf32>
    %cst_27 = arith.constant dense<0.000000e+00> : vector<32x32xf32>
    %67 = tpu.matmul %66, %52, %cst_27 {dimension_numbers = #tpu.dot_dimension_numbers<[1], [0], [0], [1], [0, 0, 1, 1], [], []>} : vector<32x32xf32>, vector<32x32xf32>, vector<32x32xf32> -> vector<32x32xf32>
    %68 = vector.extract_strided_slice %27 {offsets = [0, 64], sizes = [32, 32], strides = [1, 1]} : vector<32x768xf32> to vector<32x32xf32>
    %cst_28 = arith.constant 0.176776692 : f32
    %69 = vector.broadcast %cst_28 : f32 to vector<32x32xf32>
    %70 = arith.mulf %68, %69 : vector<32x32xf32>
    %71 = vector.extract_strided_slice %27 {offsets = [0, 320], sizes = [32, 32], strides = [1, 1]} : vector<32x768xf32> to vector<32x32xf32>
    %72 = vector.extract_strided_slice %27 {offsets = [0, 576], sizes = [32, 32], strides = [1, 1]} : vector<32x768xf32> to vector<32x32xf32>
    %cst_29 = arith.constant dense<0.000000e+00> : vector<32x32xf32>
    %73 = tpu.matmul %70, %71, %cst_29 {dimension_numbers = #tpu.dot_dimension_numbers<[1], [1], [0], [0], [0, 0, 1, 0], [], []>} : vector<32x32xf32>, vector<32x32xf32>, vector<32x32xf32> -> vector<32x32xf32>
    %c2 = arith.constant 2 : index
    %c0_30 = arith.constant 0 : index
    %c0_31 = arith.constant 0 : index
    %74 = vector.load %arg5[%c2, %c0_30, %c0_31] : memref<8x32x32xf32, #tpu.memory_space<vmem>>, vector<1x32x32xf32>
    %75 = vector.shape_cast %74 : vector<1x32x32xf32> to vector<32x32xf32>
    %76 = arith.addf %73, %75 : vector<32x32xf32>
    %cst_32 = arith.constant dense<0xFF800000> : vector<32xf32>
    %77 = vector.multi_reduction <maximumf>, %76, %cst_32 [1] : vector<32x32xf32> to vector<32xf32>
    %78 = vector.shape_cast %77 : vector<32xf32> to vector<32x1xf32>
    %79 = vector.broadcast %78 : vector<32x1xf32> to vector<32x32xf32>
    %80 = arith.subf %76, %79 : vector<32x32xf32>
    %81 = math.exp %80 : vector<32x32xf32>
    %cst_33 = arith.constant dense<0.000000e+00> : vector<32xf32>
    %82 = vector.multi_reduction <add>, %81, %cst_33 [1] : vector<32x32xf32> to vector<32xf32>
    %83 = vector.shape_cast %82 : vector<32xf32> to vector<32x1xf32>
    %84 = tpu.reciprocal %83 {approx = true} : vector<32x1xf32> -> vector<32x1xf32>
    %85 = vector.broadcast %84 : vector<32x1xf32> to vector<32x32xf32>
    %86 = arith.mulf %81, %85 : vector<32x32xf32>
    %cst_34 = arith.constant dense<0.000000e+00> : vector<32x32xf32>
    %87 = tpu.matmul %86, %72, %cst_34 {dimension_numbers = #tpu.dot_dimension_numbers<[1], [0], [0], [1], [0, 0, 1, 1], [], []>} : vector<32x32xf32>, vector<32x32xf32>, vector<32x32xf32> -> vector<32x32xf32>
    %88 = vector.extract_strided_slice %27 {offsets = [0, 96], sizes = [32, 32], strides = [1, 1]} : vector<32x768xf32> to vector<32x32xf32>
    %cst_35 = arith.constant 0.176776692 : f32
    %89 = vector.broadcast %cst_35 : f32 to vector<32x32xf32>
    %90 = arith.mulf %88, %89 : vector<32x32xf32>
    %91 = vector.extract_strided_slice %27 {offsets = [0, 352], sizes = [32, 32], strides = [1, 1]} : vector<32x768xf32> to vector<32x32xf32>
    %92 = vector.extract_strided_slice %27 {offsets = [0, 608], sizes = [32, 32], strides = [1, 1]} : vector<32x768xf32> to vector<32x32xf32>
    %cst_36 = arith.constant dense<0.000000e+00> : vector<32x32xf32>
    %93 = tpu.matmul %90, %91, %cst_36 {dimension_numbers = #tpu.dot_dimension_numbers<[1], [1], [0], [0], [0, 0, 1, 0], [], []>} : vector<32x32xf32>, vector<32x32xf32>, vector<32x32xf32> -> vector<32x32xf32>
    %c3 = arith.constant 3 : index
    %c0_37 = arith.constant 0 : index
    %c0_38 = arith.constant 0 : index
    %94 = vector.load %arg5[%c3, %c0_37, %c0_38] : memref<8x32x32xf32, #tpu.memory_space<vmem>>, vector<1x32x32xf32>
    %95 = vector.shape_cast %94 : vector<1x32x32xf32> to vector<32x32xf32>
    %96 = arith.addf %93, %95 : vector<32x32xf32>
    %cst_39 = arith.constant dense<0xFF800000> : vector<32xf32>
    %97 = vector.multi_reduction <maximumf>, %96, %cst_39 [1] : vector<32x32xf32> to vector<32xf32>
    %98 = vector.shape_cast %97 : vector<32xf32> to vector<32x1xf32>
    %99 = vector.broadcast %98 : vector<32x1xf32> to vector<32x32xf32>
    %100 = arith.subf %96, %99 : vector<32x32xf32>
    %101 = math.exp %100 : vector<32x32xf32>
    %cst_40 = arith.constant dense<0.000000e+00> : vector<32xf32>
    %102 = vector.multi_reduction <add>, %101, %cst_40 [1] : vector<32x32xf32> to vector<32xf32>
    %103 = vector.shape_cast %102 : vector<32xf32> to vector<32x1xf32>
    %104 = tpu.reciprocal %103 {approx = true} : vector<32x1xf32> -> vector<32x1xf32>
    %105 = vector.broadcast %104 : vector<32x1xf32> to vector<32x32xf32>
    %106 = arith.mulf %101, %105 : vector<32x32xf32>
    %cst_41 = arith.constant dense<0.000000e+00> : vector<32x32xf32>
    %107 = tpu.matmul %106, %92, %cst_41 {dimension_numbers = #tpu.dot_dimension_numbers<[1], [0], [0], [1], [0, 0, 1, 1], [], []>} : vector<32x32xf32>, vector<32x32xf32>, vector<32x32xf32> -> vector<32x32xf32>
    %108 = vector.extract_strided_slice %27 {offsets = [0, 128], sizes = [32, 32], strides = [1, 1]} : vector<32x768xf32> to vector<32x32xf32>
    %cst_42 = arith.constant 0.176776692 : f32
    %109 = vector.broadcast %cst_42 : f32 to vector<32x32xf32>
    %110 = arith.mulf %108, %109 : vector<32x32xf32>
    %111 = vector.extract_strided_slice %27 {offsets = [0, 384], sizes = [32, 32], strides = [1, 1]} : vector<32x768xf32> to vector<32x32xf32>
    %112 = vector.extract_strided_slice %27 {offsets = [0, 640], sizes = [32, 32], strides = [1, 1]} : vector<32x768xf32> to vector<32x32xf32>
    %cst_43 = arith.constant dense<0.000000e+00> : vector<32x32xf32>
    %113 = tpu.matmul %110, %111, %cst_43 {dimension_numbers = #tpu.dot_dimension_numbers<[1], [1], [0], [0], [0, 0, 1, 0], [], []>} : vector<32x32xf32>, vector<32x32xf32>, vector<32x32xf32> -> vector<32x32xf32>
    %c4 = arith.constant 4 : index
    %c0_44 = arith.constant 0 : index
    %c0_45 = arith.constant 0 : index
    %114 = vector.load %arg5[%c4, %c0_44, %c0_45] : memref<8x32x32xf32, #tpu.memory_space<vmem>>, vector<1x32x32xf32>
    %115 = vector.shape_cast %114 : vector<1x32x32xf32> to vector<32x32xf32>
    %116 = arith.addf %113, %115 : vector<32x32xf32>
    %cst_46 = arith.constant dense<0xFF800000> : vector<32xf32>
    %117 = vector.multi_reduction <maximumf>, %116, %cst_46 [1] : vector<32x32xf32> to vector<32xf32>
    %118 = vector.shape_cast %117 : vector<32xf32> to vector<32x1xf32>
    %119 = vector.broadcast %118 : vector<32x1xf32> to vector<32x32xf32>
    %120 = arith.subf %116, %119 : vector<32x32xf32>
    %121 = math.exp %120 : vector<32x32xf32>
    %cst_47 = arith.constant dense<0.000000e+00> : vector<32xf32>
    %122 = vector.multi_reduction <add>, %121, %cst_47 [1] : vector<32x32xf32> to vector<32xf32>
    %123 = vector.shape_cast %122 : vector<32xf32> to vector<32x1xf32>
    %124 = tpu.reciprocal %123 {approx = true} : vector<32x1xf32> -> vector<32x1xf32>
    %125 = vector.broadcast %124 : vector<32x1xf32> to vector<32x32xf32>
    %126 = arith.mulf %121, %125 : vector<32x32xf32>
    %cst_48 = arith.constant dense<0.000000e+00> : vector<32x32xf32>
    %127 = tpu.matmul %126, %112, %cst_48 {dimension_numbers = #tpu.dot_dimension_numbers<[1], [0], [0], [1], [0, 0, 1, 1], [], []>} : vector<32x32xf32>, vector<32x32xf32>, vector<32x32xf32> -> vector<32x32xf32>
    %128 = vector.extract_strided_slice %27 {offsets = [0, 160], sizes = [32, 32], strides = [1, 1]} : vector<32x768xf32> to vector<32x32xf32>
    %cst_49 = arith.constant 0.176776692 : f32
    %129 = vector.broadcast %cst_49 : f32 to vector<32x32xf32>
    %130 = arith.mulf %128, %129 : vector<32x32xf32>
    %131 = vector.extract_strided_slice %27 {offsets = [0, 416], sizes = [32, 32], strides = [1, 1]} : vector<32x768xf32> to vector<32x32xf32>
    %132 = vector.extract_strided_slice %27 {offsets = [0, 672], sizes = [32, 32], strides = [1, 1]} : vector<32x768xf32> to vector<32x32xf32>
    %cst_50 = arith.constant dense<0.000000e+00> : vector<32x32xf32>
    %133 = tpu.matmul %130, %131, %cst_50 {dimension_numbers = #tpu.dot_dimension_numbers<[1], [1], [0], [0], [0, 0, 1, 0], [], []>} : vector<32x32xf32>, vector<32x32xf32>, vector<32x32xf32> -> vector<32x32xf32>
    %c5 = arith.constant 5 : index
    %c0_51 = arith.constant 0 : index
    %c0_52 = arith.constant 0 : index
    %134 = vector.load %arg5[%c5, %c0_51, %c0_52] : memref<8x32x32xf32, #tpu.memory_space<vmem>>, vector<1x32x32xf32>
    %135 = vector.shape_cast %134 : vector<1x32x32xf32> to vector<32x32xf32>
    %136 = arith.addf %133, %135 : vector<32x32xf32>
    %cst_53 = arith.constant dense<0xFF800000> : vector<32xf32>
    %137 = vector.multi_reduction <maximumf>, %136, %cst_53 [1] : vector<32x32xf32> to vector<32xf32>
    %138 = vector.shape_cast %137 : vector<32xf32> to vector<32x1xf32>
    %139 = vector.broadcast %138 : vector<32x1xf32> to vector<32x32xf32>
    %140 = arith.subf %136, %139 : vector<32x32xf32>
    %141 = math.exp %140 : vector<32x32xf32>
    %cst_54 = arith.constant dense<0.000000e+00> : vector<32xf32>
    %142 = vector.multi_reduction <add>, %141, %cst_54 [1] : vector<32x32xf32> to vector<32xf32>
    %143 = vector.shape_cast %142 : vector<32xf32> to vector<32x1xf32>
    %144 = tpu.reciprocal %143 {approx = true} : vector<32x1xf32> -> vector<32x1xf32>
    %145 = vector.broadcast %144 : vector<32x1xf32> to vector<32x32xf32>
    %146 = arith.mulf %141, %145 : vector<32x32xf32>
    %cst_55 = arith.constant dense<0.000000e+00> : vector<32x32xf32>
    %147 = tpu.matmul %146, %132, %cst_55 {dimension_numbers = #tpu.dot_dimension_numbers<[1], [0], [0], [1], [0, 0, 1, 1], [], []>} : vector<32x32xf32>, vector<32x32xf32>, vector<32x32xf32> -> vector<32x32xf32>
    %148 = vector.extract_strided_slice %27 {offsets = [0, 192], sizes = [32, 32], strides = [1, 1]} : vector<32x768xf32> to vector<32x32xf32>
    %cst_56 = arith.constant 0.176776692 : f32
    %149 = vector.broadcast %cst_56 : f32 to vector<32x32xf32>
    %150 = arith.mulf %148, %149 : vector<32x32xf32>
    %151 = vector.extract_strided_slice %27 {offsets = [0, 448], sizes = [32, 32], strides = [1, 1]} : vector<32x768xf32> to vector<32x32xf32>
    %152 = vector.extract_strided_slice %27 {offsets = [0, 704], sizes = [32, 32], strides = [1, 1]} : vector<32x768xf32> to vector<32x32xf32>
    %cst_57 = arith.constant dense<0.000000e+00> : vector<32x32xf32>
    %153 = tpu.matmul %150, %151, %cst_57 {dimension_numbers = #tpu.dot_dimension_numbers<[1], [1], [0], [0], [0, 0, 1, 0], [], []>} : vector<32x32xf32>, vector<32x32xf32>, vector<32x32xf32> -> vector<32x32xf32>
    %c6 = arith.constant 6 : index
    %c0_58 = arith.constant 0 : index
    %c0_59 = arith.constant 0 : index
    %154 = vector.load %arg5[%c6, %c0_58, %c0_59] : memref<8x32x32xf32, #tpu.memory_space<vmem>>, vector<1x32x32xf32>
    %155 = vector.shape_cast %154 : vector<1x32x32xf32> to vector<32x32xf32>
    %156 = arith.addf %153, %155 : vector<32x32xf32>
    %cst_60 = arith.constant dense<0xFF800000> : vector<32xf32>
    %157 = vector.multi_reduction <maximumf>, %156, %cst_60 [1] : vector<32x32xf32> to vector<32xf32>
    %158 = vector.shape_cast %157 : vector<32xf32> to vector<32x1xf32>
    %159 = vector.broadcast %158 : vector<32x1xf32> to vector<32x32xf32>
    %160 = arith.subf %156, %159 : vector<32x32xf32>
    %161 = math.exp %160 : vector<32x32xf32>
    %cst_61 = arith.constant dense<0.000000e+00> : vector<32xf32>
    %162 = vector.multi_reduction <add>, %161, %cst_61 [1] : vector<32x32xf32> to vector<32xf32>
    %163 = vector.shape_cast %162 : vector<32xf32> to vector<32x1xf32>
    %164 = tpu.reciprocal %163 {approx = true} : vector<32x1xf32> -> vector<32x1xf32>
    %165 = vector.broadcast %164 : vector<32x1xf32> to vector<32x32xf32>
    %166 = arith.mulf %161, %165 : vector<32x32xf32>
    %cst_62 = arith.constant dense<0.000000e+00> : vector<32x32xf32>
    %167 = tpu.matmul %166, %152, %cst_62 {dimension_numbers = #tpu.dot_dimension_numbers<[1], [0], [0], [1], [0, 0, 1, 1], [], []>} : vector<32x32xf32>, vector<32x32xf32>, vector<32x32xf32> -> vector<32x32xf32>
    %168 = vector.extract_strided_slice %27 {offsets = [0, 224], sizes = [32, 32], strides = [1, 1]} : vector<32x768xf32> to vector<32x32xf32>
    %cst_63 = arith.constant 0.176776692 : f32
    %169 = vector.broadcast %cst_63 : f32 to vector<32x32xf32>
    %170 = arith.mulf %168, %169 : vector<32x32xf32>
    %171 = vector.extract_strided_slice %27 {offsets = [0, 480], sizes = [32, 32], strides = [1, 1]} : vector<32x768xf32> to vector<32x32xf32>
    %172 = vector.extract_strided_slice %27 {offsets = [0, 736], sizes = [32, 32], strides = [1, 1]} : vector<32x768xf32> to vector<32x32xf32>
    %cst_64 = arith.constant dense<0.000000e+00> : vector<32x32xf32>
    %173 = tpu.matmul %170, %171, %cst_64 {dimension_numbers = #tpu.dot_dimension_numbers<[1], [1], [0], [0], [0, 0, 1, 0], [], []>} : vector<32x32xf32>, vector<32x32xf32>, vector<32x32xf32> -> vector<32x32xf32>
    %c7 = arith.constant 7 : index
    %c0_65 = arith.constant 0 : index
    %c0_66 = arith.constant 0 : index
    %174 = vector.load %arg5[%c7, %c0_65, %c0_66] : memref<8x32x32xf32, #tpu.memory_space<vmem>>, vector<1x32x32xf32>
    %175 = vector.shape_cast %174 : vector<1x32x32xf32> to vector<32x32xf32>
    %176 = arith.addf %173, %175 : vector<32x32xf32>
    %cst_67 = arith.constant dense<0xFF800000> : vector<32xf32>
    %177 = vector.multi_reduction <maximumf>, %176, %cst_67 [1] : vector<32x32xf32> to vector<32xf32>
    %178 = vector.shape_cast %177 : vector<32xf32> to vector<32x1xf32>
    %179 = vector.broadcast %178 : vector<32x1xf32> to vector<32x32xf32>
    %180 = arith.subf %176, %179 : vector<32x32xf32>
    %181 = math.exp %180 : vector<32x32xf32>
    %cst_68 = arith.constant dense<0.000000e+00> : vector<32xf32>
    %182 = vector.multi_reduction <add>, %181, %cst_68 [1] : vector<32x32xf32> to vector<32xf32>
    %183 = vector.shape_cast %182 : vector<32xf32> to vector<32x1xf32>
    %184 = tpu.reciprocal %183 {approx = true} : vector<32x1xf32> -> vector<32x1xf32>
    %185 = vector.broadcast %184 : vector<32x1xf32> to vector<32x32xf32>
    %186 = arith.mulf %181, %185 : vector<32x32xf32>
    %cst_69 = arith.constant dense<0.000000e+00> : vector<32x32xf32>
    %187 = tpu.matmul %186, %172, %cst_69 {dimension_numbers = #tpu.dot_dimension_numbers<[1], [0], [0], [1], [0, 0, 1, 1], [], []>} : vector<32x32xf32>, vector<32x32xf32>, vector<32x32xf32> -> vector<32x32xf32>
    %188 = tpu.concatenate %47, %67, %87, %107, %127, %147, %167, %187 in 1 : vector<32x32xf32>, vector<32x32xf32>, vector<32x32xf32>, vector<32x32xf32>, vector<32x32xf32>, vector<32x32xf32>, vector<32x32xf32>, vector<32x32xf32> -> vector<32x256xf32>
    %c0_70 = arith.constant 0 : index
    %c0_71 = arith.constant 0 : index
    %189 = vector.load %arg6[%c0_70, %c0_71] : memref<256x32xf32, #tpu.memory_space<vmem>>, vector<256x32xf32>
    %cst_72 = arith.constant dense<0.000000e+00> : vector<32x32xf32>
    %190 = tpu.matmul %188, %189, %cst_72 {dimension_numbers = #tpu.dot_dimension_numbers<[1], [0], [0], [1], [0, 0, 1, 1], [], []>} : vector<32x256xf32>, vector<256x32xf32>, vector<32x32xf32> -> vector<32x32xf32>
    %c0_73 = arith.constant 0 : index
    %c0_74 = arith.constant 0 : index
    %191 = vector.load %arg7[%c0_73, %c0_74] : memref<1x32xf32, #tpu.memory_space<vmem>>, vector<1x32xf32>
    %192 = vector.broadcast %191 : vector<1x32xf32> to vector<32x32xf32>
    %193 = arith.addf %190, %192 : vector<32x32xf32>
    %194 = arith.addf %1, %193 : vector<32x32xf32>
    %c0_75 = arith.constant 0 : index
    %c0_76 = arith.constant 0 : index
    %195 = vector.load %arg8[%c0_75, %c0_76] : memref<1x32xf32, #tpu.memory_space<vmem>>, vector<1x32xf32>
    %c0_77 = arith.constant 0 : index
    %c0_78 = arith.constant 0 : index
    %196 = vector.load %arg9[%c0_77, %c0_78] : memref<1x32xf32, #tpu.memory_space<vmem>>, vector<1x32xf32>
    %cst_79 = arith.constant dense<0.000000e+00> : vector<32xf32>
    %197 = vector.multi_reduction <add>, %194, %cst_79 [1] : vector<32x32xf32> to vector<32xf32>
    %198 = vector.shape_cast %197 : vector<32xf32> to vector<32x1xf32>
    %cst_80 = arith.constant 3.200000e+01 : f32
    %199 = vector.broadcast %cst_80 : f32 to vector<32x1xf32>
    %200 = arith.divf %198, %199 : vector<32x1xf32>
    %201 = vector.broadcast %200 : vector<32x1xf32> to vector<32x32xf32>
    %202 = arith.subf %194, %201 : vector<32x32xf32>
    %203 = arith.mulf %202, %202 : vector<32x32xf32>
    %cst_81 = arith.constant dense<0.000000e+00> : vector<32xf32>
    %204 = vector.multi_reduction <add>, %203, %cst_81 [1] : vector<32x32xf32> to vector<32xf32>
    %205 = vector.shape_cast %204 : vector<32xf32> to vector<32x1xf32>
    %cst_82 = arith.constant 3.200000e+01 : f32
    %206 = vector.broadcast %cst_82 : f32 to vector<32x1xf32>
    %207 = arith.divf %205, %206 : vector<32x1xf32>
    %208 = vector.broadcast %200 : vector<32x1xf32> to vector<32x32xf32>
    %209 = arith.subf %194, %208 : vector<32x32xf32>
    %cst_83 = arith.constant 9.99999974E-6 : f32
    %210 = vector.broadcast %cst_83 : f32 to vector<32x1xf32>
    %211 = arith.addf %207, %210 : vector<32x1xf32>
    %212 = math.rsqrt %211 : vector<32x1xf32>
    %213 = vector.broadcast %212 : vector<32x1xf32> to vector<32x32xf32>
    %214 = arith.mulf %209, %213 : vector<32x32xf32>
    %215 = vector.broadcast %195 : vector<1x32xf32> to vector<32x32xf32>
    %216 = arith.mulf %214, %215 : vector<32x32xf32>
    %217 = vector.broadcast %196 : vector<1x32xf32> to vector<32x32xf32>
    %218 = arith.addf %216, %217 : vector<32x32xf32>
    %c0_84 = arith.constant 0 : index
    %c0_85 = arith.constant 0 : index
    %219 = vector.load %arg10[%c0_84, %c0_85] : memref<32x128xf32, #tpu.memory_space<vmem>>, vector<32x128xf32>
    %cst_86 = arith.constant dense<0.000000e+00> : vector<32x128xf32>
    %220 = tpu.matmul %218, %219, %cst_86 {dimension_numbers = #tpu.dot_dimension_numbers<[1], [0], [0], [1], [0, 0, 1, 1], [], []>} : vector<32x32xf32>, vector<32x128xf32>, vector<32x128xf32> -> vector<32x128xf32>
    %c0_87 = arith.constant 0 : index
    %c0_88 = arith.constant 0 : index
    %221 = vector.load %arg11[%c0_87, %c0_88] : memref<1x128xf32, #tpu.memory_space<vmem>>, vector<1x128xf32>
    %222 = vector.broadcast %221 : vector<1x128xf32> to vector<32x128xf32>
    %223 = arith.addf %220, %222 : vector<32x128xf32>
    %cst_89 = arith.constant 5.000000e-01 : f32
    %224 = vector.broadcast %cst_89 : f32 to vector<32x128xf32>
    %225 = arith.mulf %224, %223 : vector<32x128xf32>
    %cst_90 = arith.constant 0.707106769 : f32
    %226 = vector.broadcast %cst_90 : f32 to vector<32x128xf32>
    %227 = arith.mulf %223, %226 : vector<32x128xf32>
    %cst_91 = arith.constant 0.000000e+00 : f32
    %228 = vector.broadcast %cst_91 : f32 to vector<32x128xf32>
    %229 = arith.cmpf oge, %227, %228 : vector<32x128xf32>
    %cst_92 = arith.constant 1.000000e+00 : f32
    %cst_93 = arith.constant -1.000000e+00 : f32
    %230 = vector.broadcast %cst_92 : f32 to vector<32x128xf32>
    %231 = vector.broadcast %cst_93 : f32 to vector<32x128xf32>
    %232 = arith.select %229, %230, %231 : vector<32x128xi1>, vector<32x128xf32>
    %233 = math.absf %227 : vector<32x128xf32>
    %cst_94 = arith.constant 0.327591091 : f32
    %234 = vector.broadcast %cst_94 : f32 to vector<32x128xf32>
    %235 = arith.mulf %234, %233 : vector<32x128xf32>
    %cst_95 = arith.constant 1.000000e+00 : f32
    %236 = vector.broadcast %cst_95 : f32 to vector<32x128xf32>
    %237 = arith.addf %236, %235 : vector<32x128xf32>
    %cst_96 = arith.constant 1.000000e+00 : f32
    %238 = vector.broadcast %cst_96 : f32 to vector<32x128xf32>
    %239 = arith.divf %238, %237 : vector<32x128xf32>
    %cst_97 = arith.constant 1.06140542 : f32
    %240 = vector.broadcast %cst_97 : f32 to vector<32x128xf32>
    %241 = arith.mulf %240, %239 : vector<32x128xf32>
    %cst_98 = arith.constant -1.45315206 : f32
    %242 = vector.broadcast %cst_98 : f32 to vector<32x128xf32>
    %243 = arith.addf %241, %242 : vector<32x128xf32>
    %244 = arith.mulf %243, %239 : vector<32x128xf32>
    %cst_99 = arith.constant 1.42141378 : f32
    %245 = vector.broadcast %cst_99 : f32 to vector<32x128xf32>
    %246 = arith.addf %244, %245 : vector<32x128xf32>
    %247 = arith.mulf %246, %239 : vector<32x128xf32>
    %cst_100 = arith.constant -0.284496725 : f32
    %248 = vector.broadcast %cst_100 : f32 to vector<32x128xf32>
    %249 = arith.addf %247, %248 : vector<32x128xf32>
    %250 = arith.mulf %249, %239 : vector<32x128xf32>
    %cst_101 = arith.constant 0.254829586 : f32
    %251 = vector.broadcast %cst_101 : f32 to vector<32x128xf32>
    %252 = arith.addf %250, %251 : vector<32x128xf32>
    %253 = arith.mulf %252, %239 : vector<32x128xf32>
    %cst_102 = arith.constant 0.000000e+00 : f32
    %254 = vector.broadcast %cst_102 : f32 to vector<32x128xf32>
    %255 = arith.subf %254, %233 : vector<32x128xf32>
    %256 = arith.mulf %255, %233 : vector<32x128xf32>
    %257 = math.exp %256 : vector<32x128xf32>
    %258 = arith.mulf %253, %257 : vector<32x128xf32>
    %cst_103 = arith.constant 1.000000e+00 : f32
    %259 = vector.broadcast %cst_103 : f32 to vector<32x128xf32>
    %260 = arith.subf %259, %258 : vector<32x128xf32>
    %261 = arith.mulf %232, %260 : vector<32x128xf32>
    %cst_104 = arith.constant 1.000000e+00 : f32
    %262 = vector.broadcast %cst_104 : f32 to vector<32x128xf32>
    %263 = arith.addf %262, %261 : vector<32x128xf32>
    %264 = arith.mulf %225, %263 : vector<32x128xf32>
    %c0_105 = arith.constant 0 : index
    %c0_106 = arith.constant 0 : index
    %265 = vector.load %arg12[%c0_105, %c0_106] : memref<128x32xf32, #tpu.memory_space<vmem>>, vector<128x32xf32>
    %cst_107 = arith.constant dense<0.000000e+00> : vector<32x32xf32>
    %266 = tpu.matmul %264, %265, %cst_107 {dimension_numbers = #tpu.dot_dimension_numbers<[1], [0], [0], [1], [0, 0, 1, 1], [], []>} : vector<32x128xf32>, vector<128x32xf32>, vector<32x32xf32> -> vector<32x32xf32>
    %c0_108 = arith.constant 0 : index
    %c0_109 = arith.constant 0 : index
    %267 = vector.load %arg13[%c0_108, %c0_109] : memref<1x32xf32, #tpu.memory_space<vmem>>, vector<1x32xf32>
    %268 = vector.broadcast %267 : vector<1x32xf32> to vector<32x32xf32>
    %269 = arith.addf %266, %268 : vector<32x32xf32>
    %270 = arith.addf %194, %269 : vector<32x32xf32>
    %c0_110 = arith.constant 0 : index
    %c0_111 = arith.constant 0 : index
    %c0_112 = arith.constant 0 : index
    %271 = vector.load %arg14[%c0_110, %c0_111, %c0_112] : memref<1x32x32xf32, #tpu.memory_space<vmem>>, vector<1x32x32xf32>
    %272 = vector.shape_cast %271 : vector<1x32x32xf32> to vector<32x32xf32>
    %273 = vector.shape_cast %270 : vector<32x32xf32> to vector<1x32x32xf32>
    tpu.vector_store %arg14[%c0_110, %c0_111, %c0_112], %273 {strides = array<i32>} : memref<1x32x32xf32, #tpu.memory_space<vmem>>, vector<1x32x32xf32>,
    return
  }
  func.func @transform_0(%arg0: i32) -> (i32, i32, i32) {
    %c0_i32 = arith.constant 0 : i32
    %c0_i32_0 = arith.constant 0 : i32
    %c0_i32_1 = arith.constant 0 : i32
    return %arg0, %c0_i32, %c0_i32_0 : i32, i32, i32
  }
  func.func @transform_1(%arg0: i32) -> (i32, i32) {
    %c0_i32 = arith.constant 0 : i32
    %c0_i32_0 = arith.constant 0 : i32
    %c0_i32_1 = arith.constant 0 : i32
    return %c0_i32, %c0_i32_0 : i32, i32
  }
  func.func @transform_2(%arg0: i32) -> (i32, i32) {
    %c0_i32 = arith.constant 0 : i32
    %c0_i32_0 = arith.constant 0 : i32
    %c0_i32_1 = arith.constant 0 : i32
    return %c0_i32, %c0_i32_0 : i32, i32
  }
  func.func @transform_3(%arg0: i32) -> (i32, i32) {
    %c0_i32 = arith.constant 0 : i32
    %c0_i32_0 = arith.constant 0 : i32
    %c0_i32_1 = arith.constant 0 : i32
    return %c0_i32, %c0_i32_0 : i32, i32
  }
  func.func @transform_4(%arg0: i32) -> (i32, i32, i32) {
    %c0_i32 = arith.constant 0 : i32
    %c0_i32_0 = arith.constant 0 : i32
    %c0_i32_1 = arith.constant 0 : i32
    %c0_i32_2 = arith.constant 0 : i32
    return %c0_i32, %c0_i32_0, %c0_i32_1 : i32, i32, i32
  }
  func.func @transform_5(%arg0: i32) -> (i32, i32) {
    %c0_i32 = arith.constant 0 : i32
    %c0_i32_0 = arith.constant 0 : i32
    %c0_i32_1 = arith.constant 0 : i32
    return %c0_i32, %c0_i32_0 : i32, i32
  }
  func.func @transform_6(%arg0: i32) -> (i32, i32) {
    %c0_i32 = arith.constant 0 : i32
    %c0_i32_0 = arith.constant 0 : i32
    %c0_i32_1 = arith.constant 0 : i32
    return %c0_i32, %c0_i32_0 : i32, i32
  }
  func.func @transform_7(%arg0: i32) -> (i32, i32) {
    %c0_i32 = arith.constant 0 : i32
    %c0_i32_0 = arith.constant 0 : i32
    %c0_i32_1 = arith.constant 0 : i32
    return %c0_i32, %c0_i32_0 : i32, i32
  }
  func.func @transform_8(%arg0: i32) -> (i32, i32) {
    %c0_i32 = arith.constant 0 : i32
    %c0_i32_0 = arith.constant 0 : i32
    %c0_i32_1 = arith.constant 0 : i32
    return %c0_i32, %c0_i32_0 : i32, i32
  }
  func.func @transform_9(%arg0: i32) -> (i32, i32) {
    %c0_i32 = arith.constant 0 : i32
    %c0_i32_0 = arith.constant 0 : i32
    %c0_i32_1 = arith.constant 0 : i32
    return %c0_i32, %c0_i32_0 : i32, i32
  }
  func.func @transform_10(%arg0: i32) -> (i32, i32) {
    %c0_i32 = arith.constant 0 : i32
    %c0_i32_0 = arith.constant 0 : i32
    %c0_i32_1 = arith.constant 0 : i32
    return %c0_i32, %c0_i32_0 : i32, i32
  }
  func.func @transform_11(%arg0: i32) -> (i32, i32) {
    %c0_i32 = arith.constant 0 : i32
    %c0_i32_0 = arith.constant 0 : i32
    %c0_i32_1 = arith.constant 0 : i32
    return %c0_i32, %c0_i32_0 : i32, i32
  }
  func.func @transform_12(%arg0: i32) -> (i32, i32) {
    %c0_i32 = arith.constant 0 : i32
    %c0_i32_0 = arith.constant 0 : i32
    %c0_i32_1 = arith.constant 0 : i32
    return %c0_i32, %c0_i32_0 : i32, i32
  }
  func.func @transform_13(%arg0: i32) -> (i32, i32, i32) {
    %c0_i32 = arith.constant 0 : i32
    %c0_i32_0 = arith.constant 0 : i32
    %c0_i32_1 = arith.constant 0 : i32
    return %arg0, %c0_i32, %c0_i32_0 : i32, i32, i32
  }
}

</mosaic_0001>

<llo_original>
// kernel: tpu_custom_call.1
$region0: #{tpu_custom_call.1}
  #allocation0 [shape = 'u32[]', space=smem, size = 0x4, offset = 0x4, fixed_abs, tag = 'smem constant byte address 0x4 - core index']
  #allocation1 [shape = 'u32[144,128]{1,0:T(1,128)}', space=vmem, size = 0x12000, scoped, tag = 'internal scratch']
  %s0 = inlined_call_operand.hbm [shape: f32[2,32,32], index: 0, kind: input, shape index: {}]
  %s1 = inlined_call_operand.vmem [shape: f32[1,32], index: 1, kind: input, shape index: {}]
  %s2 = inlined_call_operand.vmem [shape: f32[1,32], index: 2, kind: input, shape index: {}]
  %s3 = inlined_call_operand.vmem [shape: f32[32,768], index: 3, kind: input, shape index: {}]
  %s4 = inlined_call_operand.vmem [shape: f32[8,32,32], index: 4, kind: input, shape index: {}]
  %s5 = inlined_call_operand.vmem [shape: f32[256,32], index: 5, kind: input, shape index: {}]
  %s6 = inlined_call_operand.vmem [shape: f32[1,32], index: 6, kind: input, shape index: {}]
  %s7 = inlined_call_operand.vmem [shape: f32[1,32], index: 7, kind: input, shape index: {}]
  %s8 = inlined_call_operand.vmem [shape: f32[1,32], index: 8, kind: input, shape index: {}]
  %s9 = inlined_call_operand.vmem [shape: f32[32,128], index: 9, kind: input, shape index: {}]
  %s10 = inlined_call_operand.vmem [shape: f32[1,128], index: 10, kind: input, shape index: {}]
  %s11 = inlined_call_operand.vmem [shape: f32[128,32], index: 11, kind: input, shape index: {}]
  %s12 = inlined_call_operand.vmem [shape: f32[1,32], index: 12, kind: input, shape index: {}]
  %s13 = inlined_call_operand.hbm [shape: f32[2,32,32], index: 13, kind: output, shape index: {}]
  %s14 = sld [smem:[#allocation0]]
  $region89: #{tpu_custom_call.1} parent=0
    _
  %s16 = ssub.s32 1, %s14
  %s17 = scalar_select 0, %s16, %s14
  $region1: #{tpu_custom_call.1} parent=0
    #allocation2 [shape = 'u8[32768]{0}', space=vmem, size = 0x8000, scoped, tag = 'input window, operand 0']
    #allocation3 [shape = 's32[2]{0}', space=sflag, size = 0x8, scoped, tag = 'scoped memory for tpu_custom_call.1']
    #allocation4 [shape = 's32[2]{0}', space=sflag, size = 0x8, scoped, tag = 'scoped memory for tpu_custom_call.1']
    #allocation5 [shape = 'u8[32768]{0}', space=vmem, size = 0x8000, scoped, tag = 'output window, operand 0']
    %18 = vsyncpa [#allocation3], 0
    %s19 = scalar_lea.sflag [#allocation3], 1
    %20 = vsyncpa %s19, 0
    %21 = vsyncpa [#allocation4], 0
    %s22 = scalar_lea.sflag [#allocation4], 1
    %23 = vsyncpa %s22, 0
    loop: start=0, step=1, limit=4
    $region2: #{tpu_custom_call.1} parent=1 // loop_pre_header
      _
    $region3: #{tpu_custom_call.1} parent=1 // loop_header
      %s25 = sphi 0, %s29
      %p26 = scmp.ge.s32.totalorder %s25, 4
      %s35 = sphi 0, %s37
      %s38 = sphi 0, %s35
      %s39 = sphi 0, %s38
      %s55 = sphi 0, %s39
      %s59 = sphi 0, %s59
      %s61 = sphi 0, %s59
      %s62 = sphi 0, %s61
      %s76 = sphi 0, %s62
      %s80 = sphi 0, %s80
      %s82 = sphi 0, %s80
      %s83 = sphi 0, %s82
      %s97 = sphi 0, %s83
      %s101 = sphi 0, %s101
      %s103 = sphi 0, %s101
      %s104 = sphi 0, %s103
      %s118 = sphi 0, %s104
      %s122 = sphi 0, %s122
      %s124 = sphi 0, %s122
      %s125 = sphi 0, %s124
      %s139 = sphi 0, %s125
      %s143 = sphi 0, %s143
      %s145 = sphi 0, %s143
      %s146 = sphi 0, %s145
      %s160 = sphi 0, %s146
      %s164 = sphi 0, %s164
      %s166 = sphi 0, %s164
      %s167 = sphi 0, %s166
      %s181 = sphi 0, %s167
      %s185 = sphi 0, %s185
      %s187 = sphi 0, %s185
      %s188 = sphi 0, %s187
      %s202 = sphi 0, %s188
      %s206 = sphi 0, %s206
      %s208 = sphi 0, %s206
      %s209 = sphi 0, %s208
      %s223 = sphi 0, %s209
      %s227 = sphi 0, %s227
      %s229 = sphi 0, %s227
      %s230 = sphi 0, %s229
      %s244 = sphi 0, %s230
      %s248 = sphi 0, %s248
      %s250 = sphi 0, %s248
      %s251 = sphi 0, %s250
      %s265 = sphi 0, %s251
      %s269 = sphi 0, %s269
      %s271 = sphi 0, %s269
      %s272 = sphi 0, %s271
      %s286 = sphi 0, %s272
      %s290 = sphi 0, %s290
      %s292 = sphi 0, %s290
      %s293 = sphi 0, %s292
      %s307 = sphi 0, %s293
      %s313 = sphi 0, %s315
      %s316 = sphi 0, %s313
      %s317 = sphi 0, %s316
      %s333 = sphi 0, %s317
    $region4: #{tpu_custom_call.1} parent=1 // loop_header_branch
      %28 = sbr.rel (%p26) target = $region8
    $region5: #{tpu_custom_call.1} parent=1 // loop_body
      %s30 = ssub.s32 %s25, 1
      %s31 = ssub.s32 %s25, 2
      %s32 = sadd.s32 %s25, 1
      %s33 = ssub.s32 %s25, %s32
      %p34 = scmp.eq.s32.totalorder %s33, 0
      %s36 = sadd.s32 %s35, 1
      %s37 = scalar_select %p34, %s35, %s36
      %p40 = pneg %p34
      %p41 = scmp.eq.s32.totalorder %s25, 1
      %p42 = por %p40, %p41
      %p43 = scmp.ne.s32.totalorder %s35, %s38
      %p44 = scmp.eq.s32.totalorder %s25, 0
      %p45 = por %p43, %p44
      %p46 = scmp.ne.s32.totalorder %s35, %s38
      %p47 = scmp.eq.s32.totalorder %s30, 1
      %p48 = por %p46, %p47
      %p49 = scmp.ne.s32.totalorder %s38, %s39
      %p50 = scmp.eq.s32.totalorder %s30, 0
      %p51 = por %p49, %p50
      %p52 = scmp.ne.s32.totalorder %s38, %s39
      %p53 = scmp.eq.s32.totalorder %s31, 1
      %p54 = por %p52, %p53
      %p56 = scmp.ne.s32.totalorder %s39, %s55
      %p57 = scmp.eq.s32.totalorder %s31, 0
      %p58 = por %p56, %p57
      %s60 = sadd.s32 %s59, 1
      %p63 = scmp.eq.s32.totalorder %s25, 1
      %p64 = scmp.ne.s32.totalorder %s59, %s61
      %p65 = scmp.eq.s32.totalorder %s25, 0
      %p66 = por %p64, %p65
      %p67 = scmp.ne.s32.totalorder %s59, %s61
      %p68 = scmp.eq.s32.totalorder %s30, 1
      %p69 = por %p67, %p68
      %p70 = scmp.ne.s32.totalorder %s61, %s62
      %p71 = scmp.eq.s32.totalorder %s30, 0
      %p72 = por %p70, %p71
      %p73 = scmp.ne.s32.totalorder %s61, %s62
      %p74 = scmp.eq.s32.totalorder %s31, 1
      %p75 = por %p73, %p74
      %p77 = scmp.ne.s32.totalorder %s62, %s76
      %p78 = scmp.eq.s32.totalorder %s31, 0
      %p79 = por %p77, %p78
      %s81 = sadd.s32 %s80, 1
      %p84 = scmp.eq.s32.totalorder %s25, 1
      %p85 = scmp.ne.s32.totalorder %s80, %s82
      %p86 = scmp.eq.s32.totalorder %s25, 0
      %p87 = por %p85, %p86
      %p88 = scmp.ne.s32.totalorder %s80, %s82
      %p89 = scmp.eq.s32.totalorder %s30, 1
      %p90 = por %p88, %p89
      %p91 = scmp.ne.s32.totalorder %s82, %s83
      %p92 = scmp.eq.s32.totalorder %s30, 0
      %p93 = por %p91, %p92
      %p94 = scmp.ne.s32.totalorder %s82, %s83
      %p95 = scmp.eq.s32.totalorder %s31, 1
      %p96 = por %p94, %p95
      %p98 = scmp.ne.s32.totalorder %s83, %s97
      %p99 = scmp.eq.s32.totalorder %s31, 0
      %p100 = por %p98, %p99
      %s102 = sadd.s32 %s101, 1
      %p105 = scmp.eq.s32.totalorder %s25, 1
      %p106 = scmp.ne.s32.totalorder %s101, %s103
      %p107 = scmp.eq.s32.totalorder %s25, 0
      %p108 = por %p106, %p107
      %p109 = scmp.ne.s32.totalorder %s101, %s103
      %p110 = scmp.eq.s32.totalorder %s30, 1
      %p111 = por %p109, %p110
      %p112 = scmp.ne.s32.totalorder %s103, %s104
      %p113 = scmp.eq.s32.totalorder %s30, 0
      %p114 = por %p112, %p113
      %p115 = scmp.ne.s32.totalorder %s103, %s104
      %p116 = scmp.eq.s32.totalorder %s31, 1
      %p117 = por %p115, %p116
      %p119 = scmp.ne.s32.totalorder %s104, %s118
      %p120 = scmp.eq.s32.totalorder %s31, 0
      %p121 = por %p119, %p120
      %s123 = sadd.s32 %s122, 1
      %p126 = scmp.eq.s32.totalorder %s25, 1
      %p127 = scmp.ne.s32.totalorder %s122, %s124
      %p128 = scmp.eq.s32.totalorder %s25, 0
      %p129 = por %p127, %p128
      %p130 = scmp.ne.s32.totalorder %s122, %s124
      %p131 = scmp.eq.s32.totalorder %s30, 1
      %p132 = por %p130, %p131
      %p133 = scmp.ne.s32.totalorder %s124, %s125
      %p134 = scmp.eq.s32.totalorder %s30, 0
      %p135 = por %p133, %p134
      %p136 = scmp.ne.s32.totalorder %s124, %s125
      %p137 = scmp.eq.s32.totalorder %s31, 1
      %p138 = por %p136, %p137
      %p140 = scmp.ne.s32.totalorder %s125, %s139
      %p141 = scmp.eq.s32.totalorder %s31, 0
      %p142 = por %p140, %p141
      %s144 = sadd.s32 %s143, 1
      %p147 = scmp.eq.s32.totalorder %s25, 1
      %p148 = scmp.ne.s32.totalorder %s143, %s145
      %p149 = scmp.eq.s32.totalorder %s25, 0
      %p150 = por %p148, %p149
      %p151 = scmp.ne.s32.totalorder %s143, %s145
      %p152 = scmp.eq.s32.totalorder %s30, 1
      %p153 = por %p151, %p152
      %p154 = scmp.ne.s32.totalorder %s145, %s146
      %p155 = scmp.eq.s32.totalorder %s30, 0
      %p156 = por %p154, %p155
      %p157 = scmp.ne.s32.totalorder %s145, %s146
      %p158 = scmp.eq.s32.totalorder %s31, 1
      %p159 = por %p157, %p158
      %p161 = scmp.ne.s32.totalorder %s146, %s160
      %p162 = scmp.eq.s32.totalorder %s31, 0
      %p163 = por %p161, %p162
      %s165 = sadd.s32 %s164, 1
      %p168 = scmp.eq.s32.totalorder %s25, 1
      %p169 = scmp.ne.s32.totalorder %s164, %s166
      %p170 = scmp.eq.s32.totalorder %s25, 0
      %p171 = por %p169, %p170
      %p172 = scmp.ne.s32.totalorder %s164, %s166
      %p173 = scmp.eq.s32.totalorder %s30, 1
      %p174 = por %p172, %p173
      %p175 = scmp.ne.s32.totalorder %s166, %s167
      %p176 = scmp.eq.s32.totalorder %s30, 0
      %p177 = por %p175, %p176
      %p178 = scmp.ne.s32.totalorder %s166, %s167
      %p179 = scmp.eq.s32.totalorder %s31, 1
      %p180 = por %p178, %p179
      %p182 = scmp.ne.s32.totalorder %s167, %s181
      %p183 = scmp.eq.s32.totalorder %s31, 0
      %p184 = por %p182, %p183
      %s186 = sadd.s32 %s185, 1
      %p189 = scmp.eq.s32.totalorder %s25, 1
      %p190 = scmp.ne.s32.totalorder %s185, %s187
      %p191 = scmp.eq.s32.totalorder %s25, 0
      %p192 = por %p190, %p191
      %p193 = scmp.ne.s32.totalorder %s185, %s187
      %p194 = scmp.eq.s32.totalorder %s30, 1
      %p195 = por %p193, %p194
      %p196 = scmp.ne.s32.totalorder %s187, %s188
      %p197 = scmp.eq.s32.totalorder %s30, 0
      %p198 = por %p196, %p197
      %p199 = scmp.ne.s32.totalorder %s187, %s188
      %p200 = scmp.eq.s32.totalorder %s31, 1
      %p201 = por %p199, %p200
      %p203 = scmp.ne.s32.totalorder %s188, %s202
      %p204 = scmp.eq.s32.totalorder %s31, 0
      %p205 = por %p203, %p204
      %s207 = sadd.s32 %s206, 1
      %p210 = scmp.eq.s32.totalorder %s25, 1
      %p211 = scmp.ne.s32.totalorder %s206, %s208
      %p212 = scmp.eq.s32.totalorder %s25, 0
      %p213 = por %p211, %p212
      %p214 = scmp.ne.s32.totalorder %s206, %s208
      %p215 = scmp.eq.s32.totalorder %s30, 1
      %p216 = por %p214, %p215
      %p217 = scmp.ne.s32.totalorder %s208, %s209
      %p218 = scmp.eq.s32.totalorder %s30, 0
      %p219 = por %p217, %p218
      %p220 = scmp.ne.s32.totalorder %s208, %s209
      %p221 = scmp.eq.s32.totalorder %s31, 1
      %p222 = por %p220, %p221
      %p224 = scmp.ne.s32.totalorder %s209, %s223
      %p225 = scmp.eq.s32.totalorder %s31, 0
      %p226 = por %p224, %p225
      %s228 = sadd.s32 %s227, 1
      %p231 = scmp.eq.s32.totalorder %s25, 1
      %p232 = scmp.ne.s32.totalorder %s227, %s229
      %p233 = scmp.eq.s32.totalorder %s25, 0
      %p234 = por %p232, %p233
      %p235 = scmp.ne.s32.totalorder %s227, %s229
      %p236 = scmp.eq.s32.totalorder %s30, 1
      %p237 = por %p235, %p236
      %p238 = scmp.ne.s32.totalorder %s229, %s230
      %p239 = scmp.eq.s32.totalorder %s30, 0
      %p240 = por %p238, %p239
      %p241 = scmp.ne.s32.totalorder %s229, %s230
      %p242 = scmp.eq.s32.totalorder %s31, 1
      %p243 = por %p241, %p242
      %p245 = scmp.ne.s32.totalorder %s230, %s244
      %p246 = scmp.eq.s32.totalorder %s31, 0
      %p247 = por %p245, %p246
      %s249 = sadd.s32 %s248, 1
      %p252 = scmp.eq.s32.totalorder %s25, 1
      %p253 = scmp.ne.s32.totalorder %s248, %s250
      %p254 = scmp.eq.s32.totalorder %s25, 0
      %p255 = por %p253, %p254
      %p256 = scmp.ne.s32.totalorder %s248, %s250
      %p257 = scmp.eq.s32.totalorder %s30, 1
      %p258 = por %p256, %p257
      %p259 = scmp.ne.s32.totalorder %s250, %s251
      %p260 = scmp.eq.s32.totalorder %s30, 0
      %p261 = por %p259, %p260
      %p262 = scmp.ne.s32.totalorder %s250, %s251
      %p263 = scmp.eq.s32.totalorder %s31, 1
      %p264 = por %p262, %p263
      %p266 = scmp.ne.s32.totalorder %s251, %s265
      %p267 = scmp.eq.s32.totalorder %s31, 0
      %p268 = por %p266, %p267
      %s270 = sadd.s32 %s269, 1
      %p273 = scmp.eq.s32.totalorder %s25, 1
      %p274 = scmp.ne.s32.totalorder %s269, %s271
      %p275 = scmp.eq.s32.totalorder %s25, 0
      %p276 = por %p274, %p275
      %p277 = scmp.ne.s32.totalorder %s269, %s271
      %p278 = scmp.eq.s32.totalorder %s30, 1
      %p279 = por %p277, %p278
      %p280 = scmp.ne.s32.totalorder %s271, %s272
      %p281 = scmp.eq.s32.totalorder %s30, 0
      %p282 = por %p280, %p281
      %p283 = scmp.ne.s32.totalorder %s271, %s272
      %p284 = scmp.eq.s32.totalorder %s31, 1
      %p285 = por %p283, %p284
      %p287 = scmp.ne.s32.totalorder %s272, %s286
      %p288 = scmp.eq.s32.totalorder %s31, 0
      %p289 = por %p287, %p288
      %s291 = sadd.s32 %s290, 1
      %p294 = scmp.eq.s32.totalorder %s25, 1
      %p295 = scmp.ne.s32.totalorder %s290, %s292
      %p296 = scmp.eq.s32.totalorder %s25, 0
      %p297 = por %p295, %p296
      %p298 = scmp.ne.s32.totalorder %s290, %s292
      %p299 = scmp.eq.s32.totalorder %s30, 1
      %p300 = por %p298, %p299
      %p301 = scmp.ne.s32.totalorder %s292, %s293
      %p302 = scmp.eq.s32.totalorder %s30, 0
      %p303 = por %p301, %p302
      %p304 = scmp.ne.s32.totalorder %s292, %s293
      %p305 = scmp.eq.s32.totalorder %s31, 1
      %p306 = por %p304, %p305
      %p308 = scmp.ne.s32.totalorder %s293, %s307
      %p309 = scmp.eq.s32.totalorder %s31, 0
      %p310 = por %p308, %p309
      %s311 = ssub.s32 %s25, %s32
      %p312 = scmp.eq.s32.totalorder %s311, 0
      %s314 = sadd.s32 %s313, 1
      %s315 = scalar_select %p312, %s313, %s314
      %p318 = pneg %p312
      %p319 = scmp.eq.s32.totalorder %s25, 1
      %p320 = por %p318, %p319
      %p321 = scmp.ne.s32.totalorder %s313, %s316
      %p322 = scmp.eq.s32.totalorder %s25, 0
      %p323 = por %p321, %p322
      %p324 = scmp.ne.s32.totalorder %s313, %s316
      %p325 = scmp.eq.s32.totalorder %s30, 1
      %p326 = por %p324, %p325
      %p327 = scmp.ne.s32.totalorder %s316, %s317
      %p328 = scmp.eq.s32.totalorder %s30, 0
      %p329 = por %p327, %p328
      %p330 = scmp.ne.s32.totalorder %s316, %s317
      %p331 = scmp.eq.s32.totalorder %s31, 1
      %p332 = por %p330, %p331
      %p334 = scmp.ne.s32.totalorder %s317, %s333
      %p335 = scmp.eq.s32.totalorder %s31, 0
      %p336 = por %p334, %p335
      %p337 = scmp.le.s32.totalorder 1, %s25
      %p338 = scmp.lt.s32.totalorder %s25, 3
      %p339 = pnand %p337, %p338
      %p340 = pneg %p339
      // Predicated region
      $region9: #{tpu_custom_call.1} parent=5 // pred_check
        _
      $region10: #{tpu_custom_call.1} parent=5 // pred_check_branch
        %342 = sbr.rel (%p339) target = $region12
      $region11: #{tpu_custom_call.1} parent=5 // pred_region
        %s343 = ssub.s32 %s25, 1
        // Predicated region
        $region13: #{tpu_custom_call.1} parent=11 // pred_check
          %p344 = pneg %p72
        $region14: #{tpu_custom_call.1} parent=11 // pred_check_branch
          %346 = sbr.rel (%p344) target = $region16
        $region15: #{tpu_custom_call.1} parent=11 // pred_region
          _
        $region16: #{tpu_custom_call.1} parent=11 // pred_fallthru
          _
        // Predicated region
        $region17: #{tpu_custom_call.1} parent=11 // pred_check
          %p347 = pneg %p93
        $region18: #{tpu_custom_call.1} parent=11 // pred_check_branch
          %349 = sbr.rel (%p347) target = $region20
        $region19: #{tpu_custom_call.1} parent=11 // pred_region
          _
        $region20: #{tpu_custom_call.1} parent=11 // pred_fallthru
          _
        // Predicated region
        $region21: #{tpu_custom_call.1} parent=11 // pred_check
          %p350 = pneg %p114
        $region22: #{tpu_custom_call.1} parent=11 // pred_check_branch
          %352 = sbr.rel (%p350) target = $region24
        $region23: #{tpu_custom_call.1} parent=11 // pred_region
          _
        $region24: #{tpu_custom_call.1} parent=11 // pred_fallthru
          _
        // Predicated region
        $region25: #{tpu_custom_call.1} parent=11 // pred_check
          %p353 = pneg %p135
        $region26: #{tpu_custom_call.1} parent=11 // pred_check_branch
          %355 = sbr.rel (%p353) target = $region28
        $region27: #{tpu_custom_call.1} parent=11 // pred_region
          _
        $region28: #{tpu_custom_call.1} parent=11 // pred_fallthru
          _
        // Predicated region
        $region29: #{tpu_custom_call.1} parent=11 // pred_check
          %p356 = pneg %p156
        $region30: #{tpu_custom_call.1} parent=11 // pred_check_branch
          %358 = sbr.rel (%p356) target = $region32
        $region31: #{tpu_custom_call.1} parent=11 // pred_region
          _
        $region32: #{tpu_custom_call.1} parent=11 // pred_fallthru
          _
        // Predicated region
        $region33: #{tpu_custom_call.1} parent=11 // pred_check
          %p359 = pneg %p177
        $region34: #{tpu_custom_call.1} parent=11 // pred_check_branch
          %361 = sbr.rel (%p359) target = $region36
        $region35: #{tpu_custom_call.1} parent=11 // pred_region
          _
        $region36: #{tpu_custom_call.1} parent=11 // pred_fallthru
          _
        // Predicated region
        $region37: #{tpu_custom_call.1} parent=11 // pred_check
          %p362 = pneg %p198
        $region38: #{tpu_custom_call.1} parent=11 // pred_check_branch
          %364 = sbr.rel (%p362) target = $region40
        $region39: #{tpu_custom_call.1} parent=11 // pred_region
          _
        $region40: #{tpu_custom_call.1} parent=11 // pred_fallthru
          _
        // Predicated region
        $region41: #{tpu_custom_call.1} parent=11 // pred_check
          %p365 = pneg %p219
        $region42: #{tpu_custom_call.1} parent=11 // pred_check_branch
          %367 = sbr.rel (%p365) target = $region44
        $region43: #{tpu_custom_call.1} parent=11 // pred_region
          _
        $region44: #{tpu_custom_call.1} parent=11 // pred_fallthru
          _
        // Predicated region
        $region45: #{tpu_custom_call.1} parent=11 // pred_check
          %p368 = pneg %p240
        $region46: #{tpu_custom_call.1} parent=11 // pred_check_branch
          %370 = sbr.rel (%p368) target = $region48
        $region47: #{tpu_custom_call.1} parent=11 // pred_region
          _
        $region48: #{tpu_custom_call.1} parent=11 // pred_fallthru
          _
        // Predicated region
        $region49: #{tpu_custom_call.1} parent=11 // pred_check
          %p371 = pneg %p261
        $region50: #{tpu_custom_call.1} parent=11 // pred_check_branch
          %373 = sbr.rel (%p371) target = $region52
        $region51: #{tpu_custom_call.1} parent=11 // pred_region
          _
        $region52: #{tpu_custom_call.1} parent=11 // pred_fallthru
          _
        // Predicated region
        $region53: #{tpu_custom_call.1} parent=11 // pred_check
          %p374 = pneg %p282
        $region54: #{tpu_custom_call.1} parent=11 // pred_check_branch
          %376 = sbr.rel (%p374) target = $region56
        $region55: #{tpu_custom_call.1} parent=11 // pred_region
          _
        $region56: #{tpu_custom_call.1} parent=11 // pred_fallthru
          _
        // Predicated region
        $region57: #{tpu_custom_call.1} parent=11 // pred_check
          %p377 = pneg %p303
        $region58: #{tpu_custom_call.1} parent=11 // pred_check_branch
          %379 = sbr.rel (%p377) target = $region60
        $region59: #{tpu_custom_call.1} parent=11 // pred_region
          _
        $region60: #{tpu_custom_call.1} parent=11 // pred_fallthru
          _
      $region12: #{tpu_custom_call.1} parent=5 // pred_fallthru
        _
      %p380 = scmp.lt.s32.totalorder %s25, 2
      // Predicated region
      $region61: #{tpu_custom_call.1} parent=5 // pred_check
        %p381 = pneg %p380
      $region62: #{tpu_custom_call.1} parent=5 // pred_check_branch
        %383 = sbr.rel (%p381) target = $region64
      $region63: #{tpu_custom_call.1} parent=5 // pred_region
        // Predicated region
        $region65: #{tpu_custom_call.1} parent=63 // pred_check
          %p384 = pneg %p45
        $region66: #{tpu_custom_call.1} parent=63 // pred_check_branch
          %386 = sbr.rel (%p384) target = $region68
        $region67: #{tpu_custom_call.1} parent=63 // pred_region
          %s387 = sand.u32 %s35, 1
          %s388 = scalar_lea.sflag [#allocation3], %s387
          %s389 = sand.u32 %s35, 1
          %s390 = smul.addr %s389, 32
          %s391 = scalar_lea.vmem [#allocation2], %s390
          %s393 = ssub.s32 512, 512
          %394 = vsyncadd %s388, %s393
          %s395 = smul.addr %s25, 4
          %s396 = smul.addr %s395, 128
          %s397 = scalar_lea.hbm %s0, %s396
          %s398 = sshll.u32 %s391, 4
          %s399 = int_to_ptr.vmem [resolvable:$true] %s398
          %404 = dma.hbm_to_vmem [thread:$0]  %s397, 512, %s399, %s388, 128, 128, 8
        $region68: #{tpu_custom_call.1} parent=63 // pred_fallthru
          _
      $region64: #{tpu_custom_call.1} parent=5 // pred_fallthru
        _
      %p405 = scmp.le.s32.totalorder 1, %s25
      %p406 = scmp.lt.s32.totalorder %s25, 3
      %p407 = pnand %p405, %p406
      %p408 = pneg %p407
      // Predicated region
      $region69: #{tpu_custom_call.1} parent=5 // pred_check
        _
      $region70: #{tpu_custom_call.1} parent=5 // pred_check_branch
        %410 = sbr.rel (%p407) target = $region72
      $region71: #{tpu_custom_call.1} parent=5 // pred_region
        %s411 = ssub.s32 %s25, 1
        %s412 = sand.u32 %s38, 1
        %s413 = scalar_lea.sflag [#allocation3], %s412
        %s414 = sand.u32 %s38, 1
        %s415 = smul.addr %s414, 32
        %s416 = scalar_lea.vmem [#allocation2], %s415
        // Predicated region
        $region73: #{tpu_custom_call.1} parent=71 // pred_check
          %p417 = pneg %p51
        $region74: #{tpu_custom_call.1} parent=71 // pred_check_branch
          %419 = sbr.rel (%p417) target = $region76
        $region75: #{tpu_custom_call.1} parent=71 // pred_region
          %420 = dma.done %s413, 512
        $region76: #{tpu_custom_call.1} parent=71 // pred_fallthru
          _
        %s421 = sand.u32 %s38, 1
        %s422 = scalar_lea.sflag [#allocation3], %s421
        %s423 = sand.u32 %s38, 1
        %s424 = smul.addr %s423, 32
        %s425 = scalar_lea.vmem [#allocation2], %s424
        %p426 = pneg %p51
        %p427 = pneg %p48
        %p428 = pneg %p72
        %p429 = pneg %p69
        %p430 = pneg %p93
        %p431 = pneg %p90
        %p432 = pneg %p114
        %p433 = pneg %p111
        %p434 = pneg %p135
        %p435 = pneg %p132
        %p436 = pneg %p156
        %p437 = pneg %p153
        %p438 = pneg %p177
        %p439 = pneg %p174
        %p440 = pneg %p198
        %p441 = pneg %p195
        %p442 = pneg %p219
        %p443 = pneg %p216
        %p444 = pneg %p240
        %p445 = pneg %p237
        %p446 = pneg %p261
        %p447 = pneg %p258
        %p448 = pneg %p282
        %p449 = pneg %p279
        %p450 = pneg %p303
        %p451 = pneg %p300
        %p452 = pneg %p329
        %p453 = pneg %p326
        %s454 = sand.u32 %s316, 1
        %s455 = scalar_lea.sflag [#allocation4], %s454
        %s456 = sand.u32 %s316, 1
        %s457 = smul.addr %s456, 32
        %s458 = scalar_lea.vmem [#allocation5], %s457
        %v459 = vld [vmem:[%s416] sm:$0xff]
        %v460 = vld [vmem:[%s416 + $0x8] sm:$0xff]
        %v461 = vld [vmem:[%s416 + $0x10] sm:$0xff]
        %v462 = vld [vmem:[%s416 + $0x18] sm:$0xff]
        %v463 = vld [vmem:[%s1] sm:$0x1]
        %v464 = vld [vmem:[%s2] sm:$0x1]
        %vm465 = vcmask 261120
        %v466 = vsel %vm465, %v459, 0.0
        %467 = vadd.xlane.f32.xlu0 %v466
        %v468 = vpop.xlane.xlu0 %467
        %v469 = vsel %vm465, %v460, 0.0
        %470 = vadd.xlane.f32.xlu0 %v469
        %v471 = vpop.xlane.xlu0 %470
        %v472 = vsel %vm465, %v461, 0.0
        %473 = vadd.xlane.f32.xlu0 %v472
        %v474 = vpop.xlane.xlu0 %473
        %v475 = vsel %vm465, %v462, 0.0
        %476 = vadd.xlane.f32.xlu0 %v475
        %v477 = vpop.xlane.xlu0 %476
        %v478 = vrcp.pop 32.0
        %v479 = vmul.f32 %v468, %v478
        %v480 = vmul.f32 %v471, %v478
        %v481 = vmul.f32 %v474, %v478
        %v482 = vmul.f32 %v477, %v478
        %v483 = vsub.f32 %v459, %v479
        %v484 = vsub.f32 %v460, %v480
        %v485 = vsub.f32 %v461, %v481
        %v486 = vsub.f32 %v462, %v482
        %v487 = vmul.f32 %v483, %v483
        %v488 = vmul.f32 %v484, %v484
        %v489 = vmul.f32 %v485, %v485
        %v490 = vmul.f32 %v486, %v486
        %v491 = vsel %vm465, %v487, 0.0
        %492 = vadd.xlane.f32.xlu0 %v491
        %v493 = vpop.xlane.xlu0 %492
        %v494 = vsel %vm465, %v488, 0.0
        %495 = vadd.xlane.f32.xlu0 %v494
        %v496 = vpop.xlane.xlu0 %495
        %v497 = vsel %vm465, %v489, 0.0
        %498 = vadd.xlane.f32.xlu0 %v497
        %v499 = vpop.xlane.xlu0 %498
        %v500 = vsel %vm465, %v490, 0.0
        %501 = vadd.xlane.f32.xlu0 %v500
        %v502 = vpop.xlane.xlu0 %501
        %v503 = vmul.f32 %v493, %v478
        %v504 = vmul.f32 %v496, %v478
        %v505 = vmul.f32 %v499, %v478
        %v506 = vmul.f32 %v502, %v478
        %v507 = vadd.f32 %v503, 1e-05
        %v508 = vadd.f32 %v504, 1e-05
        %v509 = vadd.f32 %v505, 1e-05
        %v510 = vadd.f32 %v506, 1e-05
        %v511 = vrsqrt.pop %v507
        %v512 = vrsqrt.pop %v508
        %v513 = vrsqrt.pop %v509
        %v514 = vrsqrt.pop %v510
        %v515 = vmul.f32 %v483, %v511
        %v516 = vmul.f32 %v484, %v512
        %v517 = vmul.f32 %v485, %v513
        %v518 = vmul.f32 %v486, %v514
        %v520 = vlaneseq
        %v521 = vshrl.u32 %v520, 7
        %v522 = vsub.s32 0, %v521
        %v523 = vrot.slane %v463, %v522
        %v525 = vmul.f32 %v515, %v523
        %v526 = vmul.f32 %v516, %v523
        %v527 = vmul.f32 %v517, %v523
        %v528 = vmul.f32 %v518, %v523
        %v530 = vlaneseq
        %v531 = vshrl.u32 %v530, 7
        %v532 = vsub.s32 0, %v531
        %v533 = vrot.slane %v464, %v532
        %v535 = vadd.f32 %v525, %v533
        %v536 = vadd.f32 %v526, %v533
        %v537 = vadd.f32 %v527, %v533
        %v538 = vadd.f32 %v528, %v533
        %v539 = vld [vmem:[%s3] sm:$0xff]
        %v540 = vld [vmem:[%s3 + $0x8] sm:$0xff]
        %v541 = vld [vmem:[%s3 + $0x10] sm:$0xff]
        %v542 = vld [vmem:[%s3 + $0x18] sm:$0xff]
        %v543 = vld [vmem:[%s3 + $0x20] sm:$0xff]
        %v544 = vld [vmem:[%s3 + $0x28] sm:$0xff]
        %v545 = vld [vmem:[%s3 + $0x30] sm:$0xff]
        %v546 = vld [vmem:[%s3 + $0x38] sm:$0xff]
        %v547 = vld [vmem:[%s3 + $0x40] sm:$0xff]
        %v548 = vld [vmem:[%s3 + $0x48] sm:$0xff]
        %v549 = vld [vmem:[%s3 + $0x50] sm:$0xff]
        %v550 = vld [vmem:[%s3 + $0x58] sm:$0xff]
        %v551 = vld [vmem:[%s3 + $0x60] sm:$0xff]
        %v552 = vld [vmem:[%s3 + $0x68] sm:$0xff]
        %v553 = vld [vmem:[%s3 + $0x70] sm:$0xff]
        %v554 = vld [vmem:[%s3 + $0x78] sm:$0xff]
        %v555 = vld [vmem:[%s3 + $0x80] sm:$0xff]
        %v556 = vld [vmem:[%s3 + $0x88] sm:$0xff]
        %v557 = vld [vmem:[%s3 + $0x90] sm:$0xff]
        %v558 = vld [vmem:[%s3 + $0x98] sm:$0xff]
        %v559 = vld [vmem:[%s3 + $0xa0] sm:$0xff]
        %v560 = vld [vmem:[%s3 + $0xa8] sm:$0xff]
        %v561 = vld [vmem:[%s3 + $0xb0] sm:$0xff]
        %v562 = vld [vmem:[%s3 + $0xb8] sm:$0xff]
        %v564 = vsel %vm465, %v535, 0
        %v567 = vsel %vm465, %v536, 0
        %v570 = vsel %vm465, %v537, 0
        %v573 = vsel %vm465, %v538, 0
        %575 = vmatprep.subr.mxu0 %v540
        %576 = vmatpush1.msra.mxu0 %v539
        %577 = vmatprep.subr.mxu0 %v546
        %578 = vmatpush1.msra.mxu0 %v545
        %579 = vmatprep.subr.mxu0 %v552
        %580 = vmatpush1.msra.mxu0 %v551
        %581 = vmatprep.subr.mxu0 %v558
        %582 = vmatpush1.msra.mxu0 %v557
        %583 = vmatprep.subr.mxu0 0.0
        %584 = vmatpush1.msra.mxu0 0.0
        %585 = vmatprep.subr.mxu0 0.0
        %586 = vmatpush1.msra.mxu0 0.0
        %587 = vmatprep.subr.mxu0 0.0
        %588 = vmatpush1.msra.mxu0 0.0
        %589 = vmatprep.subr.mxu0 0.0
        %590 = vmatpush1.msra.mxu0 0.0
        %591 = vmatprep.subr.mxu0 0.0
        %592 = vmatpush1.msra.mxu0 0.0
        %593 = vmatprep.subr.mxu0 0.0
        %594 = vmatpush1.msra.mxu0 0.0
        %595 = vmatprep.subr.mxu0 0.0
        %596 = vmatpush1.msra.mxu0 0.0
        %597 = vmatprep.subr.mxu0 0.0
        %598 = vmatpush1.msra.mxu0 0.0
        %599 = vmatprep.subr.mxu0 0.0
        %600 = vmatpush1.msra.mxu0 0.0
        %601 = vmatprep.subr.mxu0 0.0
        %602 = vmatpush1.msra.mxu0 0.0
        %603 = vmatprep.subr.mxu0 0.0
        %604 = vmatpush1.msra.mxu0 0.0
        %605 = vmatprep.subr.mxu0 0.0
        %606 = vmatpush1.msra.mxu0 0.0
        %607 = vmatprep.subr.mxu0 0.0
        %608 = vmatpush1.msra.mxu0 0.0
        %609 = vmatprep.subr.mxu0 0.0
        %610 = vmatpush1.msra.mxu0 0.0
        %611 = vmatprep.subr.mxu0 0.0
        %612 = vmatpush1.msra.mxu0 0.0
        %613 = vmatprep.subr.mxu0 0.0
        %614 = vmatpush1.msra.mxu0 0.0
        %615 = vmatprep.subr.mxu0 0.0
        %616 = vmatpush1.msra.mxu0 0.0
        %617 = vmatprep.subr.mxu0 0.0
        %618 = vmatpush1.msra.mxu0 0.0
        %619 = vmatprep.subr.mxu0 0.0
        %620 = vmatpush1.msra.mxu0 0.0
        %621 = vmatprep.subr.mxu0 0.0
        %622 = vmatpush1.msra.mxu0 0.0
        %623 = vmatprep.subr.mxu0 0.0
        %624 = vmatpush1.msra.mxu0 0.0
        %625 = vmatprep.subr.mxu0 0.0
        %626 = vmatpush1.msra.mxu0 0.0
        %627 = vmatprep.subr.mxu0 0.0
        %628 = vmatpush1.msra.mxu0 0.0
        %629 = vmatprep.subr.mxu0 0.0
        %630 = vmatpush1.msra.mxu0 0.0
        %631 = vmatprep.subr.mxu0 0.0
        %632 = vmatpush1.msra.mxu0 0.0
        %633 = vmatprep.subr.mxu0 0.0
        %634 = vmatpush1.msra.mxu0 0.0
        %635 = vmatprep.subr.mxu0 0.0
        %636 = vmatpush1.msra.mxu0 0.0
        %637 = vmatprep.subr.mxu0 0.0
        %638 = vmatpush1.msra.mxu0 0.0
        %639 = vmatprep.mubr.f32.mxu0 0.0
        %640 = vmatmul.mubr.f32.gmra.mrb[0].mxu0 %v564
        %v641 = vpop.f32.mrb[0].mxu0
        %v642 = vadd.f32 0.0, %v641
        %v643 = vpop.f32.mrb[0].mxu0
        %v644 = vadd.f32 0.0, %v643
        %645 = vmatprep.mubr.f32.mxu0 0.0
        %646 = vmatmul.mubr.f32.gmra.mrb[0].mxu0 %v567
        %v647 = vpop.f32.mrb[0].mxu0
        %v648 = vadd.f32 0.0, %v647
        %v649 = vpop.f32.mrb[0].mxu0
        %v650 = vadd.f32 0.0, %v649
        %651 = vmatprep.mubr.f32.mxu0 0.0
        %652 = vmatmul.mubr.f32.gmra.mrb[0].mxu0 %v570
        %v653 = vpop.f32.mrb[0].mxu0
        %v654 = vadd.f32 0.0, %v653
        %v655 = vpop.f32.mrb[0].mxu0
        %v656 = vadd.f32 0.0, %v655
        %657 = vmatprep.mubr.f32.mxu0 0.0
        %658 = vmatmul.mubr.f32.gmra.mrb[0].mxu0 %v573
        %v659 = vpop.f32.mrb[0].mxu0
        %v660 = vadd.f32 0.0, %v659
        %v661 = vpop.f32.mrb[0].mxu0
        %v662 = vadd.f32 0.0, %v661
        %663 = vdwg.mxu0
        %664 = vmatprep.subr.mxu0 %v542
        %665 = vmatpush1.msra.mxu0 %v541
        %666 = vmatprep.subr.mxu0 %v548
        %667 = vmatpush1.msra.mxu0 %v547
        %668 = vmatprep.subr.mxu0 %v554
        %669 = vmatpush1.msra.mxu0 %v553
        %670 = vmatprep.subr.mxu0 %v560
        %671 = vmatpush1.msra.mxu0 %v559
        %672 = vmatprep.subr.mxu0 0.0
        %673 = vmatpush1.msra.mxu0 0.0
        %674 = vmatprep.subr.mxu0 0.0
        %675 = vmatpush1.msra.mxu0 0.0
        %676 = vmatprep.subr.mxu0 0.0
        %677 = vmatpush1.msra.mxu0 0.0
        %678 = vmatprep.subr.mxu0 0.0
        %679 = vmatpush1.msra.mxu0 0.0
        %680 = vmatprep.subr.mxu0 0.0
        %681 = vmatpush1.msra.mxu0 0.0
        %682 = vmatprep.subr.mxu0 0.0
        %683 = vmatpush1.msra.mxu0 0.0
        %684 = vmatprep.subr.mxu0 0.0
        %685 = vmatpush1.msra.mxu0 0.0
        %686 = vmatprep.subr.mxu0 0.0
        %687 = vmatpush1.msra.mxu0 0.0
        %688 = vmatprep.subr.mxu0 0.0
        %689 = vmatpush1.msra.mxu0 0.0
        %690 = vmatprep.subr.mxu0 0.0
        %691 = vmatpush1.msra.mxu0 0.0
        %692 = vmatprep.subr.mxu0 0.0
        %693 = vmatpush1.msra.mxu0 0.0
        %694 = vmatprep.subr.mxu0 0.0
        %695 = vmatpush1.msra.mxu0 0.0
        %696 = vmatprep.subr.mxu0 0.0
        %697 = vmatpush1.msra.mxu0 0.0
        %698 = vmatprep.subr.mxu0 0.0
        %699 = vmatpush1.msra.mxu0 0.0
        %700 = vmatprep.subr.mxu0 0.0
        %701 = vmatpush1.msra.mxu0 0.0
        %702 = vmatprep.subr.mxu0 0.0
        %703 = vmatpush1.msra.mxu0 0.0
        %704 = vmatprep.subr.mxu0 0.0
        %705 = vmatpush1.msra.mxu0 0.0
        %706 = vmatprep.subr.mxu0 0.0
        %707 = vmatpush1.msra.mxu0 0.0
        %708 = vmatprep.subr.mxu0 0.0
        %709 = vmatpush1.msra.mxu0 0.0
        %710 = vmatprep.subr.mxu0 0.0
        %711 = vmatpush1.msra.mxu0 0.0
        %712 = vmatprep.subr.mxu0 0.0
        %713 = vmatpush1.msra.mxu0 0.0
        %714 = vmatprep.subr.mxu0 0.0
        %715 = vmatpush1.msra.mxu0 0.0
        %716 = vmatprep.subr.mxu0 0.0
        %717 = vmatpush1.msra.mxu0 0.0
        %718 = vmatprep.subr.mxu0 0.0
        %719 = vmatpush1.msra.mxu0 0.0
        %720 = vmatprep.subr.mxu0 0.0
        %721 = vmatpush1.msra.mxu0 0.0
        %722 = vmatprep.subr.mxu0 0.0
        %723 = vmatpush1.msra.mxu0 0.0
        %724 = vmatprep.subr.mxu0 0.0
        %725 = vmatpush1.msra.mxu0 0.0
        %726 = vmatprep.subr.mxu0 0.0
        %727 = vmatpush1.msra.mxu0 0.0
        %728 = vmatprep.mubr.f32.mxu0 0.0
        %729 = vmatmul.mubr.f32.gmra.mrb[0].mxu0 %v564
        %v730 = vpop.f32.mrb[0].mxu0
        %v731 = vadd.f32 0.0, %v730
        %v732 = vpop.f32.mrb[0].mxu0
        %v733 = vadd.f32 0.0, %v732
        %734 = vmatprep.mubr.f32.mxu0 0.0
        %735 = vmatmul.mubr.f32.gmra.mrb[0].mxu0 %v567
        %v736 = vpop.f32.mrb[0].mxu0
        %v737 = vadd.f32 0.0, %v736
        %v738 = vpop.f32.mrb[0].mxu0
        %v739 = vadd.f32 0.0, %v738
        %740 = vmatprep.mubr.f32.mxu0 0.0
        %741 = vmatmul.mubr.f32.gmra.mrb[0].mxu0 %v570
        %v742 = vpop.f32.mrb[0].mxu0
        %v743 = vadd.f32 0.0, %v742
        %v744 = vpop.f32.mrb[0].mxu0
        %v745 = vadd.f32 0.0, %v744
        %746 = vmatprep.mubr.f32.mxu0 0.0
        %747 = vmatmul.mubr.f32.gmra.mrb[0].mxu0 %v573
        %v748 = vpop.f32.mrb[0].mxu0
        %v749 = vadd.f32 0.0, %v748
        %v750 = vpop.f32.mrb[0].mxu0
        %v751 = vadd.f32 0.0, %v750
        %752 = vdwg.mxu0
        %753 = vmatprep.subr.mxu0 %v544
        %754 = vmatpush1.msra.mxu0 %v543
        %755 = vmatprep.subr.mxu0 %v550
        %756 = vmatpush1.msra.mxu0 %v549
        %757 = vmatprep.subr.mxu0 %v556
        %758 = vmatpush1.msra.mxu0 %v555
        %759 = vmatprep.subr.mxu0 %v562
        %760 = vmatpush1.msra.mxu0 %v561
        %761 = vmatprep.subr.mxu0 0.0
        %762 = vmatpush1.msra.mxu0 0.0
        %763 = vmatprep.subr.mxu0 0.0
        %764 = vmatpush1.msra.mxu0 0.0
        %765 = vmatprep.subr.mxu0 0.0
        %766 = vmatpush1.msra.mxu0 0.0
        %767 = vmatprep.subr.mxu0 0.0
        %768 = vmatpush1.msra.mxu0 0.0
        %769 = vmatprep.subr.mxu0 0.0
        %770 = vmatpush1.msra.mxu0 0.0
        %771 = vmatprep.subr.mxu0 0.0
        %772 = vmatpush1.msra.mxu0 0.0
        %773 = vmatprep.subr.mxu0 0.0
        %774 = vmatpush1.msra.mxu0 0.0
        %775 = vmatprep.subr.mxu0 0.0
        %776 = vmatpush1.msra.mxu0 0.0
        %777 = vmatprep.subr.mxu0 0.0
        %778 = vmatpush1.msra.mxu0 0.0
        %779 = vmatprep.subr.mxu0 0.0
        %780 = vmatpush1.msra.mxu0 0.0
        %781 = vmatprep.subr.mxu0 0.0
        %782 = vmatpush1.msra.mxu0 0.0
        %783 = vmatprep.subr.mxu0 0.0
        %784 = vmatpush1.msra.mxu0 0.0
        %785 = vmatprep.subr.mxu0 0.0
        %786 = vmatpush1.msra.mxu0 0.0
        %787 = vmatprep.subr.mxu0 0.0
        %788 = vmatpush1.msra.mxu0 0.0
        %789 = vmatprep.subr.mxu0 0.0
        %790 = vmatpush1.msra.mxu0 0.0
        %791 = vmatprep.subr.mxu0 0.0
        %792 = vmatpush1.msra.mxu0 0.0
        %793 = vmatprep.subr.mxu0 0.0
        %794 = vmatpush1.msra.mxu0 0.0
        %795 = vmatprep.subr.mxu0 0.0
        %796 = vmatpush1.msra.mxu0 0.0
        %797 = vmatprep.subr.mxu0 0.0
        %798 = vmatpush1.msra.mxu0 0.0
        %799 = vmatprep.subr.mxu0 0.0
        %800 = vmatpush1.msra.mxu0 0.0
        %801 = vmatprep.subr.mxu0 0.0
        %802 = vmatpush1.msra.mxu0 0.0
        %803 = vmatprep.subr.mxu0 0.0
        %804 = vmatpush1.msra.mxu0 0.0
        %805 = vmatprep.subr.mxu0 0.0
        %806 = vmatpush1.msra.mxu0 0.0
        %807 = vmatprep.subr.mxu0 0.0
        %808 = vmatpush1.msra.mxu0 0.0
        %809 = vmatprep.subr.mxu0 0.0
        %810 = vmatpush1.msra.mxu0 0.0
        %811 = vmatprep.subr.mxu0 0.0
        %812 = vmatpush1.msra.mxu0 0.0
        %813 = vmatprep.subr.mxu0 0.0
        %814 = vmatpush1.msra.mxu0 0.0
        %815 = vmatprep.subr.mxu0 0.0
        %816 = vmatpush1.msra.mxu0 0.0
        %817 = vmatprep.mubr.f32.mxu0 0.0
        %818 = vmatmul.mubr.f32.gmra.mrb[0].mxu0 %v564
        %v819 = vpop.f32.mrb[0].mxu0
        %v820 = vadd.f32 0.0, %v819
        %v821 = vpop.f32.mrb[0].mxu0
        %v822 = vadd.f32 0.0, %v821
        %823 = vmatprep.mubr.f32.mxu0 0.0
        %824 = vmatmul.mubr.f32.gmra.mrb[0].mxu0 %v567
        %v825 = vpop.f32.mrb[0].mxu0
        %v826 = vadd.f32 0.0, %v825
        %v827 = vpop.f32.mrb[0].mxu0
        %v828 = vadd.f32 0.0, %v827
        %829 = vmatprep.mubr.f32.mxu0 0.0
        %830 = vmatmul.mubr.f32.gmra.mrb[0].mxu0 %v570
        %v831 = vpop.f32.mrb[0].mxu0
        %v832 = vadd.f32 0.0, %v831
        %v833 = vpop.f32.mrb[0].mxu0
        %v834 = vadd.f32 0.0, %v833
        %835 = vmatprep.mubr.f32.mxu0 0.0
        %836 = vmatmul.mubr.f32.gmra.mrb[0].mxu0 %v573
        %v837 = vpop.f32.mrb[0].mxu0
        %v838 = vadd.f32 0.0, %v837
        %v839 = vpop.f32.mrb[0].mxu0
        %v840 = vadd.f32 0.0, %v839
        %841 = vdwg.mxu0
        %v842 = vmul.f32 %v642, 0.17677669
        %v843 = vmul.f32 %v648, 0.17677669
        %v844 = vmul.f32 %v654, 0.17677669
        %v845 = vmul.f32 %v660, 0.17677669
        %v846 = vld [vmem:[%s4] sm:$0xff]
        %v847 = vld [vmem:[%s4 + $0x8] sm:$0xff]
        %v848 = vld [vmem:[%s4 + $0x10] sm:$0xff]
        %v849 = vld [vmem:[%s4 + $0x18] sm:$0xff]
        %v851 = vsel %vm465, %v842, 0
        %v854 = vsel %vm465, %v843, 0
        %v857 = vsel %vm465, %v844, 0
        %v860 = vsel %vm465, %v845, 0
        %v863 = vsel %vm465, %v731, 0
        %v866 = vsel %vm465, %v737, 0
        %v869 = vsel %vm465, %v743, 0
        %v872 = vsel %vm465, %v749, 0
        %874 = vmatprep.subr.mxu0 0.0
        %875 = vmatpush1.xpose.msra.mxu0 %v863
        %876 = vmatprep.subr.mxu0 0.0
        %877 = vmatpush1.xpose.msra.mxu0 %v866
        %878 = vmatprep.subr.mxu0 0.0
        %879 = vmatpush1.xpose.msra.mxu0 %v869
        %880 = vmatprep.subr.mxu0 0.0
        %881 = vmatpush1.xpose.msra.mxu0 %v872
        %882 = vmatprep.subr.mxu0 0.0
        %883 = vmatpush1.xpose.msra.mxu0 0.0
        %884 = vmatprep.subr.mxu0 0.0
        %885 = vmatpush1.xpose.msra.mxu0 0.0
        %886 = vmatprep.subr.mxu0 0.0
        %887 = vmatpush1.xpose.msra.mxu0 0.0
        %888 = vmatprep.subr.mxu0 0.0
        %889 = vmatpush1.xpose.msra.mxu0 0.0
        %890 = vmatprep.subr.mxu0 0.0
        %891 = vmatpush1.xpose.msra.mxu0 0.0
        %892 = vmatprep.subr.mxu0 0.0
        %893 = vmatpush1.xpose.msra.mxu0 0.0
        %894 = vmatprep.subr.mxu0 0.0
        %895 = vmatpush1.xpose.msra.mxu0 0.0
        %896 = vmatprep.subr.mxu0 0.0
        %897 = vmatpush1.xpose.msra.mxu0 0.0
        %898 = vmatprep.subr.mxu0 0.0
        %899 = vmatpush1.xpose.msra.mxu0 0.0
        %900 = vmatprep.subr.mxu0 0.0
        %901 = vmatpush1.xpose.msra.mxu0 0.0
        %902 = vmatprep.subr.mxu0 0.0
        %903 = vmatpush1.xpose.msra.mxu0 0.0
        %904 = vmatprep.subr.mxu0 0.0
        %905 = vmatpush1.xpose.msra.mxu0 0.0
        %906 = vmatprep.subr.mxu0 0.0
        %907 = vmatpush1.xpose.msra.mxu0 0.0
        %908 = vmatprep.subr.mxu0 0.0
        %909 = vmatpush1.xpose.msra.mxu0 0.0
        %910 = vmatprep.subr.mxu0 0.0
        %911 = vmatpush1.xpose.msra.mxu0 0.0
        %912 = vmatprep.subr.mxu0 0.0
        %913 = vmatpush1.xpose.msra.mxu0 0.0
        %914 = vmatprep.subr.mxu0 0.0
        %915 = vmatpush1.xpose.msra.mxu0 0.0
        %916 = vmatprep.subr.mxu0 0.0
        %917 = vmatpush1.xpose.msra.mxu0 0.0
        %918 = vmatprep.subr.mxu0 0.0
        %919 = vmatpush1.xpose.msra.mxu0 0.0
        %920 = vmatprep.subr.mxu0 0.0
        %921 = vmatpush1.xpose.msra.mxu0 0.0
        %922 = vmatprep.subr.mxu0 0.0
        %923 = vmatpush1.xpose.msra.mxu0 0.0
        %924 = vmatprep.subr.mxu0 0.0
        %925 = vmatpush1.xpose.msra.mxu0 0.0
        %926 = vmatprep.subr.mxu0 0.0
        %927 = vmatpush1.xpose.msra.mxu0 0.0
        %928 = vmatprep.subr.mxu0 0.0
        %929 = vmatpush1.xpose.msra.mxu0 0.0
        %930 = vmatprep.subr.mxu0 0.0
        %931 = vmatpush1.xpose.msra.mxu0 0.0
        %932 = vmatprep.subr.mxu0 0.0
        %933 = vmatpush1.xpose.msra.mxu0 0.0
        %934 = vmatprep.subr.mxu0 0.0
        %935 = vmatpush1.xpose.msra.mxu0 0.0
        %936 = vmatprep.subr.mxu0 0.0
        %937 = vmatpush1.xpose.msra.mxu0 0.0
        %938 = vmatprep.mubr.f32.mxu0 0.0
        %939 = vmatmul.mubr.f32.gmra.mrb[0].mxu0 %v851
        %v940 = vpop.f32.mrb[0].mxu0
        %v941 = vadd.f32 %v846, %v940
        %v942 = vpop.f32.mrb[0].mxu0
        %943 = vmatprep.mubr.f32.mxu0 0.0
        %944 = vmatmul.mubr.f32.gmra.mrb[0].mxu0 %v854
        %v945 = vpop.f32.mrb[0].mxu0
        %v946 = vadd.f32 %v847, %v945
        %v947 = vpop.f32.mrb[0].mxu0
        %948 = vmatprep.mubr.f32.mxu0 0.0
        %949 = vmatmul.mubr.f32.gmra.mrb[0].mxu0 %v857
        %v950 = vpop.f32.mrb[0].mxu0
        %v951 = vadd.f32 %v848, %v950
        %v952 = vpop.f32.mrb[0].mxu0
        %953 = vmatprep.mubr.f32.mxu0 0.0
        %954 = vmatmul.mubr.f32.gmra.mrb[0].mxu0 %v860
        %v955 = vpop.f32.mrb[0].mxu0
        %v956 = vadd.f32 %v849, %v955
        %v957 = vpop.f32.mrb[0].mxu0
        %958 = vdwg.mxu0
        %v959 = vsel %vm465, %v941, -inf
        %960 = vmax.xlane.f32.xlu0 %v959
        %v961 = vpop.xlane.xlu0 %960
        %v962 = vsel %vm465, %v946, -inf
        %963 = vmax.xlane.f32.xlu0 %v962
        %v964 = vpop.xlane.xlu0 %963
        %v965 = vsel %vm465, %v951, -inf
        %966 = vmax.xlane.f32.xlu0 %v965
        %v967 = vpop.xlane.xlu0 %966
        %v968 = vsel %vm465, %v956, -inf
        %969 = vmax.xlane.f32.xlu0 %v968
        %v970 = vpop.xlane.xlu0 %969
        %v971 = vsub.f32 %v941, %v961
        %v972 = vsub.f32 %v946, %v964
        %v973 = vsub.f32 %v951, %v967
        %v974 = vsub.f32 %v956, %v970
        %v975 = vmul.f32 %v971, 1.442695
        %v976 = vpow.pop %v975
        %v977 = vmul.f32 %v972, 1.442695
        %v978 = vpow.pop %v977
        %v979 = vmul.f32 %v973, 1.442695
        %v980 = vpow.pop %v979
        %v981 = vmul.f32 %v974, 1.442695
        %v982 = vpow.pop %v981
        %v983 = vsel %vm465, %v976, 0.0
        %984 = vadd.xlane.f32.xlu0 %v983
        %v985 = vpop.xlane.xlu0 %984
        %v986 = vsel %vm465, %v978, 0.0
        %987 = vadd.xlane.f32.xlu0 %v986
        %v988 = vpop.xlane.xlu0 %987
        %v989 = vsel %vm465, %v980, 0.0
        %990 = vadd.xlane.f32.xlu0 %v989
        %v991 = vpop.xlane.xlu0 %990
        %v992 = vsel %vm465, %v982, 0.0
        %993 = vadd.xlane.f32.xlu0 %v992
        %v994 = vpop.xlane.xlu0 %993
        %v995 = vrcp.pop %v985
        %v996 = vrcp.pop %v988
        %v997 = vrcp.pop %v991
        %v998 = vrcp.pop %v994
        %v999 = vmul.f32 %v976, %v995
        %v1000 = vmul.f32 %v978, %v996
        %v1001 = vmul.f32 %v980, %v997
        %v1002 = vmul.f32 %v982, %v998
        %v1004 = vsel %vm465, %v999, 0
        %v1007 = vsel %vm465, %v1000, 0
        %v1010 = vsel %vm465, %v1001, 0
        %v1013 = vsel %vm465, %v1002, 0
        %1015 = vmatprep.subr.mxu0 0.0
        %1016 = vmatpush1.msra.mxu0 %v820
        %1017 = vmatprep.subr.mxu0 0.0
        %1018 = vmatpush1.msra.mxu0 %v826
        %1019 = vmatprep.subr.mxu0 0.0
        %1020 = vmatpush1.msra.mxu0 %v832
        %1021 = vmatprep.subr.mxu0 0.0
        %1022 = vmatpush1.msra.mxu0 %v838
        %1023 = vmatprep.subr.mxu0 0.0
        %1024 = vmatpush1.msra.mxu0 0.0
        %1025 = vmatprep.subr.mxu0 0.0
        %1026 = vmatpush1.msra.mxu0 0.0
        %1027 = vmatprep.subr.mxu0 0.0
        %1028 = vmatpush1.msra.mxu0 0.0
        %1029 = vmatprep.subr.mxu0 0.0
        %1030 = vmatpush1.msra.mxu0 0.0
        %1031 = vmatprep.subr.mxu0 0.0
        %1032 = vmatpush1.msra.mxu0 0.0
        %1033 = vmatprep.subr.mxu0 0.0
        %1034 = vmatpush1.msra.mxu0 0.0
        %1035 = vmatprep.subr.mxu0 0.0
        %1036 = vmatpush1.msra.mxu0 0.0
        %1037 = vmatprep.subr.mxu0 0.0
        %1038 = vmatpush1.msra.mxu0 0.0
        %1039 = vmatprep.subr.mxu0 0.0
        %1040 = vmatpush1.msra.mxu0 0.0
        %1041 = vmatprep.subr.mxu0 0.0
        %1042 = vmatpush1.msra.mxu0 0.0
        %1043 = vmatprep.subr.mxu0 0.0
        %1044 = vmatpush1.msra.mxu0 0.0
        %1045 = vmatprep.subr.mxu0 0.0
        %1046 = vmatpush1.msra.mxu0 0.0
        %1047 = vmatprep.subr.mxu0 0.0
        %1048 = vmatpush1.msra.mxu0 0.0
        %1049 = vmatprep.subr.mxu0 0.0
        %1050 = vmatpush1.msra.mxu0 0.0
        %1051 = vmatprep.subr.mxu0 0.0
        %1052 = vmatpush1.msra.mxu0 0.0
        %1053 = vmatprep.subr.mxu0 0.0
        %1054 = vmatpush1.msra.mxu0 0.0
        %1055 = vmatprep.subr.mxu0 0.0
        %1056 = vmatpush1.msra.mxu0 0.0
        %1057 = vmatprep.subr.mxu0 0.0
        %1058 = vmatpush1.msra.mxu0 0.0
        %1059 = vmatprep.subr.mxu0 0.0
        %1060 = vmatpush1.msra.mxu0 0.0
        %1061 = vmatprep.subr.mxu0 0.0
        %1062 = vmatpush1.msra.mxu0 0.0
        %1063 = vmatprep.subr.mxu0 0.0
        %1064 = vmatpush1.msra.mxu0 0.0
        %1065 = vmatprep.subr.mxu0 0.0
        %1066 = vmatpush1.msra.mxu0 0.0
        %1067 = vmatprep.subr.mxu0 0.0
        %1068 = vmatpush1.msra.mxu0 0.0
        %1069 = vmatprep.subr.mxu0 0.0
        %1070 = vmatpush1.msra.mxu0 0.0
        %1071 = vmatprep.subr.mxu0 0.0
        %1072 = vmatpush1.msra.mxu0 0.0
        %1073 = vmatprep.subr.mxu0 0.0
        %1074 = vmatpush1.msra.mxu0 0.0
        %1075 = vmatprep.subr.mxu0 0.0
        %1076 = vmatpush1.msra.mxu0 0.0
        %1077 = vmatprep.subr.mxu0 0.0
        %1078 = vmatpush1.msra.mxu0 0.0
        %1079 = vmatprep.mubr.f32.mxu0 0.0
        %1080 = vmatmul.mubr.f32.gmra.mrb[0].mxu0 %v1004
        %v1081 = vpop.f32.mrb[0].mxu0
        %v1082 = vadd.f32 0.0, %v1081
        %v1083 = vpop.f32.mrb[0].mxu0
        %1084 = vmatprep.mubr.f32.mxu0 0.0
        %1085 = vmatmul.mubr.f32.gmra.mrb[0].mxu0 %v1007
        %v1086 = vpop.f32.mrb[0].mxu0
        %v1087 = vadd.f32 0.0, %v1086
        %v1088 = vpop.f32.mrb[0].mxu0
        %1089 = vmatprep.mubr.f32.mxu0 0.0
        %1090 = vmatmul.mubr.f32.gmra.mrb[0].mxu0 %v1010
        %v1091 = vpop.f32.mrb[0].mxu0
        %v1092 = vadd.f32 0.0, %v1091
        %v1093 = vpop.f32.mrb[0].mxu0
        %1094 = vmatprep.mubr.f32.mxu0 0.0
        %1095 = vmatmul.mubr.f32.gmra.mrb[0].mxu0 %v1013
        %v1096 = vpop.f32.mrb[0].mxu0
        %v1097 = vadd.f32 0.0, %v1096
        %v1098 = vpop.f32.mrb[0].mxu0
        %1099 = vdwg.mxu0
        %s1100 = scalar_lea.vmem %s4, 32
        %v1101 = vld [vmem:[%s1100] sm:$0xff]
        %v1102 = vld [vmem:[%s1100 + $0x8] sm:$0xff]
        %v1103 = vld [vmem:[%s1100 + $0x10] sm:$0xff]
        %v1104 = vld [vmem:[%s1100 + $0x18] sm:$0xff]
        %1105 = vrot.lane.b32.xlu0 %v842, 96
        %v1106 = vpop.permute.xlu0 %1105
        %1107 = vrot.lane.b32.xlu0 %v843, 96
        %v1108 = vpop.permute.xlu0 %1107
        %1109 = vrot.lane.b32.xlu0 %v844, 96
        %v1110 = vpop.permute.xlu0 %1109
        %1111 = vrot.lane.b32.xlu0 %v845, 96
        %v1112 = vpop.permute.xlu0 %1111
        %1113 = vrot.lane.b32.xlu0 %v731, 96
        %v1114 = vpop.permute.xlu0 %1113
        %1115 = vrot.lane.b32.xlu0 %v737, 96
        %v1116 = vpop.permute.xlu0 %1115
        %1117 = vrot.lane.b32.xlu0 %v743, 96
        %v1118 = vpop.permute.xlu0 %1117
        %1119 = vrot.lane.b32.xlu0 %v749, 96
        %v1120 = vpop.permute.xlu0 %1119
        %v1121 = vsel %vm465, %v1106, 0
        %v1123 = vsel %vm465, %v1108, 0
        %v1125 = vsel %vm465, %v1110, 0
        %v1127 = vsel %vm465, %v1112, 0
        %v1129 = vsel %vm465, %v1114, 0
        %v1131 = vsel %vm465, %v1116, 0
        %v1133 = vsel %vm465, %v1118, 0
        %v1135 = vsel %vm465, %v1120, 0
        %1137 = vmatprep.subr.mxu0 0.0
        %1138 = vmatpush1.xpose.msra.mxu0 %v1129
        %1139 = vmatprep.subr.mxu0 0.0
        %1140 = vmatpush1.xpose.msra.mxu0 %v1131
        %1141 = vmatprep.subr.mxu0 0.0
        %1142 = vmatpush1.xpose.msra.mxu0 %v1133
        %1143 = vmatprep.subr.mxu0 0.0
        %1144 = vmatpush1.xpose.msra.mxu0 %v1135
        %1145 = vmatprep.subr.mxu0 0.0
        %1146 = vmatpush1.xpose.msra.mxu0 0.0
        %1147 = vmatprep.subr.mxu0 0.0
        %1148 = vmatpush1.xpose.msra.mxu0 0.0
        %1149 = vmatprep.subr.mxu0 0.0
        %1150 = vmatpush1.xpose.msra.mxu0 0.0
        %1151 = vmatprep.subr.mxu0 0.0
        %1152 = vmatpush1.xpose.msra.mxu0 0.0
        %1153 = vmatprep.subr.mxu0 0.0
        %1154 = vmatpush1.xpose.msra.mxu0 0.0
        %1155 = vmatprep.subr.mxu0 0.0
        %1156 = vmatpush1.xpose.msra.mxu0 0.0
        %1157 = vmatprep.subr.mxu0 0.0
        %1158 = vmatpush1.xpose.msra.mxu0 0.0
        %1159 = vmatprep.subr.mxu0 0.0
        %1160 = vmatpush1.xpose.msra.mxu0 0.0
        %1161 = vmatprep.subr.mxu0 0.0
        %1162 = vmatpush1.xpose.msra.mxu0 0.0
        %1163 = vmatprep.subr.mxu0 0.0
        %1164 = vmatpush1.xpose.msra.mxu0 0.0
        %1165 = vmatprep.subr.mxu0 0.0
        %1166 = vmatpush1.xpose.msra.mxu0 0.0
        %1167 = vmatprep.subr.mxu0 0.0
        %1168 = vmatpush1.xpose.msra.mxu0 0.0
        %1169 = vmatprep.subr.mxu0 0.0
        %1170 = vmatpush1.xpose.msra.mxu0 0.0
        %1171 = vmatprep.subr.mxu0 0.0
        %1172 = vmatpush1.xpose.msra.mxu0 0.0
        %1173 = vmatprep.subr.mxu0 0.0
        %1174 = vmatpush1.xpose.msra.mxu0 0.0
        %1175 = vmatprep.subr.mxu0 0.0
        %1176 = vmatpush1.xpose.msra.mxu0 0.0
        %1177 = vmatprep.subr.mxu0 0.0
        %1178 = vmatpush1.xpose.msra.mxu0 0.0
        %1179 = vmatprep.subr.mxu0 0.0
        %1180 = vmatpush1.xpose.msra.mxu0 0.0
        %1181 = vmatprep.subr.mxu0 0.0
        %1182 = vmatpush1.xpose.msra.mxu0 0.0
        %1183 = vmatprep.subr.mxu0 0.0
        %1184 = vmatpush1.xpose.msra.mxu0 0.0
        %1185 = vmatprep.subr.mxu0 0.0
        %1186 = vmatpush1.xpose.msra.mxu0 0.0
        %1187 = vmatprep.subr.mxu0 0.0
        %1188 = vmatpush1.xpose.msra.mxu0 0.0
        %1189 = vmatprep.subr.mxu0 0.0
        %1190 = vmatpush1.xpose.msra.mxu0 0.0
        %1191 = vmatprep.subr.mxu0 0.0
        %1192 = vmatpush1.xpose.msra.mxu0 0.0
        %1193 = vmatprep.subr.mxu0 0.0
        %1194 = vmatpush1.xpose.msra.mxu0 0.0
        %1195 = vmatprep.subr.mxu0 0.0
        %1196 = vmatpush1.xpose.msra.mxu0 0.0
        %1197 = vmatprep.subr.mxu0 0.0
        %1198 = vmatpush1.xpose.msra.mxu0 0.0
        %1199 = vmatprep.subr.mxu0 0.0
        %1200 = vmatpush1.xpose.msra.mxu0 0.0
        %1201 = vmatprep.mubr.f32.mxu0 0.0
        %1202 = vmatmul.mubr.f32.gmra.mrb[0].mxu0 %v1121
        %v1203 = vpop.f32.mrb[0].mxu0
        %v1204 = vadd.f32 %v1101, %v1203
        %v1205 = vpop.f32.mrb[0].mxu0
        %1206 = vmatprep.mubr.f32.mxu0 0.0
        %1207 = vmatmul.mubr.f32.gmra.mrb[0].mxu0 %v1123
        %v1208 = vpop.f32.mrb[0].mxu0
        %v1209 = vadd.f32 %v1102, %v1208
        %v1210 = vpop.f32.mrb[0].mxu0
        %1211 = vmatprep.mubr.f32.mxu0 0.0
        %1212 = vmatmul.mubr.f32.gmra.mrb[0].mxu0 %v1125
        %v1213 = vpop.f32.mrb[0].mxu0
        %v1214 = vadd.f32 %v1103, %v1213
        %v1215 = vpop.f32.mrb[0].mxu0
        %1216 = vmatprep.mubr.f32.mxu0 0.0
        %1217 = vmatmul.mubr.f32.gmra.mrb[0].mxu0 %v1127
        %v1218 = vpop.f32.mrb[0].mxu0
        %v1219 = vadd.f32 %v1104, %v1218
        %v1220 = vpop.f32.mrb[0].mxu0
        %1221 = vdwg.mxu0
        %v1222 = vsel %vm465, %v1204, -inf
        %1223 = vmax.xlane.f32.xlu0 %v1222
        %v1224 = vpop.xlane.xlu0 %1223
        %v1225 = vsel %vm465, %v1209, -inf
        %1226 = vmax.xlane.f32.xlu0 %v1225
        %v1227 = vpop.xlane.xlu0 %1226
        %v1228 = vsel %vm465, %v1214, -inf
        %1229 = vmax.xlane.f32.xlu0 %v1228
        %v1230 = vpop.xlane.xlu0 %1229
        %v1231 = vsel %vm465, %v1219, -inf
        %1232 = vmax.xlane.f32.xlu0 %v1231
        %v1233 = vpop.xlane.xlu0 %1232
        %v1234 = vsub.f32 %v1204, %v1224
        %v1235 = vsub.f32 %v1209, %v1227
        %v1236 = vsub.f32 %v1214, %v1230
        %v1237 = vsub.f32 %v1219, %v1233
        %v1238 = vmul.f32 %v1234, 1.442695
        %v1239 = vpow.pop %v1238
        %v1240 = vmul.f32 %v1235, 1.442695
        %v1241 = vpow.pop %v1240
        %v1242 = vmul.f32 %v1236, 1.442695
        %v1243 = vpow.pop %v1242
        %v1244 = vmul.f32 %v1237, 1.442695
        %v1245 = vpow.pop %v1244
        %v1246 = vsel %vm465, %v1239, 0.0
        %1247 = vadd.xlane.f32.xlu0 %v1246
        %v1248 = vpop.xlane.xlu0 %1247
        %v1249 = vsel %vm465, %v1241, 0.0
        %1250 = vadd.xlane.f32.xlu0 %v1249
        %v1251 = vpop.xlane.xlu0 %1250
        %v1252 = vsel %vm465, %v1243, 0.0
        %1253 = vadd.xlane.f32.xlu0 %v1252
        %v1254 = vpop.xlane.xlu0 %1253
        %v1255 = vsel %vm465, %v1245, 0.0
        %1256 = vadd.xlane.f32.xlu0 %v1255
        %v1257 = vpop.xlane.xlu0 %1256
        %v1258 = vrcp.pop %v1248
        %v1259 = vrcp.pop %v1251
        %v1260 = vrcp.pop %v1254
        %v1261 = vrcp.pop %v1257
        %v1262 = vmul.f32 %v1239, %v1258
        %v1263 = vmul.f32 %v1241, %v1259
        %v1264 = vmul.f32 %v1243, %v1260
        %v1265 = vmul.f32 %v1245, %v1261
        %1270 = vrot.lane.b32.xlu0 %v820, 96
        %v1271 = vpop.permute.xlu0 %1270
        %1272 = vrot.lane.b32.xlu0 %v826, 96
        %v1273 = vpop.permute.xlu0 %1272
        %1274 = vrot.lane.b32.xlu0 %v832, 96
        %v1275 = vpop.permute.xlu0 %1274
        %1276 = vrot.lane.b32.xlu0 %v838, 96
        %v1277 = vpop.permute.xlu0 %1276
        %v1283 = vsel %vm465, %v1262, 0
        %v1286 = vsel %vm465, %v1263, 0
        %v1289 = vsel %vm465, %v1264, 0
        %v1292 = vsel %vm465, %v1265, 0
        %1294 = vmatprep.subr.mxu0 0.0
        %1295 = vmatpush1.msra.mxu0 %v1271
        %1296 = vmatprep.subr.mxu0 0.0
        %1297 = vmatpush1.msra.mxu0 %v1273
        %1298 = vmatprep.subr.mxu0 0.0
        %1299 = vmatpush1.msra.mxu0 %v1275
        %1300 = vmatprep.subr.mxu0 0.0
        %1301 = vmatpush1.msra.mxu0 %v1277
        %1302 = vmatprep.subr.mxu0 0.0
        %1303 = vmatpush1.msra.mxu0 0.0
        %1304 = vmatprep.subr.mxu0 0.0
        %1305 = vmatpush1.msra.mxu0 0.0
        %1306 = vmatprep.subr.mxu0 0.0
        %1307 = vmatpush1.msra.mxu0 0.0
        %1308 = vmatprep.subr.mxu0 0.0
        %1309 = vmatpush1.msra.mxu0 0.0
        %1310 = vmatprep.subr.mxu0 0.0
        %1311 = vmatpush1.msra.mxu0 0.0
        %1312 = vmatprep.subr.mxu0 0.0
        %1313 = vmatpush1.msra.mxu0 0.0
        %1314 = vmatprep.subr.mxu0 0.0
        %1315 = vmatpush1.msra.mxu0 0.0
        %1316 = vmatprep.subr.mxu0 0.0
        %1317 = vmatpush1.msra.mxu0 0.0
        %1318 = vmatprep.subr.mxu0 0.0
        %1319 = vmatpush1.msra.mxu0 0.0
        %1320 = vmatprep.subr.mxu0 0.0
        %1321 = vmatpush1.msra.mxu0 0.0
        %1322 = vmatprep.subr.mxu0 0.0
        %1323 = vmatpush1.msra.mxu0 0.0
        %1324 = vmatprep.subr.mxu0 0.0
        %1325 = vmatpush1.msra.mxu0 0.0
        %1326 = vmatprep.subr.mxu0 0.0
        %1327 = vmatpush1.msra.mxu0 0.0
        %1328 = vmatprep.subr.mxu0 0.0
        %1329 = vmatpush1.msra.mxu0 0.0
        %1330 = vmatprep.subr.mxu0 0.0
        %1331 = vmatpush1.msra.mxu0 0.0
        %1332 = vmatprep.subr.mxu0 0.0
        %1333 = vmatpush1.msra.mxu0 0.0
        %1334 = vmatprep.subr.mxu0 0.0
        %1335 = vmatpush1.msra.mxu0 0.0
        %1336 = vmatprep.subr.mxu0 0.0
        %1337 = vmatpush1.msra.mxu0 0.0
        %1338 = vmatprep.subr.mxu0 0.0
        %1339 = vmatpush1.msra.mxu0 0.0
        %1340 = vmatprep.subr.mxu0 0.0
        %1341 = vmatpush1.msra.mxu0 0.0
        %1342 = vmatprep.subr.mxu0 0.0
        %1343 = vmatpush1.msra.mxu0 0.0
        %1344 = vmatprep.subr.mxu0 0.0
        %1345 = vmatpush1.msra.mxu0 0.0
        %1346 = vmatprep.subr.mxu0 0.0
        %1347 = vmatpush1.msra.mxu0 0.0
        %1348 = vmatprep.subr.mxu0 0.0
        %1349 = vmatpush1.msra.mxu0 0.0
        %1350 = vmatprep.subr.mxu0 0.0
        %1351 = vmatpush1.msra.mxu0 0.0
        %1352 = vmatprep.subr.mxu0 0.0
        %1353 = vmatpush1.msra.mxu0 0.0
        %1354 = vmatprep.subr.mxu0 0.0
        %1355 = vmatpush1.msra.mxu0 0.0
        %1356 = vmatprep.subr.mxu0 0.0
        %1357 = vmatpush1.msra.mxu0 0.0
        %1358 = vmatprep.mubr.f32.mxu0 0.0
        %1359 = vmatmul.mubr.f32.gmra.mrb[0].mxu0 %v1283
        %v1360 = vpop.f32.mrb[0].mxu0
        %v1361 = vadd.f32 0.0, %v1360
        %v1362 = vpop.f32.mrb[0].mxu0
        %1363 = vmatprep.mubr.f32.mxu0 0.0
        %1364 = vmatmul.mubr.f32.gmra.mrb[0].mxu0 %v1286
        %v1365 = vpop.f32.mrb[0].mxu0
        %v1366 = vadd.f32 0.0, %v1365
        %v1367 = vpop.f32.mrb[0].mxu0
        %1368 = vmatprep.mubr.f32.mxu0 0.0
        %1369 = vmatmul.mubr.f32.gmra.mrb[0].mxu0 %v1289
        %v1370 = vpop.f32.mrb[0].mxu0
        %v1371 = vadd.f32 0.0, %v1370
        %v1372 = vpop.f32.mrb[0].mxu0
        %1373 = vmatprep.mubr.f32.mxu0 0.0
        %1374 = vmatmul.mubr.f32.gmra.mrb[0].mxu0 %v1292
        %v1375 = vpop.f32.mrb[0].mxu0
        %v1376 = vadd.f32 0.0, %v1375
        %v1377 = vpop.f32.mrb[0].mxu0
        %1378 = vdwg.mxu0
        %s1379 = scalar_lea.vmem %s4, 64
        %v1380 = vld [vmem:[%s1379] sm:$0xff]
        %v1381 = vld [vmem:[%s1379 + $0x8] sm:$0xff]
        %v1382 = vld [vmem:[%s1379 + $0x10] sm:$0xff]
        %v1383 = vld [vmem:[%s1379 + $0x18] sm:$0xff]
        %1384 = vrot.lane.b32.xlu0 %v842, 64
        %v1385 = vpop.permute.xlu0 %1384
        %1386 = vrot.lane.b32.xlu0 %v843, 64
        %v1387 = vpop.permute.xlu0 %1386
        %1388 = vrot.lane.b32.xlu0 %v844, 64
        %v1389 = vpop.permute.xlu0 %1388
        %1390 = vrot.lane.b32.xlu0 %v845, 64
        %v1391 = vpop.permute.xlu0 %1390
        %1392 = vrot.lane.b32.xlu0 %v731, 64
        %v1393 = vpop.permute.xlu0 %1392
        %1394 = vrot.lane.b32.xlu0 %v737, 64
        %v1395 = vpop.permute.xlu0 %1394
        %1396 = vrot.lane.b32.xlu0 %v743, 64
        %v1397 = vpop.permute.xlu0 %1396
        %1398 = vrot.lane.b32.xlu0 %v749, 64
        %v1399 = vpop.permute.xlu0 %1398
        %v1400 = vsel %vm465, %v1385, 0
        %v1402 = vsel %vm465, %v1387, 0
        %v1404 = vsel %vm465, %v1389, 0
        %v1406 = vsel %vm465, %v1391, 0
        %v1408 = vsel %vm465, %v1393, 0
        %v1410 = vsel %vm465, %v1395, 0
        %v1412 = vsel %vm465, %v1397, 0
        %v1414 = vsel %vm465, %v1399, 0
        %1416 = vmatprep.subr.mxu0 0.0
        %1417 = vmatpush1.xpose.msra.mxu0 %v1408
        %1418 = vmatprep.subr.mxu0 0.0
        %1419 = vmatpush1.xpose.msra.mxu0 %v1410
        %1420 = vmatprep.subr.mxu0 0.0
        %1421 = vmatpush1.xpose.msra.mxu0 %v1412
        %1422 = vmatprep.subr.mxu0 0.0
        %1423 = vmatpush1.xpose.msra.mxu0 %v1414
        %1424 = vmatprep.subr.mxu0 0.0
        %1425 = vmatpush1.xpose.msra.mxu0 0.0
        %1426 = vmatprep.subr.mxu0 0.0
        %1427 = vmatpush1.xpose.msra.mxu0 0.0
        %1428 = vmatprep.subr.mxu0 0.0
        %1429 = vmatpush1.xpose.msra.mxu0 0.0
        %1430 = vmatprep.subr.mxu0 0.0
        %1431 = vmatpush1.xpose.msra.mxu0 0.0
        %1432 = vmatprep.subr.mxu0 0.0
        %1433 = vmatpush1.xpose.msra.mxu0 0.0
        %1434 = vmatprep.subr.mxu0 0.0
        %1435 = vmatpush1.xpose.msra.mxu0 0.0
        %1436 = vmatprep.subr.mxu0 0.0
        %1437 = vmatpush1.xpose.msra.mxu0 0.0
        %1438 = vmatprep.subr.mxu0 0.0
        %1439 = vmatpush1.xpose.msra.mxu0 0.0
        %1440 = vmatprep.subr.mxu0 0.0
        %1441 = vmatpush1.xpose.msra.mxu0 0.0
        %1442 = vmatprep.subr.mxu0 0.0
        %1443 = vmatpush1.xpose.msra.mxu0 0.0
        %1444 = vmatprep.subr.mxu0 0.0
        %1445 = vmatpush1.xpose.msra.mxu0 0.0
        %1446 = vmatprep.subr.mxu0 0.0
        %1447 = vmatpush1.xpose.msra.mxu0 0.0
        %1448 = vmatprep.subr.mxu0 0.0
        %1449 = vmatpush1.xpose.msra.mxu0 0.0
        %1450 = vmatprep.subr.mxu0 0.0
        %1451 = vmatpush1.xpose.msra.mxu0 0.0
        %1452 = vmatprep.subr.mxu0 0.0
        %1453 = vmatpush1.xpose.msra.mxu0 0.0
        %1454 = vmatprep.subr.mxu0 0.0
        %1455 = vmatpush1.xpose.msra.mxu0 0.0
        %1456 = vmatprep.subr.mxu0 0.0
        %1457 = vmatpush1.xpose.msra.mxu0 0.0
        %1458 = vmatprep.subr.mxu0 0.0
        %1459 = vmatpush1.xpose.msra.mxu0 0.0
        %1460 = vmatprep.subr.mxu0 0.0
        %1461 = vmatpush1.xpose.msra.mxu0 0.0
        %1462 = vmatprep.subr.mxu0 0.0
        %1463 = vmatpush1.xpose.msra.mxu0 0.0
        %1464 = vmatprep.subr.mxu0 0.0
        %1465 = vmatpush1.xpose.msra.mxu0 0.0
        %1466 = vmatprep.subr.mxu0 0.0
        %1467 = vmatpush1.xpose.msra.mxu0 0.0
        %1468 = vmatprep.subr.mxu0 0.0
        %1469 = vmatpush1.xpose.msra.mxu0 0.0
        %1470 = vmatprep.subr.mxu0 0.0
        %1471 = vmatpush1.xpose.msra.mxu0 0.0
        %1472 = vmatprep.subr.mxu0 0.0
        %1473 = vmatpush1.xpose.msra.mxu0 0.0
        %1474 = vmatprep.subr.mxu0 0.0
        %1475 = vmatpush1.xpose.msra.mxu0 0.0
        %1476 = vmatprep.subr.mxu0 0.0
        %1477 = vmatpush1.xpose.msra.mxu0 0.0
        %1478 = vmatprep.subr.mxu0 0.0
        %1479 = vmatpush1.xpose.msra.mxu0 0.0
        %1480 = vmatprep.mubr.f32.mxu0 0.0
        %1481 = vmatmul.mubr.f32.gmra.mrb[0].mxu0 %v1400
        %v1482 = vpop.f32.mrb[0].mxu0
        %v1483 = vadd.f32 %v1380, %v1482
        %v1484 = vpop.f32.mrb[0].mxu0
        %1485 = vmatprep.mubr.f32.mxu0 0.0
        %1486 = vmatmul.mubr.f32.gmra.mrb[0].mxu0 %v1402
        %v1487 = vpop.f32.mrb[0].mxu0
        %v1488 = vadd.f32 %v1381, %v1487
        %v1489 = vpop.f32.mrb[0].mxu0
        %1490 = vmatprep.mubr.f32.mxu0 0.0
        %1491 = vmatmul.mubr.f32.gmra.mrb[0].mxu0 %v1404
        %v1492 = vpop.f32.mrb[0].mxu0
        %v1493 = vadd.f32 %v1382, %v1492
        %v1494 = vpop.f32.mrb[0].mxu0
        %1495 = vmatprep.mubr.f32.mxu0 0.0
        %1496 = vmatmul.mubr.f32.gmra.mrb[0].mxu0 %v1406
        %v1497 = vpop.f32.mrb[0].mxu0
        %v1498 = vadd.f32 %v1383, %v1497
        %v1499 = vpop.f32.mrb[0].mxu0
        %1500 = vdwg.mxu0
        %v1501 = vsel %vm465, %v1483, -inf
        %1502 = vmax.xlane.f32.xlu0 %v1501
        %v1503 = vpop.xlane.xlu0 %1502
        %v1504 = vsel %vm465, %v1488, -inf
        %1505 = vmax.xlane.f32.xlu0 %v1504
        %v1506 = vpop.xlane.xlu0 %1505
        %v1507 = vsel %vm465, %v1493, -inf
        %1508 = vmax.xlane.f32.xlu0 %v1507
        %v1509 = vpop.xlane.xlu0 %1508
        %v1510 = vsel %vm465, %v1498, -inf
        %1511 = vmax.xlane.f32.xlu0 %v1510
        %v1512 = vpop.xlane.xlu0 %1511
        %v1513 = vsub.f32 %v1483, %v1503
        %v1514 = vsub.f32 %v1488, %v1506
        %v1515 = vsub.f32 %v1493, %v1509
        %v1516 = vsub.f32 %v1498, %v1512
        %v1517 = vmul.f32 %v1513, 1.442695
        %v1518 = vpow.pop %v1517
        %v1519 = vmul.f32 %v1514, 1.442695
        %v1520 = vpow.pop %v1519
        %v1521 = vmul.f32 %v1515, 1.442695
        %v1522 = vpow.pop %v1521
        %v1523 = vmul.f32 %v1516, 1.442695
        %v1524 = vpow.pop %v1523
        %v1525 = vsel %vm465, %v1518, 0.0
        %1526 = vadd.xlane.f32.xlu0 %v1525
        %v1527 = vpop.xlane.xlu0 %1526
        %v1528 = vsel %vm465, %v1520, 0.0
        %1529 = vadd.xlane.f32.xlu0 %v1528
        %v1530 = vpop.xlane.xlu0 %1529
        %v1531 = vsel %vm465, %v1522, 0.0
        %1532 = vadd.xlane.f32.xlu0 %v1531
        %v1533 = vpop.xlane.xlu0 %1532
        %v1534 = vsel %vm465, %v1524, 0.0
        %1535 = vadd.xlane.f32.xlu0 %v1534
        %v1536 = vpop.xlane.xlu0 %1535
        %v1537 = vrcp.pop %v1527
        %v1538 = vrcp.pop %v1530
        %v1539 = vrcp.pop %v1533
        %v1540 = vrcp.pop %v1536
        %v1541 = vmul.f32 %v1518, %v1537
        %v1542 = vmul.f32 %v1520, %v1538
        %v1543 = vmul.f32 %v1522, %v1539
        %v1544 = vmul.f32 %v1524, %v1540
        %1545 = vrot.lane.b32.xlu0 %v820, 64
        %v1546 = vpop.permute.xlu0 %1545
        %1547 = vrot.lane.b32.xlu0 %v826, 64
        %v1548 = vpop.permute.xlu0 %1547
        %1549 = vrot.lane.b32.xlu0 %v832, 64
        %v1550 = vpop.permute.xlu0 %1549
        %1551 = vrot.lane.b32.xlu0 %v838, 64
        %v1552 = vpop.permute.xlu0 %1551
        %v1558 = vsel %vm465, %v1541, 0
        %v1561 = vsel %vm465, %v1542, 0
        %v1564 = vsel %vm465, %v1543, 0
        %v1567 = vsel %vm465, %v1544, 0
        %1569 = vmatprep.subr.mxu0 0.0
        %1570 = vmatpush1.msra.mxu0 %v1546
        %1571 = vmatprep.subr.mxu0 0.0
        %1572 = vmatpush1.msra.mxu0 %v1548
        %1573 = vmatprep.subr.mxu0 0.0
        %1574 = vmatpush1.msra.mxu0 %v1550
        %1575 = vmatprep.subr.mxu0 0.0
        %1576 = vmatpush1.msra.mxu0 %v1552
        %1577 = vmatprep.subr.mxu0 0.0
        %1578 = vmatpush1.msra.mxu0 0.0
        %1579 = vmatprep.subr.mxu0 0.0
        %1580 = vmatpush1.msra.mxu0 0.0
        %1581 = vmatprep.subr.mxu0 0.0
        %1582 = vmatpush1.msra.mxu0 0.0
        %1583 = vmatprep.subr.mxu0 0.0
        %1584 = vmatpush1.msra.mxu0 0.0
        %1585 = vmatprep.subr.mxu0 0.0
        %1586 = vmatpush1.msra.mxu0 0.0
        %1587 = vmatprep.subr.mxu0 0.0
        %1588 = vmatpush1.msra.mxu0 0.0
        %1589 = vmatprep.subr.mxu0 0.0
        %1590 = vmatpush1.msra.mxu0 0.0
        %1591 = vmatprep.subr.mxu0 0.0
        %1592 = vmatpush1.msra.mxu0 0.0
        %1593 = vmatprep.subr.mxu0 0.0
        %1594 = vmatpush1.msra.mxu0 0.0
        %1595 = vmatprep.subr.mxu0 0.0
        %1596 = vmatpush1.msra.mxu0 0.0
        %1597 = vmatprep.subr.mxu0 0.0
        %1598 = vmatpush1.msra.mxu0 0.0
        %1599 = vmatprep.subr.mxu0 0.0
        %1600 = vmatpush1.msra.mxu0 0.0
        %1601 = vmatprep.subr.mxu0 0.0
        %1602 = vmatpush1.msra.mxu0 0.0
        %1603 = vmatprep.subr.mxu0 0.0
        %1604 = vmatpush1.msra.mxu0 0.0
        %1605 = vmatprep.subr.mxu0 0.0
        %1606 = vmatpush1.msra.mxu0 0.0
        %1607 = vmatprep.subr.mxu0 0.0
        %1608 = vmatpush1.msra.mxu0 0.0
        %1609 = vmatprep.subr.mxu0 0.0
        %1610 = vmatpush1.msra.mxu0 0.0
        %1611 = vmatprep.subr.mxu0 0.0
        %1612 = vmatpush1.msra.mxu0 0.0
        %1613 = vmatprep.subr.mxu0 0.0
        %1614 = vmatpush1.msra.mxu0 0.0
        %1615 = vmatprep.subr.mxu0 0.0
        %1616 = vmatpush1.msra.mxu0 0.0
        %1617 = vmatprep.subr.mxu0 0.0
        %1618 = vmatpush1.msra.mxu0 0.0
        %1619 = vmatprep.subr.mxu0 0.0
        %1620 = vmatpush1.msra.mxu0 0.0
        %1621 = vmatprep.subr.mxu0 0.0
        %1622 = vmatpush1.msra.mxu0 0.0
        %1623 = vmatprep.subr.mxu0 0.0
        %1624 = vmatpush1.msra.mxu0 0.0
        %1625 = vmatprep.subr.mxu0 0.0
        %1626 = vmatpush1.msra.mxu0 0.0
        %1627 = vmatprep.subr.mxu0 0.0
        %1628 = vmatpush1.msra.mxu0 0.0
        %1629 = vmatprep.subr.mxu0 0.0
        %1630 = vmatpush1.msra.mxu0 0.0
        %1631 = vmatprep.subr.mxu0 0.0
        %1632 = vmatpush1.msra.mxu0 0.0
        %1633 = vmatprep.mubr.f32.mxu0 0.0
        %1634 = vmatmul.mubr.f32.gmra.mrb[0].mxu0 %v1558
        %v1635 = vpop.f32.mrb[0].mxu0
        %v1636 = vadd.f32 0.0, %v1635
        %v1637 = vpop.f32.mrb[0].mxu0
        %1638 = vmatprep.mubr.f32.mxu0 0.0
        %1639 = vmatmul.mubr.f32.gmra.mrb[0].mxu0 %v1561
        %v1640 = vpop.f32.mrb[0].mxu0
        %v1641 = vadd.f32 0.0, %v1640
        %v1642 = vpop.f32.mrb[0].mxu0
        %1643 = vmatprep.mubr.f32.mxu0 0.0
        %1644 = vmatmul.mubr.f32.gmra.mrb[0].mxu0 %v1564
        %v1645 = vpop.f32.mrb[0].mxu0
        %v1646 = vadd.f32 0.0, %v1645
        %v1647 = vpop.f32.mrb[0].mxu0
        %1648 = vmatprep.mubr.f32.mxu0 0.0
        %1649 = vmatmul.mubr.f32.gmra.mrb[0].mxu0 %v1567
        %v1650 = vpop.f32.mrb[0].mxu0
        %v1651 = vadd.f32 0.0, %v1650
        %v1652 = vpop.f32.mrb[0].mxu0
        %1653 = vdwg.mxu0
        %s1654 = scalar_lea.vmem %s4, 96
        %v1655 = vld [vmem:[%s1654] sm:$0xff]
        %v1656 = vld [vmem:[%s1654 + $0x8] sm:$0xff]
        %v1657 = vld [vmem:[%s1654 + $0x10] sm:$0xff]
        %v1658 = vld [vmem:[%s1654 + $0x18] sm:$0xff]
        %1659 = vrot.lane.b32.xlu0 %v842, 32
        %v1660 = vpop.permute.xlu0 %1659
        %1661 = vrot.lane.b32.xlu0 %v843, 32
        %v1662 = vpop.permute.xlu0 %1661
        %1663 = vrot.lane.b32.xlu0 %v844, 32
        %v1664 = vpop.permute.xlu0 %1663
        %1665 = vrot.lane.b32.xlu0 %v845, 32
        %v1666 = vpop.permute.xlu0 %1665
        %1667 = vrot.lane.b32.xlu0 %v731, 32
        %v1668 = vpop.permute.xlu0 %1667
        %1669 = vrot.lane.b32.xlu0 %v737, 32
        %v1670 = vpop.permute.xlu0 %1669
        %1671 = vrot.lane.b32.xlu0 %v743, 32
        %v1672 = vpop.permute.xlu0 %1671
        %1673 = vrot.lane.b32.xlu0 %v749, 32
        %v1674 = vpop.permute.xlu0 %1673
        %v1675 = vsel %vm465, %v1660, 0
        %v1677 = vsel %vm465, %v1662, 0
        %v1679 = vsel %vm465, %v1664, 0
        %v1681 = vsel %vm465, %v1666, 0
        %v1683 = vsel %vm465, %v1668, 0
        %v1685 = vsel %vm465, %v1670, 0
        %v1687 = vsel %vm465, %v1672, 0
        %v1689 = vsel %vm465, %v1674, 0
        %1691 = vmatprep.subr.mxu0 0.0
        %1692 = vmatpush1.xpose.msra.mxu0 %v1683
        %1693 = vmatprep.subr.mxu0 0.0
        %1694 = vmatpush1.xpose.msra.mxu0 %v1685
        %1695 = vmatprep.subr.mxu0 0.0
        %1696 = vmatpush1.xpose.msra.mxu0 %v1687
        %1697 = vmatprep.subr.mxu0 0.0
        %1698 = vmatpush1.xpose.msra.mxu0 %v1689
        %1699 = vmatprep.subr.mxu0 0.0
        %1700 = vmatpush1.xpose.msra.mxu0 0.0
        %1701 = vmatprep.subr.mxu0 0.0
        %1702 = vmatpush1.xpose.msra.mxu0 0.0
        %1703 = vmatprep.subr.mxu0 0.0
        %1704 = vmatpush1.xpose.msra.mxu0 0.0
        %1705 = vmatprep.subr.mxu0 0.0
        %1706 = vmatpush1.xpose.msra.mxu0 0.0
        %1707 = vmatprep.subr.mxu0 0.0
        %1708 = vmatpush1.xpose.msra.mxu0 0.0
        %1709 = vmatprep.subr.mxu0 0.0
        %1710 = vmatpush1.xpose.msra.mxu0 0.0
        %1711 = vmatprep.subr.mxu0 0.0
        %1712 = vmatpush1.xpose.msra.mxu0 0.0
        %1713 = vmatprep.subr.mxu0 0.0
        %1714 = vmatpush1.xpose.msra.mxu0 0.0
        %1715 = vmatprep.subr.mxu0 0.0
        %1716 = vmatpush1.xpose.msra.mxu0 0.0
        %1717 = vmatprep.subr.mxu0 0.0
        %1718 = vmatpush1.xpose.msra.mxu0 0.0
        %1719 = vmatprep.subr.mxu0 0.0
        %1720 = vmatpush1.xpose.msra.mxu0 0.0
        %1721 = vmatprep.subr.mxu0 0.0
        %1722 = vmatpush1.xpose.msra.mxu0 0.0
        %1723 = vmatprep.subr.mxu0 0.0
        %1724 = vmatpush1.xpose.msra.mxu0 0.0
        %1725 = vmatprep.subr.mxu0 0.0
        %1726 = vmatpush1.xpose.msra.mxu0 0.0
        %1727 = vmatprep.subr.mxu0 0.0
        %1728 = vmatpush1.xpose.msra.mxu0 0.0
        %1729 = vmatprep.subr.mxu0 0.0
        %1730 = vmatpush1.xpose.msra.mxu0 0.0
        %1731 = vmatprep.subr.mxu0 0.0
        %1732 = vmatpush1.xpose.msra.mxu0 0.0
        %1733 = vmatprep.subr.mxu0 0.0
        %1734 = vmatpush1.xpose.msra.mxu0 0.0
        %1735 = vmatprep.subr.mxu0 0.0
        %1736 = vmatpush1.xpose.msra.mxu0 0.0
        %1737 = vmatprep.subr.mxu0 0.0
        %1738 = vmatpush1.xpose.msra.mxu0 0.0
        %1739 = vmatprep.subr.mxu0 0.0
        %1740 = vmatpush1.xpose.msra.mxu0 0.0
        %1741 = vmatprep.subr.mxu0 0.0
        %1742 = vmatpush1.xpose.msra.mxu0 0.0
        %1743 = vmatprep.subr.mxu0 0.0
        %1744 = vmatpush1.xpose.msra.mxu0 0.0
        %1745 = vmatprep.subr.mxu0 0.0
        %1746 = vmatpush1.xpose.msra.mxu0 0.0
        %1747 = vmatprep.subr.mxu0 0.0
        %1748 = vmatpush1.xpose.msra.mxu0 0.0
        %1749 = vmatprep.subr.mxu0 0.0
        %1750 = vmatpush1.xpose.msra.mxu0 0.0
        %1751 = vmatprep.subr.mxu0 0.0
        %1752 = vmatpush1.xpose.msra.mxu0 0.0
        %1753 = vmatprep.subr.mxu0 0.0
        %1754 = vmatpush1.xpose.msra.mxu0 0.0
        %1755 = vmatprep.mubr.f32.mxu0 0.0
        %1756 = vmatmul.mubr.f32.gmra.mrb[0].mxu0 %v1675
        %v1757 = vpop.f32.mrb[0].mxu0
        %v1758 = vadd.f32 %v1655, %v1757
        %v1759 = vpop.f32.mrb[0].mxu0
        %1760 = vmatprep.mubr.f32.mxu0 0.0
        %1761 = vmatmul.mubr.f32.gmra.mrb[0].mxu0 %v1677
        %v1762 = vpop.f32.mrb[0].mxu0
        %v1763 = vadd.f32 %v1656, %v1762
        %v1764 = vpop.f32.mrb[0].mxu0
        %1765 = vmatprep.mubr.f32.mxu0 0.0
        %1766 = vmatmul.mubr.f32.gmra.mrb[0].mxu0 %v1679
        %v1767 = vpop.f32.mrb[0].mxu0
        %v1768 = vadd.f32 %v1657, %v1767
        %v1769 = vpop.f32.mrb[0].mxu0
        %1770 = vmatprep.mubr.f32.mxu0 0.0
        %1771 = vmatmul.mubr.f32.gmra.mrb[0].mxu0 %v1681
        %v1772 = vpop.f32.mrb[0].mxu0
        %v1773 = vadd.f32 %v1658, %v1772
        %v1774 = vpop.f32.mrb[0].mxu0
        %1775 = vdwg.mxu0
        %v1776 = vsel %vm465, %v1758, -inf
        %1777 = vmax.xlane.f32.xlu0 %v1776
        %v1778 = vpop.xlane.xlu0 %1777
        %v1779 = vsel %vm465, %v1763, -inf
        %1780 = vmax.xlane.f32.xlu0 %v1779
        %v1781 = vpop.xlane.xlu0 %1780
        %v1782 = vsel %vm465, %v1768, -inf
        %1783 = vmax.xlane.f32.xlu0 %v1782
        %v1784 = vpop.xlane.xlu0 %1783
        %v1785 = vsel %vm465, %v1773, -inf
        %1786 = vmax.xlane.f32.xlu0 %v1785
        %v1787 = vpop.xlane.xlu0 %1786
        %v1788 = vsub.f32 %v1758, %v1778
        %v1789 = vsub.f32 %v1763, %v1781
        %v1790 = vsub.f32 %v1768, %v1784
        %v1791 = vsub.f32 %v1773, %v1787
        %v1792 = vmul.f32 %v1788, 1.442695
        %v1793 = vpow.pop %v1792
        %v1794 = vmul.f32 %v1789, 1.442695
        %v1795 = vpow.pop %v1794
        %v1796 = vmul.f32 %v1790, 1.442695
        %v1797 = vpow.pop %v1796
        %v1798 = vmul.f32 %v1791, 1.442695
        %v1799 = vpow.pop %v1798
        %v1800 = vsel %vm465, %v1793, 0.0
        %1801 = vadd.xlane.f32.xlu0 %v1800
        %v1802 = vpop.xlane.xlu0 %1801
        %v1803 = vsel %vm465, %v1795, 0.0
        %1804 = vadd.xlane.f32.xlu0 %v1803
        %v1805 = vpop.xlane.xlu0 %1804
        %v1806 = vsel %vm465, %v1797, 0.0
        %1807 = vadd.xlane.f32.xlu0 %v1806
        %v1808 = vpop.xlane.xlu0 %1807
        %v1809 = vsel %vm465, %v1799, 0.0
        %1810 = vadd.xlane.f32.xlu0 %v1809
        %v1811 = vpop.xlane.xlu0 %1810
        %v1812 = vrcp.pop %v1802
        %v1813 = vrcp.pop %v1805
        %v1814 = vrcp.pop %v1808
        %v1815 = vrcp.pop %v1811
        %v1816 = vmul.f32 %v1793, %v1812
        %v1817 = vmul.f32 %v1795, %v1813
        %v1818 = vmul.f32 %v1797, %v1814
        %v1819 = vmul.f32 %v1799, %v1815
        %1820 = vrot.lane.b32.xlu0 %v820, 32
        %v1821 = vpop.permute.xlu0 %1820
        %1822 = vrot.lane.b32.xlu0 %v826, 32
        %v1823 = vpop.permute.xlu0 %1822
        %1824 = vrot.lane.b32.xlu0 %v832, 32
        %v1825 = vpop.permute.xlu0 %1824
        %1826 = vrot.lane.b32.xlu0 %v838, 32
        %v1827 = vpop.permute.xlu0 %1826
        %v1833 = vsel %vm465, %v1816, 0
        %v1836 = vsel %vm465, %v1817, 0
        %v1839 = vsel %vm465, %v1818, 0
        %v1842 = vsel %vm465, %v1819, 0
        %1844 = vmatprep.subr.mxu0 0.0
        %1845 = vmatpush1.msra.mxu0 %v1821
        %1846 = vmatprep.subr.mxu0 0.0
        %1847 = vmatpush1.msra.mxu0 %v1823
        %1848 = vmatprep.subr.mxu0 0.0
        %1849 = vmatpush1.msra.mxu0 %v1825
        %1850 = vmatprep.subr.mxu0 0.0
        %1851 = vmatpush1.msra.mxu0 %v1827
        %1852 = vmatprep.subr.mxu0 0.0
        %1853 = vmatpush1.msra.mxu0 0.0
        %1854 = vmatprep.subr.mxu0 0.0
        %1855 = vmatpush1.msra.mxu0 0.0
        %1856 = vmatprep.subr.mxu0 0.0
        %1857 = vmatpush1.msra.mxu0 0.0
        %1858 = vmatprep.subr.mxu0 0.0
        %1859 = vmatpush1.msra.mxu0 0.0
        %1860 = vmatprep.subr.mxu0 0.0
        %1861 = vmatpush1.msra.mxu0 0.0
        %1862 = vmatprep.subr.mxu0 0.0
        %1863 = vmatpush1.msra.mxu0 0.0
        %1864 = vmatprep.subr.mxu0 0.0
        %1865 = vmatpush1.msra.mxu0 0.0
        %1866 = vmatprep.subr.mxu0 0.0
        %1867 = vmatpush1.msra.mxu0 0.0
        %1868 = vmatprep.subr.mxu0 0.0
        %1869 = vmatpush1.msra.mxu0 0.0
        %1870 = vmatprep.subr.mxu0 0.0
        %1871 = vmatpush1.msra.mxu0 0.0
        %1872 = vmatprep.subr.mxu0 0.0
        %1873 = vmatpush1.msra.mxu0 0.0
        %1874 = vmatprep.subr.mxu0 0.0
        %1875 = vmatpush1.msra.mxu0 0.0
        %1876 = vmatprep.subr.mxu0 0.0
        %1877 = vmatpush1.msra.mxu0 0.0
        %1878 = vmatprep.subr.mxu0 0.0
        %1879 = vmatpush1.msra.mxu0 0.0
        %1880 = vmatprep.subr.mxu0 0.0
        %1881 = vmatpush1.msra.mxu0 0.0
        %1882 = vmatprep.subr.mxu0 0.0
        %1883 = vmatpush1.msra.mxu0 0.0
        %1884 = vmatprep.subr.mxu0 0.0
        %1885 = vmatpush1.msra.mxu0 0.0
        %1886 = vmatprep.subr.mxu0 0.0
        %1887 = vmatpush1.msra.mxu0 0.0
        %1888 = vmatprep.subr.mxu0 0.0
        %1889 = vmatpush1.msra.mxu0 0.0
        %1890 = vmatprep.subr.mxu0 0.0
        %1891 = vmatpush1.msra.mxu0 0.0
        %1892 = vmatprep.subr.mxu0 0.0
        %1893 = vmatpush1.msra.mxu0 0.0
        %1894 = vmatprep.subr.mxu0 0.0
        %1895 = vmatpush1.msra.mxu0 0.0
        %1896 = vmatprep.subr.mxu0 0.0
        %1897 = vmatpush1.msra.mxu0 0.0
        %1898 = vmatprep.subr.mxu0 0.0
        %1899 = vmatpush1.msra.mxu0 0.0
        %1900 = vmatprep.subr.mxu0 0.0
        %1901 = vmatpush1.msra.mxu0 0.0
        %1902 = vmatprep.subr.mxu0 0.0
        %1903 = vmatpush1.msra.mxu0 0.0
        %1904 = vmatprep.subr.mxu0 0.0
        %1905 = vmatpush1.msra.mxu0 0.0
        %1906 = vmatprep.subr.mxu0 0.0
        %1907 = vmatpush1.msra.mxu0 0.0
        %1908 = vmatprep.mubr.f32.mxu0 0.0
        %1909 = vmatmul.mubr.f32.gmra.mrb[0].mxu0 %v1833
        %v1910 = vpop.f32.mrb[0].mxu0
        %v1911 = vadd.f32 0.0, %v1910
        %v1912 = vpop.f32.mrb[0].mxu0
        %1913 = vmatprep.mubr.f32.mxu0 0.0
        %1914 = vmatmul.mubr.f32.gmra.mrb[0].mxu0 %v1836
        %v1915 = vpop.f32.mrb[0].mxu0
        %v1916 = vadd.f32 0.0, %v1915
        %v1917 = vpop.f32.mrb[0].mxu0
        %1918 = vmatprep.mubr.f32.mxu0 0.0
        %1919 = vmatmul.mubr.f32.gmra.mrb[0].mxu0 %v1839
        %v1920 = vpop.f32.mrb[0].mxu0
        %v1921 = vadd.f32 0.0, %v1920
        %v1922 = vpop.f32.mrb[0].mxu0
        %1923 = vmatprep.mubr.f32.mxu0 0.0
        %1924 = vmatmul.mubr.f32.gmra.mrb[0].mxu0 %v1842
        %v1925 = vpop.f32.mrb[0].mxu0
        %v1926 = vadd.f32 0.0, %v1925
        %v1927 = vpop.f32.mrb[0].mxu0
        %1928 = vdwg.mxu0
        %v1929 = vmul.f32 %v644, 0.17677669
        %v1930 = vmul.f32 %v650, 0.17677669
        %v1931 = vmul.f32 %v656, 0.17677669
        %v1932 = vmul.f32 %v662, 0.17677669
        %s1933 = scalar_lea.vmem %s4, 128
        %v1934 = vld [vmem:[%s1933] sm:$0xff]
        %v1935 = vld [vmem:[%s1933 + $0x8] sm:$0xff]
        %v1936 = vld [vmem:[%s1933 + $0x10] sm:$0xff]
        %v1937 = vld [vmem:[%s1933 + $0x18] sm:$0xff]
        %v1939 = vsel %vm465, %v1929, 0
        %v1942 = vsel %vm465, %v1930, 0
        %v1945 = vsel %vm465, %v1931, 0
        %v1948 = vsel %vm465, %v1932, 0
        %v1951 = vsel %vm465, %v733, 0
        %v1954 = vsel %vm465, %v739, 0
        %v1957 = vsel %vm465, %v745, 0
        %v1960 = vsel %vm465, %v751, 0
        %1962 = vmatprep.subr.mxu0 0.0
        %1963 = vmatpush1.xpose.msra.mxu0 %v1951
        %1964 = vmatprep.subr.mxu0 0.0
        %1965 = vmatpush1.xpose.msra.mxu0 %v1954
        %1966 = vmatprep.subr.mxu0 0.0
        %1967 = vmatpush1.xpose.msra.mxu0 %v1957
        %1968 = vmatprep.subr.mxu0 0.0
        %1969 = vmatpush1.xpose.msra.mxu0 %v1960
        %1970 = vmatprep.subr.mxu0 0.0
        %1971 = vmatpush1.xpose.msra.mxu0 0.0
        %1972 = vmatprep.subr.mxu0 0.0
        %1973 = vmatpush1.xpose.msra.mxu0 0.0
        %1974 = vmatprep.subr.mxu0 0.0
        %1975 = vmatpush1.xpose.msra.mxu0 0.0
        %1976 = vmatprep.subr.mxu0 0.0
        %1977 = vmatpush1.xpose.msra.mxu0 0.0
        %1978 = vmatprep.subr.mxu0 0.0
        %1979 = vmatpush1.xpose.msra.mxu0 0.0
        %1980 = vmatprep.subr.mxu0 0.0
        %1981 = vmatpush1.xpose.msra.mxu0 0.0
        %1982 = vmatprep.subr.mxu0 0.0
        %1983 = vmatpush1.xpose.msra.mxu0 0.0
        %1984 = vmatprep.subr.mxu0 0.0
        %1985 = vmatpush1.xpose.msra.mxu0 0.0
        %1986 = vmatprep.subr.mxu0 0.0
        %1987 = vmatpush1.xpose.msra.mxu0 0.0
        %1988 = vmatprep.subr.mxu0 0.0
        %1989 = vmatpush1.xpose.msra.mxu0 0.0
        %1990 = vmatprep.subr.mxu0 0.0
        %1991 = vmatpush1.xpose.msra.mxu0 0.0
        %1992 = vmatprep.subr.mxu0 0.0
        %1993 = vmatpush1.xpose.msra.mxu0 0.0
        %1994 = vmatprep.subr.mxu0 0.0
        %1995 = vmatpush1.xpose.msra.mxu0 0.0
        %1996 = vmatprep.subr.mxu0 0.0
        %1997 = vmatpush1.xpose.msra.mxu0 0.0
        %1998 = vmatprep.subr.mxu0 0.0
        %1999 = vmatpush1.xpose.msra.mxu0 0.0
        %2000 = vmatprep.subr.mxu0 0.0
        %2001 = vmatpush1.xpose.msra.mxu0 0.0
        %2002 = vmatprep.subr.mxu0 0.0
        %2003 = vmatpush1.xpose.msra.mxu0 0.0
        %2004 = vmatprep.subr.mxu0 0.0
        %2005 = vmatpush1.xpose.msra.mxu0 0.0
        %2006 = vmatprep.subr.mxu0 0.0
        %2007 = vmatpush1.xpose.msra.mxu0 0.0
        %2008 = vmatprep.subr.mxu0 0.0
        %2009 = vmatpush1.xpose.msra.mxu0 0.0
        %2010 = vmatprep.subr.mxu0 0.0
        %2011 = vmatpush1.xpose.msra.mxu0 0.0
        %2012 = vmatprep.subr.mxu0 0.0
        %2013 = vmatpush1.xpose.msra.mxu0 0.0
        %2014 = vmatprep.subr.mxu0 0.0
        %2015 = vmatpush1.xpose.msra.mxu0 0.0
        %2016 = vmatprep.subr.mxu0 0.0
        %2017 = vmatpush1.xpose.msra.mxu0 0.0
        %2018 = vmatprep.subr.mxu0 0.0
        %2019 = vmatpush1.xpose.msra.mxu0 0.0
        %2020 = vmatprep.subr.mxu0 0.0
        %2021 = vmatpush1.xpose.msra.mxu0 0.0
        %2022 = vmatprep.subr.mxu0 0.0
        %2023 = vmatpush1.xpose.msra.mxu0 0.0
        %2024 = vmatprep.subr.mxu0 0.0
        %2025 = vmatpush1.xpose.msra.mxu0 0.0
        %2026 = vmatprep.mubr.f32.mxu0 0.0
        %2027 = vmatmul.mubr.f32.gmra.mrb[0].mxu0 %v1939
        %v2028 = vpop.f32.mrb[0].mxu0
        %v2029 = vadd.f32 %v1934, %v2028
        %v2030 = vpop.f32.mrb[0].mxu0
        %2031 = vmatprep.mubr.f32.mxu0 0.0
        %2032 = vmatmul.mubr.f32.gmra.mrb[0].mxu0 %v1942
        %v2033 = vpop.f32.mrb[0].mxu0
        %v2034 = vadd.f32 %v1935, %v2033
        %v2035 = vpop.f32.mrb[0].mxu0
        %2036 = vmatprep.mubr.f32.mxu0 0.0
        %2037 = vmatmul.mubr.f32.gmra.mrb[0].mxu0 %v1945
        %v2038 = vpop.f32.mrb[0].mxu0
        %v2039 = vadd.f32 %v1936, %v2038
        %v2040 = vpop.f32.mrb[0].mxu0
        %2041 = vmatprep.mubr.f32.mxu0 0.0
        %2042 = vmatmul.mubr.f32.gmra.mrb[0].mxu0 %v1948
        %v2043 = vpop.f32.mrb[0].mxu0
        %v2044 = vadd.f32 %v1937, %v2043
        %v2045 = vpop.f32.mrb[0].mxu0
        %2046 = vdwg.mxu0
        %v2047 = vsel %vm465, %v2029, -inf
        %2048 = vmax.xlane.f32.xlu0 %v2047
        %v2049 = vpop.xlane.xlu0 %2048
        %v2050 = vsel %vm465, %v2034, -inf
        %2051 = vmax.xlane.f32.xlu0 %v2050
        %v2052 = vpop.xlane.xlu0 %2051
        %v2053 = vsel %vm465, %v2039, -inf
        %2054 = vmax.xlane.f32.xlu0 %v2053
        %v2055 = vpop.xlane.xlu0 %2054
        %v2056 = vsel %vm465, %v2044, -inf
        %2057 = vmax.xlane.f32.xlu0 %v2056
        %v2058 = vpop.xlane.xlu0 %2057
        %v2059 = vsub.f32 %v2029, %v2049
        %v2060 = vsub.f32 %v2034, %v2052
        %v2061 = vsub.f32 %v2039, %v2055
        %v2062 = vsub.f32 %v2044, %v2058
        %v2063 = vmul.f32 %v2059, 1.442695
        %v2064 = vpow.pop %v2063
        %v2065 = vmul.f32 %v2060, 1.442695
        %v2066 = vpow.pop %v2065
        %v2067 = vmul.f32 %v2061, 1.442695
        %v2068 = vpow.pop %v2067
        %v2069 = vmul.f32 %v2062, 1.442695
        %v2070 = vpow.pop %v2069
        %v2071 = vsel %vm465, %v2064, 0.0
        %2072 = vadd.xlane.f32.xlu0 %v2071
        %v2073 = vpop.xlane.xlu0 %2072
        %v2074 = vsel %vm465, %v2066, 0.0
        %2075 = vadd.xlane.f32.xlu0 %v2074
        %v2076 = vpop.xlane.xlu0 %2075
        %v2077 = vsel %vm465, %v2068, 0.0
        %2078 = vadd.xlane.f32.xlu0 %v2077
        %v2079 = vpop.xlane.xlu0 %2078
        %v2080 = vsel %vm465, %v2070, 0.0
        %2081 = vadd.xlane.f32.xlu0 %v2080
        %v2082 = vpop.xlane.xlu0 %2081
        %v2083 = vrcp.pop %v2073
        %v2084 = vrcp.pop %v2076
        %v2085 = vrcp.pop %v2079
        %v2086 = vrcp.pop %v2082
        %v2087 = vmul.f32 %v2064, %v2083
        %v2088 = vmul.f32 %v2066, %v2084
        %v2089 = vmul.f32 %v2068, %v2085
        %v2090 = vmul.f32 %v2070, %v2086
        %v2092 = vsel %vm465, %v2087, 0
        %v2095 = vsel %vm465, %v2088, 0
        %v2098 = vsel %vm465, %v2089, 0
        %v2101 = vsel %vm465, %v2090, 0
        %2103 = vmatprep.subr.mxu0 0.0
        %2104 = vmatpush1.msra.mxu0 %v822
        %2105 = vmatprep.subr.mxu0 0.0
        %2106 = vmatpush1.msra.mxu0 %v828
        %2107 = vmatprep.subr.mxu0 0.0
        %2108 = vmatpush1.msra.mxu0 %v834
        %2109 = vmatprep.subr.mxu0 0.0
        %2110 = vmatpush1.msra.mxu0 %v840
        %2111 = vmatprep.subr.mxu0 0.0
        %2112 = vmatpush1.msra.mxu0 0.0
        %2113 = vmatprep.subr.mxu0 0.0
        %2114 = vmatpush1.msra.mxu0 0.0
        %2115 = vmatprep.subr.mxu0 0.0
        %2116 = vmatpush1.msra.mxu0 0.0
        %2117 = vmatprep.subr.mxu0 0.0
        %2118 = vmatpush1.msra.mxu0 0.0
        %2119 = vmatprep.subr.mxu0 0.0
        %2120 = vmatpush1.msra.mxu0 0.0
        %2121 = vmatprep.subr.mxu0 0.0
        %2122 = vmatpush1.msra.mxu0 0.0
        %2123 = vmatprep.subr.mxu0 0.0
        %2124 = vmatpush1.msra.mxu0 0.0
        %2125 = vmatprep.subr.mxu0 0.0
        %2126 = vmatpush1.msra.mxu0 0.0
        %2127 = vmatprep.subr.mxu0 0.0
        %2128 = vmatpush1.msra.mxu0 0.0
        %2129 = vmatprep.subr.mxu0 0.0
        %2130 = vmatpush1.msra.mxu0 0.0
        %2131 = vmatprep.subr.mxu0 0.0
        %2132 = vmatpush1.msra.mxu0 0.0
        %2133 = vmatprep.subr.mxu0 0.0
        %2134 = vmatpush1.msra.mxu0 0.0
        %2135 = vmatprep.subr.mxu0 0.0
        %2136 = vmatpush1.msra.mxu0 0.0
        %2137 = vmatprep.subr.mxu0 0.0
        %2138 = vmatpush1.msra.mxu0 0.0
        %2139 = vmatprep.subr.mxu0 0.0
        %2140 = vmatpush1.msra.mxu0 0.0
        %2141 = vmatprep.subr.mxu0 0.0
        %2142 = vmatpush1.msra.mxu0 0.0
        %2143 = vmatprep.subr.mxu0 0.0
        %2144 = vmatpush1.msra.mxu0 0.0
        %2145 = vmatprep.subr.mxu0 0.0
        %2146 = vmatpush1.msra.mxu0 0.0
        %2147 = vmatprep.subr.mxu0 0.0
        %2148 = vmatpush1.msra.mxu0 0.0
        %2149 = vmatprep.subr.mxu0 0.0
        %2150 = vmatpush1.msra.mxu0 0.0
        %2151 = vmatprep.subr.mxu0 0.0
        %2152 = vmatpush1.msra.mxu0 0.0
        %2153 = vmatprep.subr.mxu0 0.0
        %2154 = vmatpush1.msra.mxu0 0.0
        %2155 = vmatprep.subr.mxu0 0.0
        %2156 = vmatpush1.msra.mxu0 0.0
        %2157 = vmatprep.subr.mxu0 0.0
        %2158 = vmatpush1.msra.mxu0 0.0
        %2159 = vmatprep.subr.mxu0 0.0
        %2160 = vmatpush1.msra.mxu0 0.0
        %2161 = vmatprep.subr.mxu0 0.0
        %2162 = vmatpush1.msra.mxu0 0.0
        %2163 = vmatprep.subr.mxu0 0.0
        %2164 = vmatpush1.msra.mxu0 0.0
        %2165 = vmatprep.subr.mxu0 0.0
        %2166 = vmatpush1.msra.mxu0 0.0
        %2167 = vmatprep.mubr.f32.mxu0 0.0
        %2168 = vmatmul.mubr.f32.gmra.mrb[0].mxu0 %v2092
        %v2169 = vpop.f32.mrb[0].mxu0
        %v2170 = vadd.f32 0.0, %v2169
        %v2171 = vpop.f32.mrb[0].mxu0
        %2172 = vmatprep.mubr.f32.mxu0 0.0
        %2173 = vmatmul.mubr.f32.gmra.mrb[0].mxu0 %v2095
        %v2174 = vpop.f32.mrb[0].mxu0
        %v2175 = vadd.f32 0.0, %v2174
        %v2176 = vpop.f32.mrb[0].mxu0
        %2177 = vmatprep.mubr.f32.mxu0 0.0
        %2178 = vmatmul.mubr.f32.gmra.mrb[0].mxu0 %v2098
        %v2179 = vpop.f32.mrb[0].mxu0
        %v2180 = vadd.f32 0.0, %v2179
        %v2181 = vpop.f32.mrb[0].mxu0
        %2182 = vmatprep.mubr.f32.mxu0 0.0
        %2183 = vmatmul.mubr.f32.gmra.mrb[0].mxu0 %v2101
        %v2184 = vpop.f32.mrb[0].mxu0
        %v2185 = vadd.f32 0.0, %v2184
        %v2186 = vpop.f32.mrb[0].mxu0
        %2187 = vdwg.mxu0
        %s2188 = scalar_lea.vmem %s4, 160
        %v2189 = vld [vmem:[%s2188] sm:$0xff]
        %v2190 = vld [vmem:[%s2188 + $0x8] sm:$0xff]
        %v2191 = vld [vmem:[%s2188 + $0x10] sm:$0xff]
        %v2192 = vld [vmem:[%s2188 + $0x18] sm:$0xff]
        %2193 = vrot.lane.b32.xlu0 %v1929, 96
        %v2194 = vpop.permute.xlu0 %2193
        %2195 = vrot.lane.b32.xlu0 %v1930, 96
        %v2196 = vpop.permute.xlu0 %2195
        %2197 = vrot.lane.b32.xlu0 %v1931, 96
        %v2198 = vpop.permute.xlu0 %2197
        %2199 = vrot.lane.b32.xlu0 %v1932, 96
        %v2200 = vpop.permute.xlu0 %2199
        %2201 = vrot.lane.b32.xlu0 %v733, 96
        %v2202 = vpop.permute.xlu0 %2201
        %2203 = vrot.lane.b32.xlu0 %v739, 96
        %v2204 = vpop.permute.xlu0 %2203
        %2205 = vrot.lane.b32.xlu0 %v745, 96
        %v2206 = vpop.permute.xlu0 %2205
        %2207 = vrot.lane.b32.xlu0 %v751, 96
        %v2208 = vpop.permute.xlu0 %2207
        %v2209 = vsel %vm465, %v2194, 0
        %v2211 = vsel %vm465, %v2196, 0
        %v2213 = vsel %vm465, %v2198, 0
        %v2215 = vsel %vm465, %v2200, 0
        %v2217 = vsel %vm465, %v2202, 0
        %v2219 = vsel %vm465, %v2204, 0
        %v2221 = vsel %vm465, %v2206, 0
        %v2223 = vsel %vm465, %v2208, 0
        %2225 = vmatprep.subr.mxu0 0.0
        %2226 = vmatpush1.xpose.msra.mxu0 %v2217
        %2227 = vmatprep.subr.mxu0 0.0
        %2228 = vmatpush1.xpose.msra.mxu0 %v2219
        %2229 = vmatprep.subr.mxu0 0.0
        %2230 = vmatpush1.xpose.msra.mxu0 %v2221
        %2231 = vmatprep.subr.mxu0 0.0
        %2232 = vmatpush1.xpose.msra.mxu0 %v2223
        %2233 = vmatprep.subr.mxu0 0.0
        %2234 = vmatpush1.xpose.msra.mxu0 0.0
        %2235 = vmatprep.subr.mxu0 0.0
        %2236 = vmatpush1.xpose.msra.mxu0 0.0
        %2237 = vmatprep.subr.mxu0 0.0
        %2238 = vmatpush1.xpose.msra.mxu0 0.0
        %2239 = vmatprep.subr.mxu0 0.0
        %2240 = vmatpush1.xpose.msra.mxu0 0.0
        %2241 = vmatprep.subr.mxu0 0.0
        %2242 = vmatpush1.xpose.msra.mxu0 0.0
        %2243 = vmatprep.subr.mxu0 0.0
        %2244 = vmatpush1.xpose.msra.mxu0 0.0
        %2245 = vmatprep.subr.mxu0 0.0
        %2246 = vmatpush1.xpose.msra.mxu0 0.0
        %2247 = vmatprep.subr.mxu0 0.0
        %2248 = vmatpush1.xpose.msra.mxu0 0.0
        %2249 = vmatprep.subr.mxu0 0.0
        %2250 = vmatpush1.xpose.msra.mxu0 0.0
        %2251 = vmatprep.subr.mxu0 0.0
        %2252 = vmatpush1.xpose.msra.mxu0 0.0
        %2253 = vmatprep.subr.mxu0 0.0
        %2254 = vmatpush1.xpose.msra.mxu0 0.0
        %2255 = vmatprep.subr.mxu0 0.0
        %2256 = vmatpush1.xpose.msra.mxu0 0.0
        %2257 = vmatprep.subr.mxu0 0.0
        %2258 = vmatpush1.xpose.msra.mxu0 0.0
        %2259 = vmatprep.subr.mxu0 0.0
        %2260 = vmatpush1.xpose.msra.mxu0 0.0
        %2261 = vmatprep.subr.mxu0 0.0
        %2262 = vmatpush1.xpose.msra.mxu0 0.0
        %2263 = vmatprep.subr.mxu0 0.0
        %2264 = vmatpush1.xpose.msra.mxu0 0.0
        %2265 = vmatprep.subr.mxu0 0.0
        %2266 = vmatpush1.xpose.msra.mxu0 0.0
        %2267 = vmatprep.subr.mxu0 0.0
        %2268 = vmatpush1.xpose.msra.mxu0 0.0
        %2269 = vmatprep.subr.mxu0 0.0
        %2270 = vmatpush1.xpose.msra.mxu0 0.0
        %2271 = vmatprep.subr.mxu0 0.0
        %2272 = vmatpush1.xpose.msra.mxu0 0.0
        %2273 = vmatprep.subr.mxu0 0.0
        %2274 = vmatpush1.xpose.msra.mxu0 0.0
        %2275 = vmatprep.subr.mxu0 0.0
        %2276 = vmatpush1.xpose.msra.mxu0 0.0
        %2277 = vmatprep.subr.mxu0 0.0
        %2278 = vmatpush1.xpose.msra.mxu0 0.0
        %2279 = vmatprep.subr.mxu0 0.0
        %2280 = vmatpush1.xpose.msra.mxu0 0.0
        %2281 = vmatprep.subr.mxu0 0.0
        %2282 = vmatpush1.xpose.msra.mxu0 0.0
        %2283 = vmatprep.subr.mxu0 0.0
        %2284 = vmatpush1.xpose.msra.mxu0 0.0
        %2285 = vmatprep.subr.mxu0 0.0
        %2286 = vmatpush1.xpose.msra.mxu0 0.0
        %2287 = vmatprep.subr.mxu0 0.0
        %2288 = vmatpush1.xpose.msra.mxu0 0.0
        %2289 = vmatprep.mubr.f32.mxu0 0.0
        %2290 = vmatmul.mubr.f32.gmra.mrb[0].mxu0 %v2209
        %v2291 = vpop.f32.mrb[0].mxu0
        %v2292 = vadd.f32 %v2189, %v2291
        %v2293 = vpop.f32.mrb[0].mxu0
        %2294 = vmatprep.mubr.f32.mxu0 0.0
        %2295 = vmatmul.mubr.f32.gmra.mrb[0].mxu0 %v2211
        %v2296 = vpop.f32.mrb[0].mxu0
        %v2297 = vadd.f32 %v2190, %v2296
        %v2298 = vpop.f32.mrb[0].mxu0
        %2299 = vmatprep.mubr.f32.mxu0 0.0
        %2300 = vmatmul.mubr.f32.gmra.mrb[0].mxu0 %v2213
        %v2301 = vpop.f32.mrb[0].mxu0
        %v2302 = vadd.f32 %v2191, %v2301
        %v2303 = vpop.f32.mrb[0].mxu0
        %2304 = vmatprep.mubr.f32.mxu0 0.0
        %2305 = vmatmul.mubr.f32.gmra.mrb[0].mxu0 %v2215
        %v2306 = vpop.f32.mrb[0].mxu0
        %v2307 = vadd.f32 %v2192, %v2306
        %v2308 = vpop.f32.mrb[0].mxu0
        %2309 = vdwg.mxu0
        %v2310 = vsel %vm465, %v2292, -inf
        %2311 = vmax.xlane.f32.xlu0 %v2310
        %v2312 = vpop.xlane.xlu0 %2311
        %v2313 = vsel %vm465, %v2297, -inf
        %2314 = vmax.xlane.f32.xlu0 %v2313
        %v2315 = vpop.xlane.xlu0 %2314
        %v2316 = vsel %vm465, %v2302, -inf
        %2317 = vmax.xlane.f32.xlu0 %v2316
        %v2318 = vpop.xlane.xlu0 %2317
        %v2319 = vsel %vm465, %v2307, -inf
        %2320 = vmax.xlane.f32.xlu0 %v2319
        %v2321 = vpop.xlane.xlu0 %2320
        %v2322 = vsub.f32 %v2292, %v2312
        %v2323 = vsub.f32 %v2297, %v2315
        %v2324 = vsub.f32 %v2302, %v2318
        %v2325 = vsub.f32 %v2307, %v2321
        %v2326 = vmul.f32 %v2322, 1.442695
        %v2327 = vpow.pop %v2326
        %v2328 = vmul.f32 %v2323, 1.442695
        %v2329 = vpow.pop %v2328
        %v2330 = vmul.f32 %v2324, 1.442695
        %v2331 = vpow.pop %v2330
        %v2332 = vmul.f32 %v2325, 1.442695
        %v2333 = vpow.pop %v2332
        %v2334 = vsel %vm465, %v2327, 0.0
        %2335 = vadd.xlane.f32.xlu0 %v2334
        %v2336 = vpop.xlane.xlu0 %2335
        %v2337 = vsel %vm465, %v2329, 0.0
        %2338 = vadd.xlane.f32.xlu0 %v2337
        %v2339 = vpop.xlane.xlu0 %2338
        %v2340 = vsel %vm465, %v2331, 0.0
        %2341 = vadd.xlane.f32.xlu0 %v2340
        %v2342 = vpop.xlane.xlu0 %2341
        %v2343 = vsel %vm465, %v2333, 0.0
        %2344 = vadd.xlane.f32.xlu0 %v2343
        %v2345 = vpop.xlane.xlu0 %2344
        %v2346 = vrcp.pop %v2336
        %v2347 = vrcp.pop %v2339
        %v2348 = vrcp.pop %v2342
        %v2349 = vrcp.pop %v2345
        %v2350 = vmul.f32 %v2327, %v2346
        %v2351 = vmul.f32 %v2329, %v2347
        %v2352 = vmul.f32 %v2331, %v2348
        %v2353 = vmul.f32 %v2333, %v2349
        %2358 = vrot.lane.b32.xlu0 %v822, 96
        %v2359 = vpop.permute.xlu0 %2358
        %2360 = vrot.lane.b32.xlu0 %v828, 96
        %v2361 = vpop.permute.xlu0 %2360
        %2362 = vrot.lane.b32.xlu0 %v834, 96
        %v2363 = vpop.permute.xlu0 %2362
        %2364 = vrot.lane.b32.xlu0 %v840, 96
        %v2365 = vpop.permute.xlu0 %2364
        %v2371 = vsel %vm465, %v2350, 0
        %v2374 = vsel %vm465, %v2351, 0
        %v2377 = vsel %vm465, %v2352, 0
        %v2380 = vsel %vm465, %v2353, 0
        %2382 = vmatprep.subr.mxu0 0.0
        %2383 = vmatpush1.msra.mxu0 %v2359
        %2384 = vmatprep.subr.mxu0 0.0
        %2385 = vmatpush1.msra.mxu0 %v2361
        %2386 = vmatprep.subr.mxu0 0.0
        %2387 = vmatpush1.msra.mxu0 %v2363
        %2388 = vmatprep.subr.mxu0 0.0
        %2389 = vmatpush1.msra.mxu0 %v2365
        %2390 = vmatprep.subr.mxu0 0.0
        %2391 = vmatpush1.msra.mxu0 0.0
        %2392 = vmatprep.subr.mxu0 0.0
        %2393 = vmatpush1.msra.mxu0 0.0
        %2394 = vmatprep.subr.mxu0 0.0
        %2395 = vmatpush1.msra.mxu0 0.0
        %2396 = vmatprep.subr.mxu0 0.0
        %2397 = vmatpush1.msra.mxu0 0.0
        %2398 = vmatprep.subr.mxu0 0.0
        %2399 = vmatpush1.msra.mxu0 0.0
        %2400 = vmatprep.subr.mxu0 0.0
        %2401 = vmatpush1.msra.mxu0 0.0
        %2402 = vmatprep.subr.mxu0 0.0
        %2403 = vmatpush1.msra.mxu0 0.0
        %2404 = vmatprep.subr.mxu0 0.0
        %2405 = vmatpush1.msra.mxu0 0.0
        %2406 = vmatprep.subr.mxu0 0.0
        %2407 = vmatpush1.msra.mxu0 0.0
        %2408 = vmatprep.subr.mxu0 0.0
        %2409 = vmatpush1.msra.mxu0 0.0
        %2410 = vmatprep.subr.mxu0 0.0
        %2411 = vmatpush1.msra.mxu0 0.0
        %2412 = vmatprep.subr.mxu0 0.0
        %2413 = vmatpush1.msra.mxu0 0.0
        %2414 = vmatprep.subr.mxu0 0.0
        %2415 = vmatpush1.msra.mxu0 0.0
        %2416 = vmatprep.subr.mxu0 0.0
        %2417 = vmatpush1.msra.mxu0 0.0
        %2418 = vmatprep.subr.mxu0 0.0
        %2419 = vmatpush1.msra.mxu0 0.0
        %2420 = vmatprep.subr.mxu0 0.0
        %2421 = vmatpush1.msra.mxu0 0.0
        %2422 = vmatprep.subr.mxu0 0.0
        %2423 = vmatpush1.msra.mxu0 0.0
        %2424 = vmatprep.subr.mxu0 0.0
        %2425 = vmatpush1.msra.mxu0 0.0
        %2426 = vmatprep.subr.mxu0 0.0
        %2427 = vmatpush1.msra.mxu0 0.0
        %2428 = vmatprep.subr.mxu0 0.0
        %2429 = vmatpush1.msra.mxu0 0.0
        %2430 = vmatprep.subr.mxu0 0.0
        %2431 = vmatpush1.msra.mxu0 0.0
        %2432 = vmatprep.subr.mxu0 0.0
        %2433 = vmatpush1.msra.mxu0 0.0
        %2434 = vmatprep.subr.mxu0 0.0
        %2435 = vmatpush1.msra.mxu0 0.0
        %2436 = vmatprep.subr.mxu0 0.0
        %2437 = vmatpush1.msra.mxu0 0.0
        %2438 = vmatprep.subr.mxu0 0.0
        %2439 = vmatpush1.msra.mxu0 0.0
        %2440 = vmatprep.subr.mxu0 0.0
        %2441 = vmatpush1.msra.mxu0 0.0
        %2442 = vmatprep.subr.mxu0 0.0
        %2443 = vmatpush1.msra.mxu0 0.0
        %2444 = vmatprep.subr.mxu0 0.0
        %2445 = vmatpush1.msra.mxu0 0.0
        %2446 = vmatprep.mubr.f32.mxu0 0.0
        %2447 = vmatmul.mubr.f32.gmra.mrb[0].mxu0 %v2371
        %v2448 = vpop.f32.mrb[0].mxu0
        %v2449 = vadd.f32 0.0, %v2448
        %v2450 = vpop.f32.mrb[0].mxu0
        %2451 = vmatprep.mubr.f32.mxu0 0.0
        %2452 = vmatmul.mubr.f32.gmra.mrb[0].mxu0 %v2374
        %v2453 = vpop.f32.mrb[0].mxu0
        %v2454 = vadd.f32 0.0, %v2453
        %v2455 = vpop.f32.mrb[0].mxu0
        %2456 = vmatprep.mubr.f32.mxu0 0.0
        %2457 = vmatmul.mubr.f32.gmra.mrb[0].mxu0 %v2377
        %v2458 = vpop.f32.mrb[0].mxu0
        %v2459 = vadd.f32 0.0, %v2458
        %v2460 = vpop.f32.mrb[0].mxu0
        %2461 = vmatprep.mubr.f32.mxu0 0.0
        %2462 = vmatmul.mubr.f32.gmra.mrb[0].mxu0 %v2380
        %v2463 = vpop.f32.mrb[0].mxu0
        %v2464 = vadd.f32 0.0, %v2463
        %v2465 = vpop.f32.mrb[0].mxu0
        %2466 = vdwg.mxu0
        %s2467 = scalar_lea.vmem %s4, 192
        %v2468 = vld [vmem:[%s2467] sm:$0xff]
        %v2469 = vld [vmem:[%s2467 + $0x8] sm:$0xff]
        %v2470 = vld [vmem:[%s2467 + $0x10] sm:$0xff]
        %v2471 = vld [vmem:[%s2467 + $0x18] sm:$0xff]
        %2472 = vrot.lane.b32.xlu0 %v1929, 64
        %v2473 = vpop.permute.xlu0 %2472
        %2474 = vrot.lane.b32.xlu0 %v1930, 64
        %v2475 = vpop.permute.xlu0 %2474
        %2476 = vrot.lane.b32.xlu0 %v1931, 64
        %v2477 = vpop.permute.xlu0 %2476
        %2478 = vrot.lane.b32.xlu0 %v1932, 64
        %v2479 = vpop.permute.xlu0 %2478
        %2480 = vrot.lane.b32.xlu0 %v733, 64
        %v2481 = vpop.permute.xlu0 %2480
        %2482 = vrot.lane.b32.xlu0 %v739, 64
        %v2483 = vpop.permute.xlu0 %2482
        %2484 = vrot.lane.b32.xlu0 %v745, 64
        %v2485 = vpop.permute.xlu0 %2484
        %2486 = vrot.lane.b32.xlu0 %v751, 64
        %v2487 = vpop.permute.xlu0 %2486
        %v2488 = vsel %vm465, %v2473, 0
        %v2490 = vsel %vm465, %v2475, 0
        %v2492 = vsel %vm465, %v2477, 0
        %v2494 = vsel %vm465, %v2479, 0
        %v2496 = vsel %vm465, %v2481, 0
        %v2498 = vsel %vm465, %v2483, 0
        %v2500 = vsel %vm465, %v2485, 0
        %v2502 = vsel %vm465, %v2487, 0
        %2504 = vmatprep.subr.mxu0 0.0
        %2505 = vmatpush1.xpose.msra.mxu0 %v2496
        %2506 = vmatprep.subr.mxu0 0.0
        %2507 = vmatpush1.xpose.msra.mxu0 %v2498
        %2508 = vmatprep.subr.mxu0 0.0
        %2509 = vmatpush1.xpose.msra.mxu0 %v2500
        %2510 = vmatprep.subr.mxu0 0.0
        %2511 = vmatpush1.xpose.msra.mxu0 %v2502
        %2512 = vmatprep.subr.mxu0 0.0
        %2513 = vmatpush1.xpose.msra.mxu0 0.0
        %2514 = vmatprep.subr.mxu0 0.0
        %2515 = vmatpush1.xpose.msra.mxu0 0.0
        %2516 = vmatprep.subr.mxu0 0.0
        %2517 = vmatpush1.xpose.msra.mxu0 0.0
        %2518 = vmatprep.subr.mxu0 0.0
        %2519 = vmatpush1.xpose.msra.mxu0 0.0
        %2520 = vmatprep.subr.mxu0 0.0
        %2521 = vmatpush1.xpose.msra.mxu0 0.0
        %2522 = vmatprep.subr.mxu0 0.0
        %2523 = vmatpush1.xpose.msra.mxu0 0.0
        %2524 = vmatprep.subr.mxu0 0.0
        %2525 = vmatpush1.xpose.msra.mxu0 0.0
        %2526 = vmatprep.subr.mxu0 0.0
        %2527 = vmatpush1.xpose.msra.mxu0 0.0
        %2528 = vmatprep.subr.mxu0 0.0
        %2529 = vmatpush1.xpose.msra.mxu0 0.0
        %2530 = vmatprep.subr.mxu0 0.0
        %2531 = vmatpush1.xpose.msra.mxu0 0.0
        %2532 = vmatprep.subr.mxu0 0.0
        %2533 = vmatpush1.xpose.msra.mxu0 0.0
        %2534 = vmatprep.subr.mxu0 0.0
        %2535 = vmatpush1.xpose.msra.mxu0 0.0
        %2536 = vmatprep.subr.mxu0 0.0
        %2537 = vmatpush1.xpose.msra.mxu0 0.0
        %2538 = vmatprep.subr.mxu0 0.0
        %2539 = vmatpush1.xpose.msra.mxu0 0.0
        %2540 = vmatprep.subr.mxu0 0.0
        %2541 = vmatpush1.xpose.msra.mxu0 0.0
        %2542 = vmatprep.subr.mxu0 0.0
        %2543 = vmatpush1.xpose.msra.mxu0 0.0
        %2544 = vmatprep.subr.mxu0 0.0
        %2545 = vmatpush1.xpose.msra.mxu0 0.0
        %2546 = vmatprep.subr.mxu0 0.0
        %2547 = vmatpush1.xpose.msra.mxu0 0.0
        %2548 = vmatprep.subr.mxu0 0.0
        %2549 = vmatpush1.xpose.msra.mxu0 0.0
        %2550 = vmatprep.subr.mxu0 0.0
        %2551 = vmatpush1.xpose.msra.mxu0 0.0
        %2552 = vmatprep.subr.mxu0 0.0
        %2553 = vmatpush1.xpose.msra.mxu0 0.0
        %2554 = vmatprep.subr.mxu0 0.0
        %2555 = vmatpush1.xpose.msra.mxu0 0.0
        %2556 = vmatprep.subr.mxu0 0.0
        %2557 = vmatpush1.xpose.msra.mxu0 0.0
        %2558 = vmatprep.subr.mxu0 0.0
        %2559 = vmatpush1.xpose.msra.mxu0 0.0
        %2560 = vmatprep.subr.mxu0 0.0
        %2561 = vmatpush1.xpose.msra.mxu0 0.0
        %2562 = vmatprep.subr.mxu0 0.0
        %2563 = vmatpush1.xpose.msra.mxu0 0.0
        %2564 = vmatprep.subr.mxu0 0.0
        %2565 = vmatpush1.xpose.msra.mxu0 0.0
        %2566 = vmatprep.subr.mxu0 0.0
        %2567 = vmatpush1.xpose.msra.mxu0 0.0
        %2568 = vmatprep.mubr.f32.mxu0 0.0
        %2569 = vmatmul.mubr.f32.gmra.mrb[0].mxu0 %v2488
        %v2570 = vpop.f32.mrb[0].mxu0
        %v2571 = vadd.f32 %v2468, %v2570
        %v2572 = vpop.f32.mrb[0].mxu0
        %2573 = vmatprep.mubr.f32.mxu0 0.0
        %2574 = vmatmul.mubr.f32.gmra.mrb[0].mxu0 %v2490
        %v2575 = vpop.f32.mrb[0].mxu0
        %v2576 = vadd.f32 %v2469, %v2575
        %v2577 = vpop.f32.mrb[0].mxu0
        %2578 = vmatprep.mubr.f32.mxu0 0.0
        %2579 = vmatmul.mubr.f32.gmra.mrb[0].mxu0 %v2492
        %v2580 = vpop.f32.mrb[0].mxu0
        %v2581 = vadd.f32 %v2470, %v2580
        %v2582 = vpop.f32.mrb[0].mxu0
        %2583 = vmatprep.mubr.f32.mxu0 0.0
        %2584 = vmatmul.mubr.f32.gmra.mrb[0].mxu0 %v2494
        %v2585 = vpop.f32.mrb[0].mxu0
        %v2586 = vadd.f32 %v2471, %v2585
        %v2587 = vpop.f32.mrb[0].mxu0
        %2588 = vdwg.mxu0
        %v2589 = vsel %vm465, %v2571, -inf
        %2590 = vmax.xlane.f32.xlu0 %v2589
        %v2591 = vpop.xlane.xlu0 %2590
        %v2592 = vsel %vm465, %v2576, -inf
        %2593 = vmax.xlane.f32.xlu0 %v2592
        %v2594 = vpop.xlane.xlu0 %2593
        %v2595 = vsel %vm465, %v2581, -inf
        %2596 = vmax.xlane.f32.xlu0 %v2595
        %v2597 = vpop.xlane.xlu0 %2596
        %v2598 = vsel %vm465, %v2586, -inf
        %2599 = vmax.xlane.f32.xlu0 %v2598
        %v2600 = vpop.xlane.xlu0 %2599
        %v2601 = vsub.f32 %v2571, %v2591
        %v2602 = vsub.f32 %v2576, %v2594
        %v2603 = vsub.f32 %v2581, %v2597
        %v2604 = vsub.f32 %v2586, %v2600
        %v2605 = vmul.f32 %v2601, 1.442695
        %v2606 = vpow.pop %v2605
        %v2607 = vmul.f32 %v2602, 1.442695
        %v2608 = vpow.pop %v2607
        %v2609 = vmul.f32 %v2603, 1.442695
        %v2610 = vpow.pop %v2609
        %v2611 = vmul.f32 %v2604, 1.442695
        %v2612 = vpow.pop %v2611
        %v2613 = vsel %vm465, %v2606, 0.0
        %2614 = vadd.xlane.f32.xlu0 %v2613
        %v2615 = vpop.xlane.xlu0 %2614
        %v2616 = vsel %vm465, %v2608, 0.0
        %2617 = vadd.xlane.f32.xlu0 %v2616
        %v2618 = vpop.xlane.xlu0 %2617
        %v2619 = vsel %vm465, %v2610, 0.0
        %2620 = vadd.xlane.f32.xlu0 %v2619
        %v2621 = vpop.xlane.xlu0 %2620
        %v2622 = vsel %vm465, %v2612, 0.0
        %2623 = vadd.xlane.f32.xlu0 %v2622
        %v2624 = vpop.xlane.xlu0 %2623
        %v2625 = vrcp.pop %v2615
        %v2626 = vrcp.pop %v2618
        %v2627 = vrcp.pop %v2621
        %v2628 = vrcp.pop %v2624
        %v2629 = vmul.f32 %v2606, %v2625
        %v2630 = vmul.f32 %v2608, %v2626
        %v2631 = vmul.f32 %v2610, %v2627
        %v2632 = vmul.f32 %v2612, %v2628
        %2633 = vrot.lane.b32.xlu0 %v822, 64
        %v2634 = vpop.permute.xlu0 %2633
        %2635 = vrot.lane.b32.xlu0 %v828, 64
        %v2636 = vpop.permute.xlu0 %2635
        %2637 = vrot.lane.b32.xlu0 %v834, 64
        %v2638 = vpop.permute.xlu0 %2637
        %2639 = vrot.lane.b32.xlu0 %v840, 64
        %v2640 = vpop.permute.xlu0 %2639
        %v2646 = vsel %vm465, %v2629, 0
        %v2649 = vsel %vm465, %v2630, 0
        %v2652 = vsel %vm465, %v2631, 0
        %v2655 = vsel %vm465, %v2632, 0
        %2657 = vmatprep.subr.mxu0 0.0
        %2658 = vmatpush1.msra.mxu0 %v2634
        %2659 = vmatprep.subr.mxu0 0.0
        %2660 = vmatpush1.msra.mxu0 %v2636
        %2661 = vmatprep.subr.mxu0 0.0
        %2662 = vmatpush1.msra.mxu0 %v2638
        %2663 = vmatprep.subr.mxu0 0.0
        %2664 = vmatpush1.msra.mxu0 %v2640
        %2665 = vmatprep.subr.mxu0 0.0
        %2666 = vmatpush1.msra.mxu0 0.0
        %2667 = vmatprep.subr.mxu0 0.0
        %2668 = vmatpush1.msra.mxu0 0.0
        %2669 = vmatprep.subr.mxu0 0.0
        %2670 = vmatpush1.msra.mxu0 0.0
        %2671 = vmatprep.subr.mxu0 0.0
        %2672 = vmatpush1.msra.mxu0 0.0
        %2673 = vmatprep.subr.mxu0 0.0
        %2674 = vmatpush1.msra.mxu0 0.0
        %2675 = vmatprep.subr.mxu0 0.0
        %2676 = vmatpush1.msra.mxu0 0.0
        %2677 = vmatprep.subr.mxu0 0.0
        %2678 = vmatpush1.msra.mxu0 0.0
        %2679 = vmatprep.subr.mxu0 0.0
        %2680 = vmatpush1.msra.mxu0 0.0
        %2681 = vmatprep.subr.mxu0 0.0
        %2682 = vmatpush1.msra.mxu0 0.0
        %2683 = vmatprep.subr.mxu0 0.0
        %2684 = vmatpush1.msra.mxu0 0.0
        %2685 = vmatprep.subr.mxu0 0.0
        %2686 = vmatpush1.msra.mxu0 0.0
        %2687 = vmatprep.subr.mxu0 0.0
        %2688 = vmatpush1.msra.mxu0 0.0
        %2689 = vmatprep.subr.mxu0 0.0
        %2690 = vmatpush1.msra.mxu0 0.0
        %2691 = vmatprep.subr.mxu0 0.0
        %2692 = vmatpush1.msra.mxu0 0.0
        %2693 = vmatprep.subr.mxu0 0.0
        %2694 = vmatpush1.msra.mxu0 0.0
        %2695 = vmatprep.subr.mxu0 0.0
        %2696 = vmatpush1.msra.mxu0 0.0
        %2697 = vmatprep.subr.mxu0 0.0
        %2698 = vmatpush1.msra.mxu0 0.0
        %2699 = vmatprep.subr.mxu0 0.0
        %2700 = vmatpush1.msra.mxu0 0.0
        %2701 = vmatprep.subr.mxu0 0.0
        %2702 = vmatpush1.msra.mxu0 0.0
        %2703 = vmatprep.subr.mxu0 0.0
        %2704 = vmatpush1.msra.mxu0 0.0
        %2705 = vmatprep.subr.mxu0 0.0
        %2706 = vmatpush1.msra.mxu0 0.0
        %2707 = vmatprep.subr.mxu0 0.0
        %2708 = vmatpush1.msra.mxu0 0.0
        %2709 = vmatprep.subr.mxu0 0.0
        %2710 = vmatpush1.msra.mxu0 0.0
        %2711 = vmatprep.subr.mxu0 0.0
        %2712 = vmatpush1.msra.mxu0 0.0
        %2713 = vmatprep.subr.mxu0 0.0
        %2714 = vmatpush1.msra.mxu0 0.0
        %2715 = vmatprep.subr.mxu0 0.0
        %2716 = vmatpush1.msra.mxu0 0.0
        %2717 = vmatprep.subr.mxu0 0.0
        %2718 = vmatpush1.msra.mxu0 0.0
        %2719 = vmatprep.subr.mxu0 0.0
        %2720 = vmatpush1.msra.mxu0 0.0
        %2721 = vmatprep.mubr.f32.mxu0 0.0
        %2722 = vmatmul.mubr.f32.gmra.mrb[0].mxu0 %v2646
        %v2723 = vpop.f32.mrb[0].mxu0
        %v2724 = vadd.f32 0.0, %v2723
        %v2725 = vpop.f32.mrb[0].mxu0
        %2726 = vmatprep.mubr.f32.mxu0 0.0
        %2727 = vmatmul.mubr.f32.gmra.mrb[0].mxu0 %v2649
        %v2728 = vpop.f32.mrb[0].mxu0
        %v2729 = vadd.f32 0.0, %v2728
        %v2730 = vpop.f32.mrb[0].mxu0
        %2731 = vmatprep.mubr.f32.mxu0 0.0
        %2732 = vmatmul.mubr.f32.gmra.mrb[0].mxu0 %v2652
        %v2733 = vpop.f32.mrb[0].mxu0
        %v2734 = vadd.f32 0.0, %v2733
        %v2735 = vpop.f32.mrb[0].mxu0
        %2736 = vmatprep.mubr.f32.mxu0 0.0
        %2737 = vmatmul.mubr.f32.gmra.mrb[0].mxu0 %v2655
        %v2738 = vpop.f32.mrb[0].mxu0
        %v2739 = vadd.f32 0.0, %v2738
        %v2740 = vpop.f32.mrb[0].mxu0
        %2741 = vdwg.mxu0
        %s2742 = scalar_lea.vmem %s4, 224
        %v2743 = vld [vmem:[%s2742] sm:$0xff]
        %v2744 = vld [vmem:[%s2742 + $0x8] sm:$0xff]
        %v2745 = vld [vmem:[%s2742 + $0x10] sm:$0xff]
        %v2746 = vld [vmem:[%s2742 + $0x18] sm:$0xff]
        %2747 = vrot.lane.b32.xlu0 %v1929, 32
        %v2748 = vpop.permute.xlu0 %2747
        %2749 = vrot.lane.b32.xlu0 %v1930, 32
        %v2750 = vpop.permute.xlu0 %2749
        %2751 = vrot.lane.b32.xlu0 %v1931, 32
        %v2752 = vpop.permute.xlu0 %2751
        %2753 = vrot.lane.b32.xlu0 %v1932, 32
        %v2754 = vpop.permute.xlu0 %2753
        %2755 = vrot.lane.b32.xlu0 %v733, 32
        %v2756 = vpop.permute.xlu0 %2755
        %2757 = vrot.lane.b32.xlu0 %v739, 32
        %v2758 = vpop.permute.xlu0 %2757
        %2759 = vrot.lane.b32.xlu0 %v745, 32
        %v2760 = vpop.permute.xlu0 %2759
        %2761 = vrot.lane.b32.xlu0 %v751, 32
        %v2762 = vpop.permute.xlu0 %2761
        %v2763 = vsel %vm465, %v2748, 0
        %v2765 = vsel %vm465, %v2750, 0
        %v2767 = vsel %vm465, %v2752, 0
        %v2769 = vsel %vm465, %v2754, 0
        %v2771 = vsel %vm465, %v2756, 0
        %v2773 = vsel %vm465, %v2758, 0
        %v2775 = vsel %vm465, %v2760, 0
        %v2777 = vsel %vm465, %v2762, 0
        %2779 = vmatprep.subr.mxu0 0.0
        %2780 = vmatpush1.xpose.msra.mxu0 %v2771
        %2781 = vmatprep.subr.mxu0 0.0
        %2782 = vmatpush1.xpose.msra.mxu0 %v2773
        %2783 = vmatprep.subr.mxu0 0.0
        %2784 = vmatpush1.xpose.msra.mxu0 %v2775
        %2785 = vmatprep.subr.mxu0 0.0
        %2786 = vmatpush1.xpose.msra.mxu0 %v2777
        %2787 = vmatprep.subr.mxu0 0.0
        %2788 = vmatpush1.xpose.msra.mxu0 0.0
        %2789 = vmatprep.subr.mxu0 0.0
        %2790 = vmatpush1.xpose.msra.mxu0 0.0
        %2791 = vmatprep.subr.mxu0 0.0
        %2792 = vmatpush1.xpose.msra.mxu0 0.0
        %2793 = vmatprep.subr.mxu0 0.0
        %2794 = vmatpush1.xpose.msra.mxu0 0.0
        %2795 = vmatprep.subr.mxu0 0.0
        %2796 = vmatpush1.xpose.msra.mxu0 0.0
        %2797 = vmatprep.subr.mxu0 0.0
        %2798 = vmatpush1.xpose.msra.mxu0 0.0
        %2799 = vmatprep.subr.mxu0 0.0
        %2800 = vmatpush1.xpose.msra.mxu0 0.0
        %2801 = vmatprep.subr.mxu0 0.0
        %2802 = vmatpush1.xpose.msra.mxu0 0.0
        %2803 = vmatprep.subr.mxu0 0.0
        %2804 = vmatpush1.xpose.msra.mxu0 0.0
        %2805 = vmatprep.subr.mxu0 0.0
        %2806 = vmatpush1.xpose.msra.mxu0 0.0
        %2807 = vmatprep.subr.mxu0 0.0
        %2808 = vmatpush1.xpose.msra.mxu0 0.0
        %2809 = vmatprep.subr.mxu0 0.0
        %2810 = vmatpush1.xpose.msra.mxu0 0.0
        %2811 = vmatprep.subr.mxu0 0.0
        %2812 = vmatpush1.xpose.msra.mxu0 0.0
        %2813 = vmatprep.subr.mxu0 0.0
        %2814 = vmatpush1.xpose.msra.mxu0 0.0
        %2815 = vmatprep.subr.mxu0 0.0
        %2816 = vmatpush1.xpose.msra.mxu0 0.0
        %2817 = vmatprep.subr.mxu0 0.0
        %2818 = vmatpush1.xpose.msra.mxu0 0.0
        %2819 = vmatprep.subr.mxu0 0.0
        %2820 = vmatpush1.xpose.msra.mxu0 0.0
        %2821 = vmatprep.subr.mxu0 0.0
        %2822 = vmatpush1.xpose.msra.mxu0 0.0
        %2823 = vmatprep.subr.mxu0 0.0
        %2824 = vmatpush1.xpose.msra.mxu0 0.0
        %2825 = vmatprep.subr.mxu0 0.0
        %2826 = vmatpush1.xpose.msra.mxu0 0.0
        %2827 = vmatprep.subr.mxu0 0.0
        %2828 = vmatpush1.xpose.msra.mxu0 0.0
        %2829 = vmatprep.subr.mxu0 0.0
        %2830 = vmatpush1.xpose.msra.mxu0 0.0
        %2831 = vmatprep.subr.mxu0 0.0
        %2832 = vmatpush1.xpose.msra.mxu0 0.0
        %2833 = vmatprep.subr.mxu0 0.0
        %2834 = vmatpush1.xpose.msra.mxu0 0.0
        %2835 = vmatprep.subr.mxu0 0.0
        %2836 = vmatpush1.xpose.msra.mxu0 0.0
        %2837 = vmatprep.subr.mxu0 0.0
        %2838 = vmatpush1.xpose.msra.mxu0 0.0
        %2839 = vmatprep.subr.mxu0 0.0
        %2840 = vmatpush1.xpose.msra.mxu0 0.0
        %2841 = vmatprep.subr.mxu0 0.0
        %2842 = vmatpush1.xpose.msra.mxu0 0.0
        %2843 = vmatprep.mubr.f32.mxu0 0.0
        %2844 = vmatmul.mubr.f32.gmra.mrb[0].mxu0 %v2763
        %v2845 = vpop.f32.mrb[0].mxu0
        %v2846 = vadd.f32 %v2743, %v2845
        %v2847 = vpop.f32.mrb[0].mxu0
        %2848 = vmatprep.mubr.f32.mxu0 0.0
        %2849 = vmatmul.mubr.f32.gmra.mrb[0].mxu0 %v2765
        %v2850 = vpop.f32.mrb[0].mxu0
        %v2851 = vadd.f32 %v2744, %v2850
        %v2852 = vpop.f32.mrb[0].mxu0
        %2853 = vmatprep.mubr.f32.mxu0 0.0
        %2854 = vmatmul.mubr.f32.gmra.mrb[0].mxu0 %v2767
        %v2855 = vpop.f32.mrb[0].mxu0
        %v2856 = vadd.f32 %v2745, %v2855
        %v2857 = vpop.f32.mrb[0].mxu0
        %2858 = vmatprep.mubr.f32.mxu0 0.0
        %2859 = vmatmul.mubr.f32.gmra.mrb[0].mxu0 %v2769
        %v2860 = vpop.f32.mrb[0].mxu0
        %v2861 = vadd.f32 %v2746, %v2860
        %v2862 = vpop.f32.mrb[0].mxu0
        %2863 = vdwg.mxu0
        %v2864 = vsel %vm465, %v2846, -inf
        %2865 = vmax.xlane.f32.xlu0 %v2864
        %v2866 = vpop.xlane.xlu0 %2865
        %v2867 = vsel %vm465, %v2851, -inf
        %2868 = vmax.xlane.f32.xlu0 %v2867
        %v2869 = vpop.xlane.xlu0 %2868
        %v2870 = vsel %vm465, %v2856, -inf
        %2871 = vmax.xlane.f32.xlu0 %v2870
        %v2872 = vpop.xlane.xlu0 %2871
        %v2873 = vsel %vm465, %v2861, -inf
        %2874 = vmax.xlane.f32.xlu0 %v2873
        %v2875 = vpop.xlane.xlu0 %2874
        %v2876 = vsub.f32 %v2846, %v2866
        %v2877 = vsub.f32 %v2851, %v2869
        %v2878 = vsub.f32 %v2856, %v2872
        %v2879 = vsub.f32 %v2861, %v2875
        %v2880 = vmul.f32 %v2876, 1.442695
        %v2881 = vpow.pop %v2880
        %v2882 = vmul.f32 %v2877, 1.442695
        %v2883 = vpow.pop %v2882
        %v2884 = vmul.f32 %v2878, 1.442695
        %v2885 = vpow.pop %v2884
        %v2886 = vmul.f32 %v2879, 1.442695
        %v2887 = vpow.pop %v2886
        %v2888 = vsel %vm465, %v2881, 0.0
        %2889 = vadd.xlane.f32.xlu0 %v2888
        %v2890 = vpop.xlane.xlu0 %2889
        %v2891 = vsel %vm465, %v2883, 0.0
        %2892 = vadd.xlane.f32.xlu0 %v2891
        %v2893 = vpop.xlane.xlu0 %2892
        %v2894 = vsel %vm465, %v2885, 0.0
        %2895 = vadd.xlane.f32.xlu0 %v2894
        %v2896 = vpop.xlane.xlu0 %2895
        %v2897 = vsel %vm465, %v2887, 0.0
        %2898 = vadd.xlane.f32.xlu0 %v2897
        %v2899 = vpop.xlane.xlu0 %2898
        %v2900 = vrcp.pop %v2890
        %v2901 = vrcp.pop %v2893
        %v2902 = vrcp.pop %v2896
        %v2903 = vrcp.pop %v2899
        %v2904 = vmul.f32 %v2881, %v2900
        %v2905 = vmul.f32 %v2883, %v2901
        %v2906 = vmul.f32 %v2885, %v2902
        %v2907 = vmul.f32 %v2887, %v2903
        %2908 = vrot.lane.b32.xlu0 %v822, 32
        %v2909 = vpop.permute.xlu0 %2908
        %2910 = vrot.lane.b32.xlu0 %v828, 32
        %v2911 = vpop.permute.xlu0 %2910
        %2912 = vrot.lane.b32.xlu0 %v834, 32
        %v2913 = vpop.permute.xlu0 %2912
        %2914 = vrot.lane.b32.xlu0 %v840, 32
        %v2915 = vpop.permute.xlu0 %2914
        %v2921 = vsel %vm465, %v2904, 0
        %v2924 = vsel %vm465, %v2905, 0
        %v2927 = vsel %vm465, %v2906, 0
        %v2930 = vsel %vm465, %v2907, 0
        %2932 = vmatprep.subr.mxu0 0.0
        %2933 = vmatpush1.msra.mxu0 %v2909
        %2934 = vmatprep.subr.mxu0 0.0
        %2935 = vmatpush1.msra.mxu0 %v2911
        %2936 = vmatprep.subr.mxu0 0.0
        %2937 = vmatpush1.msra.mxu0 %v2913
        %2938 = vmatprep.subr.mxu0 0.0
        %2939 = vmatpush1.msra.mxu0 %v2915
        %2940 = vmatprep.subr.mxu0 0.0
        %2941 = vmatpush1.msra.mxu0 0.0
        %2942 = vmatprep.subr.mxu0 0.0
        %2943 = vmatpush1.msra.mxu0 0.0
        %2944 = vmatprep.subr.mxu0 0.0
        %2945 = vmatpush1.msra.mxu0 0.0
        %2946 = vmatprep.subr.mxu0 0.0
        %2947 = vmatpush1.msra.mxu0 0.0
        %2948 = vmatprep.subr.mxu0 0.0
        %2949 = vmatpush1.msra.mxu0 0.0
        %2950 = vmatprep.subr.mxu0 0.0
        %2951 = vmatpush1.msra.mxu0 0.0
        %2952 = vmatprep.subr.mxu0 0.0
        %2953 = vmatpush1.msra.mxu0 0.0
        %2954 = vmatprep.subr.mxu0 0.0
        %2955 = vmatpush1.msra.mxu0 0.0
        %2956 = vmatprep.subr.mxu0 0.0
        %2957 = vmatpush1.msra.mxu0 0.0
        %2958 = vmatprep.subr.mxu0 0.0
        %2959 = vmatpush1.msra.mxu0 0.0
        %2960 = vmatprep.subr.mxu0 0.0
        %2961 = vmatpush1.msra.mxu0 0.0
        %2962 = vmatprep.subr.mxu0 0.0
        %2963 = vmatpush1.msra.mxu0 0.0
        %2964 = vmatprep.subr.mxu0 0.0
        %2965 = vmatpush1.msra.mxu0 0.0
        %2966 = vmatprep.subr.mxu0 0.0
        %2967 = vmatpush1.msra.mxu0 0.0
        %2968 = vmatprep.subr.mxu0 0.0
        %2969 = vmatpush1.msra.mxu0 0.0
        %2970 = vmatprep.subr.mxu0 0.0
        %2971 = vmatpush1.msra.mxu0 0.0
        %2972 = vmatprep.subr.mxu0 0.0
        %2973 = vmatpush1.msra.mxu0 0.0
        %2974 = vmatprep.subr.mxu0 0.0
        %2975 = vmatpush1.msra.mxu0 0.0
        %2976 = vmatprep.subr.mxu0 0.0
        %2977 = vmatpush1.msra.mxu0 0.0
        %2978 = vmatprep.subr.mxu0 0.0
        %2979 = vmatpush1.msra.mxu0 0.0
        %2980 = vmatprep.subr.mxu0 0.0
        %2981 = vmatpush1.msra.mxu0 0.0
        %2982 = vmatprep.subr.mxu0 0.0
        %2983 = vmatpush1.msra.mxu0 0.0
        %2984 = vmatprep.subr.mxu0 0.0
        %2985 = vmatpush1.msra.mxu0 0.0
        %2986 = vmatprep.subr.mxu0 0.0
        %2987 = vmatpush1.msra.mxu0 0.0
        %2988 = vmatprep.subr.mxu0 0.0
        %2989 = vmatpush1.msra.mxu0 0.0
        %2990 = vmatprep.subr.mxu0 0.0
        %2991 = vmatpush1.msra.mxu0 0.0
        %2992 = vmatprep.subr.mxu0 0.0
        %2993 = vmatpush1.msra.mxu0 0.0
        %2994 = vmatprep.subr.mxu0 0.0
        %2995 = vmatpush1.msra.mxu0 0.0
        %2996 = vmatprep.mubr.f32.mxu0 0.0
        %2997 = vmatmul.mubr.f32.gmra.mrb[0].mxu0 %v2921
        %v2998 = vpop.f32.mrb[0].mxu0
        %v2999 = vadd.f32 0.0, %v2998
        %v3000 = vpop.f32.mrb[0].mxu0
        %3001 = vmatprep.mubr.f32.mxu0 0.0
        %3002 = vmatmul.mubr.f32.gmra.mrb[0].mxu0 %v2924
        %v3003 = vpop.f32.mrb[0].mxu0
        %v3004 = vadd.f32 0.0, %v3003
        %v3005 = vpop.f32.mrb[0].mxu0
        %3006 = vmatprep.mubr.f32.mxu0 0.0
        %3007 = vmatmul.mubr.f32.gmra.mrb[0].mxu0 %v2927
        %v3008 = vpop.f32.mrb[0].mxu0
        %v3009 = vadd.f32 0.0, %v3008
        %v3010 = vpop.f32.mrb[0].mxu0
        %3011 = vmatprep.mubr.f32.mxu0 0.0
        %3012 = vmatmul.mubr.f32.gmra.mrb[0].mxu0 %v2930
        %v3013 = vpop.f32.mrb[0].mxu0
        %v3014 = vadd.f32 0.0, %v3013
        %v3015 = vpop.f32.mrb[0].mxu0
        %3016 = vdwg.mxu0
        %3021 = vrot.lane.b32.xlu0 %v1361, 32
        %v3022 = vpop.permute.xlu0 %3021
        %3023 = vrot.lane.b32.xlu0 %v1366, 32
        %v3024 = vpop.permute.xlu0 %3023
        %3025 = vrot.lane.b32.xlu0 %v1371, 32
        %v3026 = vpop.permute.xlu0 %3025
        %3027 = vrot.lane.b32.xlu0 %v1376, 32
        %v3028 = vpop.permute.xlu0 %3027
        %3037 = vrot.lane.b32.xlu0 %v1636, 64
        %v3038 = vpop.permute.xlu0 %3037
        %3039 = vrot.lane.b32.xlu0 %v1641, 64
        %v3040 = vpop.permute.xlu0 %3039
        %3041 = vrot.lane.b32.xlu0 %v1646, 64
        %v3042 = vpop.permute.xlu0 %3041
        %3043 = vrot.lane.b32.xlu0 %v1651, 64
        %v3044 = vpop.permute.xlu0 %3043
        %3053 = vrot.lane.b32.xlu0 %v1911, 96
        %v3054 = vpop.permute.xlu0 %3053
        %3055 = vrot.lane.b32.xlu0 %v1916, 96
        %v3056 = vpop.permute.xlu0 %3055
        %3057 = vrot.lane.b32.xlu0 %v1921, 96
        %v3058 = vpop.permute.xlu0 %3057
        %3059 = vrot.lane.b32.xlu0 %v1926, 96
        %v3060 = vpop.permute.xlu0 %3059
        %3069 = vrot.lane.b32.xlu0 %v2449, 32
        %v3070 = vpop.permute.xlu0 %3069
        %3071 = vrot.lane.b32.xlu0 %v2454, 32
        %v3072 = vpop.permute.xlu0 %3071
        %3073 = vrot.lane.b32.xlu0 %v2459, 32
        %v3074 = vpop.permute.xlu0 %3073
        %3075 = vrot.lane.b32.xlu0 %v2464, 32
        %v3076 = vpop.permute.xlu0 %3075
        %3085 = vrot.lane.b32.xlu0 %v2724, 64
        %v3086 = vpop.permute.xlu0 %3085
        %3087 = vrot.lane.b32.xlu0 %v2729, 64
        %v3088 = vpop.permute.xlu0 %3087
        %3089 = vrot.lane.b32.xlu0 %v2734, 64
        %v3090 = vpop.permute.xlu0 %3089
        %3091 = vrot.lane.b32.xlu0 %v2739, 64
        %v3092 = vpop.permute.xlu0 %3091
        %3101 = vrot.lane.b32.xlu0 %v2999, 96
        %v3102 = vpop.permute.xlu0 %3101
        %3103 = vrot.lane.b32.xlu0 %v3004, 96
        %v3104 = vpop.permute.xlu0 %3103
        %3105 = vrot.lane.b32.xlu0 %v3009, 96
        %v3106 = vpop.permute.xlu0 %3105
        %3107 = vrot.lane.b32.xlu0 %v3014, 96
        %v3108 = vpop.permute.xlu0 %3107
        %v3113 = vsel %vm465, %v1082, %v3022
        %v3114 = vsel %vm465, %v1087, %v3024
        %v3115 = vsel %vm465, %v1092, %v3026
        %v3116 = vsel %vm465, %v1097, %v3028
        %vm3117 = vcmask 523264
        %v3118 = vsel %vm3117, %v3113, %v3038
        %v3119 = vsel %vm3117, %v3114, %v3040
        %v3120 = vsel %vm3117, %v3115, %v3042
        %v3121 = vsel %vm3117, %v3116, %v3044
        %vm3122 = vcmask 785408
        %v3123 = vsel %vm3122, %v3118, %v3054
        %v3124 = vsel %vm3122, %v3119, %v3056
        %v3125 = vsel %vm3122, %v3120, %v3058
        %v3126 = vsel %vm3122, %v3121, %v3060
        %v3127 = vsel %vm465, %v2170, %v3070
        %v3128 = vsel %vm465, %v2175, %v3072
        %v3129 = vsel %vm465, %v2180, %v3074
        %v3130 = vsel %vm465, %v2185, %v3076
        %v3131 = vsel %vm3117, %v3127, %v3086
        %v3132 = vsel %vm3117, %v3128, %v3088
        %v3133 = vsel %vm3117, %v3129, %v3090
        %v3134 = vsel %vm3117, %v3130, %v3092
        %v3135 = vsel %vm3122, %v3131, %v3102
        %v3136 = vsel %vm3122, %v3132, %v3104
        %v3137 = vsel %vm3122, %v3133, %v3106
        %v3138 = vsel %vm3122, %v3134, %v3108
        %v3139 = vld [vmem:[%s5] sm:$0xff]
        %v3140 = vld [vmem:[%s5 + $0x8] sm:$0xff]
        %v3141 = vld [vmem:[%s5 + $0x10] sm:$0xff]
        %v3142 = vld [vmem:[%s5 + $0x18] sm:$0xff]
        %v3143 = vld [vmem:[%s5 + $0x20] sm:$0xff]
        %v3144 = vld [vmem:[%s5 + $0x28] sm:$0xff]
        %v3145 = vld [vmem:[%s5 + $0x30] sm:$0xff]
        %v3146 = vld [vmem:[%s5 + $0x38] sm:$0xff]
        %v3147 = vld [vmem:[%s5 + $0x40] sm:$0xff]
        %v3148 = vld [vmem:[%s5 + $0x48] sm:$0xff]
        %v3149 = vld [vmem:[%s5 + $0x50] sm:$0xff]
        %v3150 = vld [vmem:[%s5 + $0x58] sm:$0xff]
        %v3151 = vld [vmem:[%s5 + $0x60] sm:$0xff]
        %v3152 = vld [vmem:[%s5 + $0x68] sm:$0xff]
        %v3153 = vld [vmem:[%s5 + $0x70] sm:$0xff]
        %v3154 = vld [vmem:[%s5 + $0x78] sm:$0xff]
        %v3155 = vld [vmem:[%s5 + $0x80] sm:$0xff]
        %v3156 = vld [vmem:[%s5 + $0x88] sm:$0xff]
        %v3157 = vld [vmem:[%s5 + $0x90] sm:$0xff]
        %v3158 = vld [vmem:[%s5 + $0x98] sm:$0xff]
        %v3159 = vld [vmem:[%s5 + $0xa0] sm:$0xff]
        %v3160 = vld [vmem:[%s5 + $0xa8] sm:$0xff]
        %v3161 = vld [vmem:[%s5 + $0xb0] sm:$0xff]
        %v3162 = vld [vmem:[%s5 + $0xb8] sm:$0xff]
        %v3163 = vld [vmem:[%s5 + $0xc0] sm:$0xff]
        %v3164 = vld [vmem:[%s5 + $0xc8] sm:$0xff]
        %v3165 = vld [vmem:[%s5 + $0xd0] sm:$0xff]
        %v3166 = vld [vmem:[%s5 + $0xd8] sm:$0xff]
        %v3167 = vld [vmem:[%s5 + $0xe0] sm:$0xff]
        %v3168 = vld [vmem:[%s5 + $0xe8] sm:$0xff]
        %v3169 = vld [vmem:[%s5 + $0xf0] sm:$0xff]
        %v3170 = vld [vmem:[%s5 + $0xf8] sm:$0xff]
        %v3171 = vld [vmem:[%s6] sm:$0x1]
        %v3173 = vlaneseq
        %v3174 = vshrl.u32 %v3173, 7
        %v3175 = vsub.s32 0, %v3174
        %v3176 = vrot.slane %v3171, %v3175
        %3178 = vmatprep.subr.mxu0 0.0
        %3179 = vmatpush1.msra.mxu0 %v3139
        %3180 = vmatprep.subr.mxu0 0.0
        %3181 = vmatpush1.msra.mxu0 %v3140
        %3182 = vmatprep.subr.mxu0 0.0
        %3183 = vmatpush1.msra.mxu0 %v3141
        %3184 = vmatprep.subr.mxu0 0.0
        %3185 = vmatpush1.msra.mxu0 %v3142
        %3186 = vmatprep.subr.mxu0 0.0
        %3187 = vmatpush1.msra.mxu0 %v3143
        %3188 = vmatprep.subr.mxu0 0.0
        %3189 = vmatpush1.msra.mxu0 %v3144
        %3190 = vmatprep.subr.mxu0 0.0
        %3191 = vmatpush1.msra.mxu0 %v3145
        %3192 = vmatprep.subr.mxu0 0.0
        %3193 = vmatpush1.msra.mxu0 %v3146
        %3194 = vmatprep.subr.mxu0 0.0
        %3195 = vmatpush1.msra.mxu0 %v3147
        %3196 = vmatprep.subr.mxu0 0.0
        %3197 = vmatpush1.msra.mxu0 %v3148
        %3198 = vmatprep.subr.mxu0 0.0
        %3199 = vmatpush1.msra.mxu0 %v3149
        %3200 = vmatprep.subr.mxu0 0.0
        %3201 = vmatpush1.msra.mxu0 %v3150
        %3202 = vmatprep.subr.mxu0 0.0
        %3203 = vmatpush1.msra.mxu0 %v3151
        %3204 = vmatprep.subr.mxu0 0.0
        %3205 = vmatpush1.msra.mxu0 %v3152
        %3206 = vmatprep.subr.mxu0 0.0
        %3207 = vmatpush1.msra.mxu0 %v3153
        %3208 = vmatprep.subr.mxu0 0.0
        %3209 = vmatpush1.msra.mxu0 %v3154
        %3210 = vmatprep.subr.mxu0 0.0
        %3211 = vmatpush1.msra.mxu0 %v3155
        %3212 = vmatprep.subr.mxu0 0.0
        %3213 = vmatpush1.msra.mxu0 %v3156
        %3214 = vmatprep.subr.mxu0 0.0
        %3215 = vmatpush1.msra.mxu0 %v3157
        %3216 = vmatprep.subr.mxu0 0.0
        %3217 = vmatpush1.msra.mxu0 %v3158
        %3218 = vmatprep.subr.mxu0 0.0
        %3219 = vmatpush1.msra.mxu0 %v3159
        %3220 = vmatprep.subr.mxu0 0.0
        %3221 = vmatpush1.msra.mxu0 %v3160
        %3222 = vmatprep.subr.mxu0 0.0
        %3223 = vmatpush1.msra.mxu0 %v3161
        %3224 = vmatprep.subr.mxu0 0.0
        %3225 = vmatpush1.msra.mxu0 %v3162
        %3226 = vmatprep.subr.mxu0 0.0
        %3227 = vmatpush1.msra.mxu0 %v3163
        %3228 = vmatprep.subr.mxu0 0.0
        %3229 = vmatpush1.msra.mxu0 %v3164
        %3230 = vmatprep.subr.mxu0 0.0
        %3231 = vmatpush1.msra.mxu0 %v3165
        %3232 = vmatprep.subr.mxu0 0.0
        %3233 = vmatpush1.msra.mxu0 %v3166
        %3234 = vmatprep.subr.mxu0 0.0
        %3235 = vmatpush1.msra.mxu0 %v3167
        %3236 = vmatprep.subr.mxu0 0.0
        %3237 = vmatpush1.msra.mxu0 %v3168
        %3238 = vmatprep.subr.mxu0 0.0
        %3239 = vmatpush1.msra.mxu0 %v3169
        %3240 = vmatprep.subr.mxu0 0.0
        %3241 = vmatpush1.msra.mxu0 %v3170
        %3242 = vmatprep.mubr.f32.mxu0 %v3135
        %3243 = vmatmul.mubr.f32.gmra.mrb[0].mxu0 %v3123
        %v3244 = vpop.f32.mrb[0].mxu0
        %v3245 = vadd.f32 %v3176, %v3244
        %v3246 = vpop.f32.mrb[0].mxu0
        %3247 = vmatprep.mubr.f32.mxu0 %v3136
        %3248 = vmatmul.mubr.f32.gmra.mrb[0].mxu0 %v3124
        %v3249 = vpop.f32.mrb[0].mxu0
        %v3250 = vadd.f32 %v3176, %v3249
        %v3251 = vpop.f32.mrb[0].mxu0
        %3252 = vmatprep.mubr.f32.mxu0 %v3137
        %3253 = vmatmul.mubr.f32.gmra.mrb[0].mxu0 %v3125
        %v3254 = vpop.f32.mrb[0].mxu0
        %v3255 = vadd.f32 %v3176, %v3254
        %v3256 = vpop.f32.mrb[0].mxu0
        %3257 = vmatprep.mubr.f32.mxu0 %v3138
        %3258 = vmatmul.mubr.f32.gmra.mrb[0].mxu0 %v3126
        %v3259 = vpop.f32.mrb[0].mxu0
        %v3260 = vadd.f32 %v3176, %v3259
        %v3261 = vpop.f32.mrb[0].mxu0
        %3262 = vdwg.mxu0
        %v3263 = vadd.f32 %v459, %v3245
        %v3264 = vadd.f32 %v460, %v3250
        %v3265 = vadd.f32 %v461, %v3255
        %v3266 = vadd.f32 %v462, %v3260
        %v3267 = vld [vmem:[%s7] sm:$0x1]
        %v3268 = vld [vmem:[%s8] sm:$0x1]
        %v3269 = vsel %vm465, %v3263, 0.0
        %3270 = vadd.xlane.f32.xlu0 %v3269
        %v3271 = vpop.xlane.xlu0 %3270
        %v3272 = vsel %vm465, %v3264, 0.0
        %3273 = vadd.xlane.f32.xlu0 %v3272
        %v3274 = vpop.xlane.xlu0 %3273
        %v3275 = vsel %vm465, %v3265, 0.0
        %3276 = vadd.xlane.f32.xlu0 %v3275
        %v3277 = vpop.xlane.xlu0 %3276
        %v3278 = vsel %vm465, %v3266, 0.0
        %3279 = vadd.xlane.f32.xlu0 %v3278
        %v3280 = vpop.xlane.xlu0 %3279
        %v3281 = vmul.f32 %v3271, %v478
        %v3282 = vmul.f32 %v3274, %v478
        %v3283 = vmul.f32 %v3277, %v478
        %v3284 = vmul.f32 %v3280, %v478
        %v3285 = vsub.f32 %v3263, %v3281
        %v3286 = vsub.f32 %v3264, %v3282
        %v3287 = vsub.f32 %v3265, %v3283
        %v3288 = vsub.f32 %v3266, %v3284
        %v3289 = vmul.f32 %v3285, %v3285
        %v3290 = vmul.f32 %v3286, %v3286
        %v3291 = vmul.f32 %v3287, %v3287
        %v3292 = vmul.f32 %v3288, %v3288
        %v3293 = vsel %vm465, %v3289, 0.0
        %3294 = vadd.xlane.f32.xlu0 %v3293
        %v3295 = vpop.xlane.xlu0 %3294
        %v3296 = vsel %vm465, %v3290, 0.0
        %3297 = vadd.xlane.f32.xlu0 %v3296
        %v3298 = vpop.xlane.xlu0 %3297
        %v3299 = vsel %vm465, %v3291, 0.0
        %3300 = vadd.xlane.f32.xlu0 %v3299
        %v3301 = vpop.xlane.xlu0 %3300
        %v3302 = vsel %vm465, %v3292, 0.0
        %3303 = vadd.xlane.f32.xlu0 %v3302
        %v3304 = vpop.xlane.xlu0 %3303
        %v3305 = vmul.f32 %v3295, %v478
        %v3306 = vmul.f32 %v3298, %v478
        %v3307 = vmul.f32 %v3301, %v478
        %v3308 = vmul.f32 %v3304, %v478
        %v3309 = vadd.f32 %v3305, 1e-05
        %v3310 = vadd.f32 %v3306, 1e-05
        %v3311 = vadd.f32 %v3307, 1e-05
        %v3312 = vadd.f32 %v3308, 1e-05
        %v3313 = vrsqrt.pop %v3309
        %v3314 = vrsqrt.pop %v3310
        %v3315 = vrsqrt.pop %v3311
        %v3316 = vrsqrt.pop %v3312
        %v3317 = vmul.f32 %v3285, %v3313
        %v3318 = vmul.f32 %v3286, %v3314
        %v3319 = vmul.f32 %v3287, %v3315
        %v3320 = vmul.f32 %v3288, %v3316
        %v3322 = vlaneseq
        %v3323 = vshrl.u32 %v3322, 7
        %v3324 = vsub.s32 0, %v3323
        %v3325 = vrot.slane %v3267, %v3324
        %v3327 = vmul.f32 %v3317, %v3325
        %v3328 = vmul.f32 %v3318, %v3325
        %v3329 = vmul.f32 %v3319, %v3325
        %v3330 = vmul.f32 %v3320, %v3325
        %v3332 = vlaneseq
        %v3333 = vshrl.u32 %v3332, 7
        %v3334 = vsub.s32 0, %v3333
        %v3335 = vrot.slane %v3268, %v3334
        %v3337 = vadd.f32 %v3327, %v3335
        %v3338 = vadd.f32 %v3328, %v3335
        %v3339 = vadd.f32 %v3329, %v3335
        %v3340 = vadd.f32 %v3330, %v3335
        %v3341 = vld [vmem:[%s9] sm:$0xff]
        %v3342 = vld [vmem:[%s9 + $0x8] sm:$0xff]
        %v3343 = vld [vmem:[%s9 + $0x10] sm:$0xff]
        %v3344 = vld [vmem:[%s9 + $0x18] sm:$0xff]
        %v3345 = vld [vmem:[%s10] sm:$0x1]
        %v3347 = vlaneseq
        %v3348 = vshrl.u32 %v3347, 7
        %v3349 = vsub.s32 0, %v3348
        %v3350 = vrot.slane %v3345, %v3349
        %v3353 = vsel %vm465, %v3337, 0
        %v3356 = vsel %vm465, %v3338, 0
        %v3359 = vsel %vm465, %v3339, 0
        %v3362 = vsel %vm465, %v3340, 0
        %3364 = vmatprep.subr.mxu0 0.0
        %3365 = vmatpush1.msra.mxu0 %v3341
        %3366 = vmatprep.subr.mxu0 0.0
        %3367 = vmatpush1.msra.mxu0 %v3342
        %3368 = vmatprep.subr.mxu0 0.0
        %3369 = vmatpush1.msra.mxu0 %v3343
        %3370 = vmatprep.subr.mxu0 0.0
        %3371 = vmatpush1.msra.mxu0 %v3344
        %3372 = vmatprep.subr.mxu0 0.0
        %3373 = vmatpush1.msra.mxu0 0.0
        %3374 = vmatprep.subr.mxu0 0.0
        %3375 = vmatpush1.msra.mxu0 0.0
        %3376 = vmatprep.subr.mxu0 0.0
        %3377 = vmatpush1.msra.mxu0 0.0
        %3378 = vmatprep.subr.mxu0 0.0
        %3379 = vmatpush1.msra.mxu0 0.0
        %3380 = vmatprep.subr.mxu0 0.0
        %3381 = vmatpush1.msra.mxu0 0.0
        %3382 = vmatprep.subr.mxu0 0.0
        %3383 = vmatpush1.msra.mxu0 0.0
        %3384 = vmatprep.subr.mxu0 0.0
        %3385 = vmatpush1.msra.mxu0 0.0
        %3386 = vmatprep.subr.mxu0 0.0
        %3387 = vmatpush1.msra.mxu0 0.0
        %3388 = vmatprep.subr.mxu0 0.0
        %3389 = vmatpush1.msra.mxu0 0.0
        %3390 = vmatprep.subr.mxu0 0.0
        %3391 = vmatpush1.msra.mxu0 0.0
        %3392 = vmatprep.subr.mxu0 0.0
        %3393 = vmatpush1.msra.mxu0 0.0
        %3394 = vmatprep.subr.mxu0 0.0
        %3395 = vmatpush1.msra.mxu0 0.0
        %3396 = vmatprep.subr.mxu0 0.0
        %3397 = vmatpush1.msra.mxu0 0.0
        %3398 = vmatprep.subr.mxu0 0.0
        %3399 = vmatpush1.msra.mxu0 0.0
        %3400 = vmatprep.subr.mxu0 0.0
        %3401 = vmatpush1.msra.mxu0 0.0
        %3402 = vmatprep.subr.mxu0 0.0
        %3403 = vmatpush1.msra.mxu0 0.0
        %3404 = vmatprep.subr.mxu0 0.0
        %3405 = vmatpush1.msra.mxu0 0.0
        %3406 = vmatprep.subr.mxu0 0.0
        %3407 = vmatpush1.msra.mxu0 0.0
        %3408 = vmatprep.subr.mxu0 0.0
        %3409 = vmatpush1.msra.mxu0 0.0
        %3410 = vmatprep.subr.mxu0 0.0
        %3411 = vmatpush1.msra.mxu0 0.0
        %3412 = vmatprep.subr.mxu0 0.0
        %3413 = vmatpush1.msra.mxu0 0.0
        %3414 = vmatprep.subr.mxu0 0.0
        %3415 = vmatpush1.msra.mxu0 0.0
        %3416 = vmatprep.subr.mxu0 0.0
        %3417 = vmatpush1.msra.mxu0 0.0
        %3418 = vmatprep.subr.mxu0 0.0
        %3419 = vmatpush1.msra.mxu0 0.0
        %3420 = vmatprep.subr.mxu0 0.0
        %3421 = vmatpush1.msra.mxu0 0.0
        %3422 = vmatprep.subr.mxu0 0.0
        %3423 = vmatpush1.msra.mxu0 0.0
        %3424 = vmatprep.subr.mxu0 0.0
        %3425 = vmatpush1.msra.mxu0 0.0
        %3426 = vmatprep.subr.mxu0 0.0
        %3427 = vmatpush1.msra.mxu0 0.0
        %3428 = vmatprep.mubr.f32.mxu0 0.0
        %3429 = vmatmul.mubr.f32.gmra.mrb[0].mxu0 %v3353
        %v3430 = vpop.f32.mrb[0].mxu0
        %v3431 = vadd.f32 %v3350, %v3430
        %v3432 = vpop.f32.mrb[0].mxu0
        %3433 = vmatprep.mubr.f32.mxu0 0.0
        %3434 = vmatmul.mubr.f32.gmra.mrb[0].mxu0 %v3356
        %v3435 = vpop.f32.mrb[0].mxu0
        %v3436 = vadd.f32 %v3350, %v3435
        %v3437 = vpop.f32.mrb[0].mxu0
        %3438 = vmatprep.mubr.f32.mxu0 0.0
        %3439 = vmatmul.mubr.f32.gmra.mrb[0].mxu0 %v3359
        %v3440 = vpop.f32.mrb[0].mxu0
        %v3441 = vadd.f32 %v3350, %v3440
        %v3442 = vpop.f32.mrb[0].mxu0
        %3443 = vmatprep.mubr.f32.mxu0 0.0
        %3444 = vmatmul.mubr.f32.gmra.mrb[0].mxu0 %v3362
        %v3445 = vpop.f32.mrb[0].mxu0
        %v3446 = vadd.f32 %v3350, %v3445
        %v3447 = vpop.f32.mrb[0].mxu0
        %3448 = vdwg.mxu0
        %v3449 = vmul.f32 %v3431, 0.5
        %v3450 = vmul.f32 %v3436, 0.5
        %v3451 = vmul.f32 %v3441, 0.5
        %v3452 = vmul.f32 %v3446, 0.5
        %v3453 = vmul.f32 %v3431, 0.70710677
        %v3454 = vmul.f32 %v3436, 0.70710677
        %v3455 = vmul.f32 %v3441, 0.70710677
        %v3456 = vmul.f32 %v3446, 0.70710677
        %vm3457 = vcmp.ge.f32.partialorder %v3453, 0.0
        %vm3458 = vcmp.ge.f32.partialorder %v3454, 0.0
        %vm3459 = vcmp.ge.f32.partialorder %v3455, 0.0
        %vm3460 = vcmp.ge.f32.partialorder %v3456, 0.0
        %v3461 = vsel %vm3457, 1.0, -1.0
        %v3462 = vsel %vm3458, 1.0, -1.0
        %v3463 = vsel %vm3459, 1.0, -1.0
        %v3464 = vsel %vm3460, 1.0, -1.0
        %v3465 = vand.u32 2147483647, %v3453
        %v3466 = vand.u32 2147483647, %v3454
        %v3467 = vand.u32 2147483647, %v3455
        %v3468 = vand.u32 2147483647, %v3456
        %v3469 = vmul.f32 %v3465, 0.3275911
        %v3470 = vmul.f32 %v3466, 0.3275911
        %v3471 = vmul.f32 %v3467, 0.3275911
        %v3472 = vmul.f32 %v3468, 0.3275911
        %v3473 = vadd.f32 %v3469, 1.0
        %v3474 = vadd.f32 %v3470, 1.0
        %v3475 = vadd.f32 %v3471, 1.0
        %v3476 = vadd.f32 %v3472, 1.0
        %v3477 = vrcp.pop %v3473
        %v3478 = vmul.f32 1.0, %v3477
        %v3479 = vrcp.pop %v3474
        %v3480 = vmul.f32 1.0, %v3479
        %v3481 = vrcp.pop %v3475
        %v3482 = vmul.f32 1.0, %v3481
        %v3483 = vrcp.pop %v3476
        %v3484 = vmul.f32 1.0, %v3483
        %v3485 = vmul.f32 %v3478, 1.0614054
        %v3486 = vmul.f32 %v3480, 1.0614054
        %v3487 = vmul.f32 %v3482, 1.0614054
        %v3488 = vmul.f32 %v3484, 1.0614054
        %v3489 = vadd.f32 %v3485, -1.4531521
        %v3490 = vadd.f32 %v3486, -1.4531521
        %v3491 = vadd.f32 %v3487, -1.4531521
        %v3492 = vadd.f32 %v3488, -1.4531521
        %v3493 = vmul.f32 %v3489, %v3478
        %v3494 = vmul.f32 %v3490, %v3480
        %v3495 = vmul.f32 %v3491, %v3482
        %v3496 = vmul.f32 %v3492, %v3484
        %v3497 = vadd.f32 %v3493, 1.4214138
        %v3498 = vadd.f32 %v3494, 1.4214138
        %v3499 = vadd.f32 %v3495, 1.4214138
        %v3500 = vadd.f32 %v3496, 1.4214138
        %v3501 = vmul.f32 %v3497, %v3478
        %v3502 = vmul.f32 %v3498, %v3480
        %v3503 = vmul.f32 %v3499, %v3482
        %v3504 = vmul.f32 %v3500, %v3484
        %v3505 = vadd.f32 %v3501, -0.28449672
        %v3506 = vadd.f32 %v3502, -0.28449672
        %v3507 = vadd.f32 %v3503, -0.28449672
        %v3508 = vadd.f32 %v3504, -0.28449672
        %v3509 = vmul.f32 %v3505, %v3478
        %v3510 = vmul.f32 %v3506, %v3480
        %v3511 = vmul.f32 %v3507, %v3482
        %v3512 = vmul.f32 %v3508, %v3484
        %v3513 = vadd.f32 %v3509, 0.2548296
        %v3514 = vadd.f32 %v3510, 0.2548296
        %v3515 = vadd.f32 %v3511, 0.2548296
        %v3516 = vadd.f32 %v3512, 0.2548296
        %v3517 = vmul.f32 %v3513, %v3478
        %v3518 = vmul.f32 %v3514, %v3480
        %v3519 = vmul.f32 %v3515, %v3482
        %v3520 = vmul.f32 %v3516, %v3484
        %v3521 = vsub.f32 0.0, %v3465
        %v3522 = vsub.f32 0.0, %v3466
        %v3523 = vsub.f32 0.0, %v3467
        %v3524 = vsub.f32 0.0, %v3468
        %v3525 = vmul.f32 %v3521, %v3465
        %v3526 = vmul.f32 %v3522, %v3466
        %v3527 = vmul.f32 %v3523, %v3467
        %v3528 = vmul.f32 %v3524, %v3468
        %v3529 = vmul.f32 %v3525, 1.442695
        %v3530 = vpow.pop %v3529
        %v3531 = vmul.f32 %v3526, 1.442695
        %v3532 = vpow.pop %v3531
        %v3533 = vmul.f32 %v3527, 1.442695
        %v3534 = vpow.pop %v3533
        %v3535 = vmul.f32 %v3528, 1.442695
        %v3536 = vpow.pop %v3535
        %v3537 = vmul.f32 %v3517, %v3530
        %v3538 = vmul.f32 %v3518, %v3532
        %v3539 = vmul.f32 %v3519, %v3534
        %v3540 = vmul.f32 %v3520, %v3536
        %v3541 = vsub.f32 1.0, %v3537
        %v3542 = vsub.f32 1.0, %v3538
        %v3543 = vsub.f32 1.0, %v3539
        %v3544 = vsub.f32 1.0, %v3540
        %v3545 = vmul.f32 %v3461, %v3541
        %v3546 = vmul.f32 %v3462, %v3542
        %v3547 = vmul.f32 %v3463, %v3543
        %v3548 = vmul.f32 %v3464, %v3544
        %v3549 = vadd.f32 %v3545, 1.0
        %v3550 = vadd.f32 %v3546, 1.0
        %v3551 = vadd.f32 %v3547, 1.0
        %v3552 = vadd.f32 %v3548, 1.0
        %v3553 = vmul.f32 %v3449, %v3549
        %v3554 = vmul.f32 %v3450, %v3550
        %v3555 = vmul.f32 %v3451, %v3551
        %v3556 = vmul.f32 %v3452, %v3552
        %v3557 = vld [vmem:[%s11] sm:$0xff]
        %v3558 = vld [vmem:[%s11 + $0x8] sm:$0xff]
        %v3559 = vld [vmem:[%s11 + $0x10] sm:$0xff]
        %v3560 = vld [vmem:[%s11 + $0x18] sm:$0xff]
        %v3561 = vld [vmem:[%s11 + $0x20] sm:$0xff]
        %v3562 = vld [vmem:[%s11 + $0x28] sm:$0xff]
        %v3563 = vld [vmem:[%s11 + $0x30] sm:$0xff]
        %v3564 = vld [vmem:[%s11 + $0x38] sm:$0xff]
        %v3565 = vld [vmem:[%s11 + $0x40] sm:$0xff]
        %v3566 = vld [vmem:[%s11 + $0x48] sm:$0xff]
        %v3567 = vld [vmem:[%s11 + $0x50] sm:$0xff]
        %v3568 = vld [vmem:[%s11 + $0x58] sm:$0xff]
        %v3569 = vld [vmem:[%s11 + $0x60] sm:$0xff]
        %v3570 = vld [vmem:[%s11 + $0x68] sm:$0xff]
        %v3571 = vld [vmem:[%s11 + $0x70] sm:$0xff]
        %v3572 = vld [vmem:[%s11 + $0x78] sm:$0xff]
        %v3573 = vld [vmem:[%s12] sm:$0x1]
        %v3575 = vlaneseq
        %v3576 = vshrl.u32 %v3575, 7
        %v3577 = vsub.s32 0, %v3576
        %v3578 = vrot.slane %v3573, %v3577
        %3580 = vmatprep.subr.mxu0 0.0
        %3581 = vmatpush1.msra.mxu0 %v3557
        %3582 = vmatprep.subr.mxu0 0.0
        %3583 = vmatpush1.msra.mxu0 %v3558
        %3584 = vmatprep.subr.mxu0 0.0
        %3585 = vmatpush1.msra.mxu0 %v3559
        %3586 = vmatprep.subr.mxu0 0.0
        %3587 = vmatpush1.msra.mxu0 %v3560
        %3588 = vmatprep.subr.mxu0 0.0
        %3589 = vmatpush1.msra.mxu0 %v3561
        %3590 = vmatprep.subr.mxu0 0.0
        %3591 = vmatpush1.msra.mxu0 %v3562
        %3592 = vmatprep.subr.mxu0 0.0
        %3593 = vmatpush1.msra.mxu0 %v3563
        %3594 = vmatprep.subr.mxu0 0.0
        %3595 = vmatpush1.msra.mxu0 %v3564
        %3596 = vmatprep.subr.mxu0 0.0
        %3597 = vmatpush1.msra.mxu0 %v3565
        %3598 = vmatprep.subr.mxu0 0.0
        %3599 = vmatpush1.msra.mxu0 %v3566
        %3600 = vmatprep.subr.mxu0 0.0
        %3601 = vmatpush1.msra.mxu0 %v3567
        %3602 = vmatprep.subr.mxu0 0.0
        %3603 = vmatpush1.msra.mxu0 %v3568
        %3604 = vmatprep.subr.mxu0 0.0
        %3605 = vmatpush1.msra.mxu0 %v3569
        %3606 = vmatprep.subr.mxu0 0.0
        %3607 = vmatpush1.msra.mxu0 %v3570
        %3608 = vmatprep.subr.mxu0 0.0
        %3609 = vmatpush1.msra.mxu0 %v3571
        %3610 = vmatprep.subr.mxu0 0.0
        %3611 = vmatpush1.msra.mxu0 %v3572
        %3612 = vmatprep.subr.mxu0 0.0
        %3613 = vmatpush1.msra.mxu0 0.0
        %3614 = vmatprep.subr.mxu0 0.0
        %3615 = vmatpush1.msra.mxu0 0.0
        %3616 = vmatprep.subr.mxu0 0.0
        %3617 = vmatpush1.msra.mxu0 0.0
        %3618 = vmatprep.subr.mxu0 0.0
        %3619 = vmatpush1.msra.mxu0 0.0
        %3620 = vmatprep.subr.mxu0 0.0
        %3621 = vmatpush1.msra.mxu0 0.0
        %3622 = vmatprep.subr.mxu0 0.0
        %3623 = vmatpush1.msra.mxu0 0.0
        %3624 = vmatprep.subr.mxu0 0.0
        %3625 = vmatpush1.msra.mxu0 0.0
        %3626 = vmatprep.subr.mxu0 0.0
        %3627 = vmatpush1.msra.mxu0 0.0
        %3628 = vmatprep.subr.mxu0 0.0
        %3629 = vmatpush1.msra.mxu0 0.0
        %3630 = vmatprep.subr.mxu0 0.0
        %3631 = vmatpush1.msra.mxu0 0.0
        %3632 = vmatprep.subr.mxu0 0.0
        %3633 = vmatpush1.msra.mxu0 0.0
        %3634 = vmatprep.subr.mxu0 0.0
        %3635 = vmatpush1.msra.mxu0 0.0
        %3636 = vmatprep.subr.mxu0 0.0
        %3637 = vmatpush1.msra.mxu0 0.0
        %3638 = vmatprep.subr.mxu0 0.0
        %3639 = vmatpush1.msra.mxu0 0.0
        %3640 = vmatprep.subr.mxu0 0.0
        %3641 = vmatpush1.msra.mxu0 0.0
        %3642 = vmatprep.subr.mxu0 0.0
        %3643 = vmatpush1.msra.mxu0 0.0
        %3644 = vmatprep.mubr.f32.mxu0 0.0
        %3645 = vmatmul.mubr.f32.gmra.mrb[0].mxu0 %v3553
        %v3646 = vpop.f32.mrb[0].mxu0
        %v3647 = vadd.f32 %v3578, %v3646
        %v3648 = vpop.f32.mrb[0].mxu0
        %3649 = vmatprep.mubr.f32.mxu0 0.0
        %3650 = vmatmul.mubr.f32.gmra.mrb[0].mxu0 %v3554
        %v3651 = vpop.f32.mrb[0].mxu0
        %v3652 = vadd.f32 %v3578, %v3651
        %v3653 = vpop.f32.mrb[0].mxu0
        %3654 = vmatprep.mubr.f32.mxu0 0.0
        %3655 = vmatmul.mubr.f32.gmra.mrb[0].mxu0 %v3555
        %v3656 = vpop.f32.mrb[0].mxu0
        %v3657 = vadd.f32 %v3578, %v3656
        %v3658 = vpop.f32.mrb[0].mxu0
        %3659 = vmatprep.mubr.f32.mxu0 0.0
        %3660 = vmatmul.mubr.f32.gmra.mrb[0].mxu0 %v3556
        %v3661 = vpop.f32.mrb[0].mxu0
        %v3662 = vadd.f32 %v3578, %v3661
        %v3663 = vpop.f32.mrb[0].mxu0
        %3664 = vdwg.mxu0
        %v3665 = vadd.f32 %v3263, %v3647
        %v3666 = vadd.f32 %v3264, %v3652
        %v3667 = vadd.f32 %v3265, %v3657
        %v3668 = vadd.f32 %v3266, %v3662
        %3669 = vst.msk [vmem:[%s458] sm:$0xff] %vm465, %v3665
        %3670 = vst.msk [vmem:[%s458 + $0x8] sm:$0xff] %vm465, %v3666
        %3671 = vst.msk [vmem:[%s458 + $0x10] sm:$0xff] %vm465, %v3667
        %3672 = vst.msk [vmem:[%s458 + $0x18] sm:$0xff] %vm465, %v3668
        %s3673 = sand.u32 %s316, 1
        %s3674 = scalar_lea.sflag [#allocation4], %s3673
        %s3675 = sand.u32 %s316, 1
        %s3676 = smul.addr %s3675, 32
        %s3677 = scalar_lea.vmem [#allocation5], %s3676
        // Predicated region
        $region77: #{tpu_custom_call.1} parent=71 // pred_check
          %p3678 = pneg %p326
        $region78: #{tpu_custom_call.1} parent=71 // pred_check_branch
          %3680 = sbr.rel (%p3678) target = $region80
        $region79: #{tpu_custom_call.1} parent=71 // pred_region
          %s3682 = ssub.s32 512, 512
          %3683 = vsyncadd %s3674, %s3682
          %s3684 = smul.addr %s30, 4
          %s3685 = smul.addr %s3684, 128
          %s3686 = scalar_lea.hbm %s13, %s3685
          %s3687 = sshll.u32 %s3677, 4
          %s3688 = int_to_ptr.vmem [resolvable:$true] %s3687
          %3693 = dma.vmem_to_hbm [thread:$0]  %s3688, 512, %s3686, %s3674, 128, 128, 8
        $region80: #{tpu_custom_call.1} parent=71 // pred_fallthru
          _
      $region72: #{tpu_custom_call.1} parent=5 // pred_fallthru
        _
      %p3694 = scmp.le.s32.totalorder 2, %s25
      // Predicated region
      $region81: #{tpu_custom_call.1} parent=5 // pred_check
        %p3695 = pneg %p3694
      $region82: #{tpu_custom_call.1} parent=5 // pred_check_branch
        %3697 = sbr.rel (%p3695) target = $region84
      $region83: #{tpu_custom_call.1} parent=5 // pred_region
        %s3698 = ssub.s32 %s25, 2
        // Predicated region
        $region85: #{tpu_custom_call.1} parent=83 // pred_check
          %p3699 = pneg %p332
        $region86: #{tpu_custom_call.1} parent=83 // pred_check_branch
          %3701 = sbr.rel (%p3699) target = $region88
        $region87: #{tpu_custom_call.1} parent=83 // pred_region
          %s3702 = sand.u32 %s317, 1
          %s3703 = scalar_lea.sflag [#allocation4], %s3702
          %s3704 = sand.u32 %s317, 1
          %s3705 = smul.addr %s3704, 32
          %s3706 = scalar_lea.vmem [#allocation5], %s3705
          %3707 = dma.done %s3703, 512
        $region88: #{tpu_custom_call.1} parent=83 // pred_fallthru
          _
      $region84: #{tpu_custom_call.1} parent=5 // pred_fallthru
        _
    $region6: #{tpu_custom_call.1} parent=1 // loop_footer
      %s29 = sadd.s32 1, %s25
    $region7: #{tpu_custom_call.1} parent=1 // loop_footer_branch
      %24 = sbr.rel target = $region3
    $region8: #{tpu_custom_call.1} parent=1 // loop_exit
      _
    %3708 = vsyncpa [#allocation3], 1
    %s3709 = scalar_lea.sflag [#allocation3], 1
    %3710 = vsyncpa %s3709, 1
    %3711 = vsyncpa [#allocation4], 1
    %s3712 = scalar_lea.sflag [#allocation4], 1
    %3713 = vsyncpa %s3712, 1

</llo_original>
